<compile_context>
chip_gen: v6e
topology: v6e:2x2x1
jax: 0.10.0
libtpu: 0.0.40
codegen_flags: <defaults>
</compile_context>

<pallas_src>
import functools

import jax
import jax.numpy as jnp
import numpy as np
from jax import lax
from jax.experimental import pallas as pl
from jax.experimental.pallas import tpu as pltpu


# ---------------------------------------------------------------------------
# math helpers shared by the kernel body and the pure-JAX reference
# ---------------------------------------------------------------------------
def _up2x_hwc(z):
    """2x bilinear upsample of (h, w, c), half-pixel centers
    (== F.interpolate(scale_factor=2, mode='bilinear', align_corners=False))."""
    h, w, c = z.shape
    z = z.astype(jnp.float32)
    # --- H direction: shifts and the even/odd interleave only touch the leading
    #     dim, so stack+reshape is a free row-major merge (no relayout, no O(H) loop).
    up = jnp.concatenate([z[:1], z[:-1]], axis=0)         # row m-1 (edge clamped)
    dn = jnp.concatenate([z[1:], z[-1:]], axis=0)         # row m+1 (edge clamped)
    even = 0.25 * up + 0.75 * z
    odd = 0.75 * z + 0.25 * dn
    zh = jnp.stack([even, odd], axis=1).reshape(2 * h, w, c)
    # --- W direction (sublane dim).  Shifts / interleave kept as slice+concat,
    #     which is guaranteed to lower in Mosaic; after the 1x1-first rewrite this
    #     runs on the *low-res* width, so the tensor is small.  (pltpu.roll /
    #     strided scratch stores are a possible further micro-opt.)
    lf = jnp.concatenate([zh[:, :1], zh[:, :-1]], axis=1)
    rt = jnp.concatenate([zh[:, 1:], zh[:, -1:]], axis=1)
    even = 0.25 * lf + 0.75 * zh
    odd = 0.75 * zh + 0.25 * rt
    cols = []
    for k in range(w):
        cols.append(even[:, k:k + 1])
        cols.append(odd[:, k:k + 1])
    return jnp.concatenate(cols, axis=1)                  # (2h, 2w, c)


def _im2col_3x3(tp, h_out, w_out):
    """tp: (h_out + 2, w_out + 2, c) spatially pre-padded tile.
    Returns (h_out * w_out, 9 * c) patches ordered (dy, dx, c), matching an HWIO
    3x3 weight reshaped row-major to (9 * c, c_out)."""
    c = tp.shape[-1]
    taps = [tp[dy:dy + h_out, dx:dx + w_out, :] for dy in range(3) for dx in range(3)]
    return jnp.concatenate(taps, axis=-1).reshape(h_out * w_out, 9 * c)


# ---------------------------------------------------------------------------
# Pallas kernel: one (batch, row-band) tile of the whole fused block
# ---------------------------------------------------------------------------
def _build_upconv_call(n, h, w, cin, cs, co, th):
    th2 = th // 2
    nb = h // th
    w2 = w // 2
    wp = w + 2                                   # W plus the 3x3 convs' zero pad

    def kernel(skip_ref, x_ref, wup_ref, sup_ref, bup_ref,
               w1s_ref, w1y_ref, s1_ref, b1_ref,
               w2_ref, s2_ref, b2_ref,
               out_ref, ypad_ref, h1pad_ref):
        b = pl.program_id(1)

        # ---- InterpConv, reordered: 1x1 conv + folded BN on the LOW-RES band
        #      (4x fewer pixels), then bilinear 2x upsample, then ReLU. ----
        xb = x_ref[0, 0]                                          # (th2+4, w2, cin) bf16
        z = jnp.dot(xb.reshape((th2 + 4) * w2, cin), wup_ref[...],
                    preferred_element_type=jnp.float32)           # bf16 x bf16 -> f32
        z = z * sup_ref[...] + bup_ref[...]
        z = z.reshape(th2 + 4, w2, cs)
        yf = _up2x_hwc(z)                                         # (th+8, w, cs) f32
        y = yf[2:th + 6]                                          # rows b*th-2 .. b*th+th+1
        # ReLU, then zero halo rows outside the image: these are conv1's zero
        # padding in H (the skip half gets its zeros from the wrapper-side pad).
        g = lax.broadcasted_iota(jnp.int32, (th + 4, 1, 1), 0) + (b * th - 2)
        y = jnp.where((g >= 0) & (g < h), jnp.maximum(y, 0.0), 0.0)

        # ---- W-pad y via a pre-padded VMEM scratch (single write, no concat pad) ----
        zc_y = jnp.zeros((th + 4, 1, cs), jnp.float32)
        ypad_ref[:, 0:1, :] = zc_y
        ypad_ref[:, wp - 1:wp, :] = zc_y
        ypad_ref[:, 1:wp - 1, :] = y

        # ---- conv1: 3x3 over the *virtual* concat([skip, y], C) as a split-weight
        #      sum of two im2col matmuls (K = 9*cs each). ----
        sk = skip_ref[0, 0]                                       # (th+4, w+2, cs) bf16, pre-padded
        a_s = _im2col_3x3(sk, th + 2, w)                          # (pix1, 9*cs) bf16
        a_y = _im2col_3x3(ypad_ref[...], th + 2, w)               # (pix1, 9*cs) f32
        acc1 = jnp.dot(a_s, w1s_ref[...], preferred_element_type=jnp.float32)
        acc1 = acc1 + jnp.dot(a_y, w1y_ref[...].astype(jnp.float32),
                              preferred_element_type=jnp.float32)
        h1 = jnp.maximum(acc1 * s1_ref[...] + b1_ref[...], 0.0)
        h1 = h1.reshape(th + 2, w, co)
        # zero h1 halo rows outside the image (conv2's zero padding in H)
        g1 = lax.broadcasted_iota(jnp.int32, (th + 2, 1, 1), 0) + (b * th - 1)
        h1 = jnp.where((g1 >= 0) & (g1 < h), h1, 0.0)

        zc_h = jnp.zeros((th + 2, 1, co), jnp.float32)
        h1pad_ref[:, 0:1, :] = zc_h
        h1pad_ref[:, wp - 1:wp, :] = zc_h
        h1pad_ref[:, 1:wp - 1, :] = h1

        # ---- conv2: single K = 9*co im2col matmul + folded BN + ReLU ----
        a2 = _im2col_3x3(h1pad_ref[...], th, w)                   # (th*w, 9*co) f32
        acc2 = jnp.dot(a2, w2_ref[...].astype(jnp.float32),
                       preferred_element_type=jnp.float32)
        h2v = jnp.maximum(acc2 * s2_ref[...] + b2_ref[...], 0.0)  # (th*w, co)
        # NOTE: with Co this small the store is lane-sparse; at realistic decoder
        # channel counts (>=64..128) this store becomes naturally lane-dense.
        out_ref[0, 0] = h2v.astype(out_ref.dtype)

    def _const(shape):
        return pl.BlockSpec(shape, lambda ni, bi: (0,) * len(shape))

    in_specs = [
        pl.BlockSpec((1, 1, th + 4, wp, cs), lambda ni, bi: (ni, bi, 0, 0, 0)),
        pl.BlockSpec((1, 1, th2 + 4, w2, cin), lambda ni, bi: (ni, bi, 0, 0, 0)),
        _const((cin, cs)), _const((1, cs)), _const((1, cs)),
        _const((9 * cs, co)), _const((9 * cs, co)), _const((1, co)), _const((1, co)),
        _const((9 * co, co)), _const((1, co)), _const((1, co)),
    ]
    out_specs = pl.BlockSpec((1, 1, th * w, co), lambda ni, bi: (ni, bi, 0, 0))

    return pl.pallas_call(
        kernel,
        out_shape=jax.ShapeDtypeStruct((n, nb, th * w, co), jnp.float32),
        grid=(n, nb),
        in_specs=in_specs,
        out_specs=out_specs,
        scratch_shapes=[
            pltpu.VMEM((th + 4, wp, cs), jnp.float32),   # W-padded upsampled band
            pltpu.VMEM((th + 2, wp, co), jnp.float32),   # W-padded conv1 output
        ],
        compiler_params=pltpu.CompilerParams(
            # both grid axes are independent -> shard across TensorCores (v7x)
            dimension_semantics=("parallel", "parallel"),
            # explicit scoped-VMEM budget (v5e default is only 16 MiB); tile_h should
            # be sized so the double-buffered band working set stays well under this
            # (and under ~32-48 MiB on v7x's 64 MiB physical VMEM).
            vmem_limit_bytes=32 * 1024 * 1024,
        ),
    )


# ---------------------------------------------------------------------------
# wrapper: NCHW boundary, bf16 storage, haloed row-band construction (XLA glue)
# ---------------------------------------------------------------------------
@functools.partial(jax.jit, static_argnames=("tile_h",))
def upconv_block_forward(skip_nchw, x_nchw, params, tile_h=8):
    # NCHW <-> NHWC only at the boundary for PyTorch parity; in a pure-NHWC
    # pipeline these transposes disappear (keep this call under the caller's jit).
    skip = jnp.transpose(skip_nchw, (0, 2, 3, 1)).astype(jnp.bfloat16)
    x = jnp.transpose(x_nchw, (0, 2, 3, 1)).astype(jnp.bfloat16)

    n, h, w, cs = skip.shape
    _, h2, w2, cin = x.shape
    assert (h, w) == (2 * h2, 2 * w2), "x must be at half the resolution of skip"
    th = min(tile_h, h)
    assert th % 2 == 0 and h % th == 0, "tile_h must be even and divide H"
    th2 = th // 2
    nb = h // th

    # fold weights into matmul layout (glue); conv weights stored bf16, BN f32
    w_up = params["w_up"].astype(jnp.bfloat16)                    # (cin, cs)
    w1 = params["w1"].astype(jnp.bfloat16)                        # (3, 3, 2cs, co) HWIO
    w2k = params["w2"].astype(jnp.bfloat16)                       # (3, 3, co, co) HWIO
    co = w2k.shape[-1]
    w1s = w1[:, :, :cs, :].reshape(9 * cs, co)                    # skip half
    w1y = w1[:, :, cs:, :].reshape(9 * cs, co)                    # upsampled half
    w2r = w2k.reshape(9 * co, co)
    s_up = params["s_up"].reshape(1, cs).astype(jnp.float32)
    b_up = params["b_up"].reshape(1, cs).astype(jnp.float32)
    s1 = params["s1"].reshape(1, co).astype(jnp.float32)
    b1 = params["b1"].reshape(1, co).astype(jnp.float32)
    s2 = params["s2"].reshape(1, co).astype(jnp.float32)
    b2 = params["b2"].reshape(1, co).astype(jnp.float32)

    # Overlapping, haloed row bands (built once by XLA) so every grid step is
    # independent: skip gets a zero halo (= the 3x3 convs' zero padding in H) and a
    # 1-column zero pad in W; x gets an edge-replicated halo (= bilinear clamping).
    skip_p = jnp.pad(skip, ((0, 0), (2, 2), (1, 1), (0, 0)))
    x_p = jnp.pad(x, ((0, 0), (2, 2), (0, 0), (0, 0)), mode="edge")
    ridx = jnp.arange(nb)[:, None] * th + jnp.arange(th + 4)[None, :]
    skip_b = skip_p[:, ridx]                                      # (n, nb, th+4, w+2, cs)
    ridx2 = jnp.arange(nb)[:, None] * th2 + jnp.arange(th2 + 4)[None, :]
    x_b = x_p[:, ridx2]                                           # (n, nb, th2+4, w2, cin)

    call = _build_upconv_call(n, h, w, cin, cs, co, th)
    out = call(skip_b, x_b, w_up, s_up, b_up, w1s, w1y, s1, b1, w2r, s2, b2)
    out = out.reshape(n, nb, th, w, co).reshape(n, h, w, co)      # free (contiguous)
    return jnp.transpose(out, (0, 3, 1, 2))                       # back to NCHW


# ---------------------------------------------------------------------------
# deterministic synthetic parameters (inference-mode BN folded in glue)
# ---------------------------------------------------------------------------
def _fold_bn(gamma, beta, mean, var, eps=1e-5):
    scale = gamma / jnp.sqrt(var + eps)
    bias = beta - mean * scale
    return scale, bias


def init_params(key, cin, cs, co):
    ks = jax.random.split(key, 15)
    bf16 = jnp.bfloat16
    w_up = (jax.random.normal(ks[0], (cin, cs), jnp.float32) * 0.2).astype(bf16)
    s_up, b_up = _fold_bn(jax.random.uniform(ks[1], (cs,), jnp.float32, 0.5, 1.5),
                          jax.random.normal(ks[2], (cs,), jnp.float32) * 0.1,
                          jax.random.normal(ks[3], (cs,), jnp.float32) * 0.1,
                          jax.random.uniform(ks[4], (cs,), jnp.float32, 0.5, 1.5))
    w1 = (jax.random.normal(ks[5], (3, 3, 2 * cs, co), jnp.float32) * 0.2).astype(bf16)
    s1, b1 = _fold_bn(jax.random.uniform(ks[6], (co,), jnp.float32, 0.5, 1.5),
                      jax.random.normal(ks[7], (co,), jnp.float32) * 0.1,
                      jax.random.normal(ks[8], (co,), jnp.float32) * 0.1,
                      jax.random.uniform(ks[9], (co,), jnp.float32, 0.5, 1.5))
    w2 = (jax.random.normal(ks[10], (3, 3, co, co), jnp.float32) * 0.2).astype(bf16)
    s2, b2 = _fold_bn(jax.random.uniform(ks[11], (co,), jnp.float32, 0.5, 1.5),
                      jax.random.normal(ks[12], (co,), jnp.float32) * 0.1,
                      jax.random.normal(ks[13], (co,), jnp.float32) * 0.1,
                      jax.random.uniform(ks[14], (co,), jnp.float32, 0.5, 1.5))
    return dict(w_up=w_up, s_up=s_up, b_up=b_up,
                w1=w1, s1=s1, b1=b1, w2=w2, s2=s2, b2=b2)


# ---------------------------------------------------------------------------
# pure-JAX reference (XLA convs, ORIGINAL op order) for correctness checking
# ---------------------------------------------------------------------------
def reference_forward(skip_nchw, x_nchw, params):
    dn = ("NHWC", "HWIO", "NHWC")
    f32 = jnp.float32
    skip = jnp.transpose(skip_nchw, (0, 2, 3, 1)).astype(f32)
    x = jnp.transpose(x_nchw, (0, 2, 3, 1)).astype(f32)

    xu = jax.vmap(_up2x_hwc)(x)                               # upsample FIRST (original order)
    w_up = params["w_up"].astype(f32)
    y = lax.conv_general_dilated(xu, w_up.reshape(1, 1, *w_up.shape), (1, 1), "VALID",
                                 dimension_numbers=dn, precision=lax.Precision.HIGHEST)
    y = jnp.maximum(y * params["s_up"].reshape(1, 1, 1, -1)
                    + params["b_up"].reshape(1, 1, 1, -1), 0.0)
    cat = jnp.concatenate([skip, y], axis=-1)

    def block(t, wk, sk, bk):
        z = lax.conv_general_dilated(t, params[wk].astype(f32), (1, 1), ((1, 1), (1, 1)),
                                     dimension_numbers=dn, precision=lax.Precision.HIGHEST)
        return jnp.maximum(z * params[sk].reshape(1, 1, 1, -1)
                           + params[bk].reshape(1, 1, 1, -1), 0.0)

    h1 = block(cat, "w1", "s1", "b1")
    h2 = block(h1, "w2", "s2", "b2")
    return jnp.transpose(h2, (0, 3, 1, 2))


if __name__ == "__main__":
    # UpConvBlock(in_channels=8, skip_channels=4, out_channels=4, num_convs=2)
    N, Cs, H, W = 2, 4, 16, 16
    Cin, Co = 8, 4
    key = jax.random.PRNGKey(0)
    k_skip, k_x, k_p = jax.random.split(key, 3)
    # activations stored in bf16; kernel and reference consume identical values
    skip = jax.random.normal(k_skip, (N, Cs, H, W), jnp.float32).astype(jnp.bfloat16)   # NCHW
    x = jax.random.normal(k_x, (N, Cin, H // 2, W // 2), jnp.float32).astype(jnp.bfloat16)
    params = init_params(k_p, Cin, Cs, Co)

    out = jax.block_until_ready(upconv_block_forward(skip, x, params, tile_h=8))
    assert out.shape == (N, Co, H, W)

    ref = jax.block_until_ready(reference_forward(skip, x, params))
    np.testing.assert_allclose(np.asarray(out, dtype=np.float32),
                               np.asarray(ref, dtype=np.float32),
                               atol=1e-3, rtol=1e-3)
    print("KERNEL_OK")
</pallas_src>

<mosaic_0001>
module attributes {stable_mosaic.version = 11 : i64} {
  func.func @kernel(%arg0: i32, %arg1: i32, %arg2: memref<1x1x12x18x4xbf16, #tpu.memory_space<vmem>>, %arg3: memref<1x1x8x8x8xbf16, #tpu.memory_space<vmem>>, %arg4: memref<8x4xbf16, #tpu.memory_space<vmem>>, %arg5: memref<1x4xf32, #tpu.memory_space<vmem>>, %arg6: memref<1x4xf32, #tpu.memory_space<vmem>>, %arg7: memref<36x4xbf16, #tpu.memory_space<vmem>>, %arg8: memref<36x4xbf16, #tpu.memory_space<vmem>>, %arg9: memref<1x4xf32, #tpu.memory_space<vmem>>, %arg10: memref<1x4xf32, #tpu.memory_space<vmem>>, %arg11: memref<36x4xbf16, #tpu.memory_space<vmem>>, %arg12: memref<1x4xf32, #tpu.memory_space<vmem>>, %arg13: memref<1x4xf32, #tpu.memory_space<vmem>>, %arg14: memref<1x1x128x4xf32, #tpu.memory_space<vmem>>, %arg15: memref<12x18x4xf32, #tpu.memory_space<vmem>>, %arg16: memref<10x18x4xf32, #tpu.memory_space<vmem>>) attributes {dimension_semantics = [#tpu.dimension_semantics<parallel>, #tpu.dimension_semantics<parallel>], iteration_bounds = array<i64: 2, 2>, scalar_prefetch = 0 : i64, scratch_operands = 2 : i64, tpu.core_type = #tpu.core_type<tc>, window_params = [{transform_indices = @transform_0, window_bounds = array<i64: 1, 1, 12, 18, 4>}, {transform_indices = @transform_1, window_bounds = array<i64: 1, 1, 8, 8, 8>}, {pipeline_mode = #tpu.pipeline_mode<synchronous>, transform_indices = @transform_2, window_bounds = array<i64: 8, 4>}, {pipeline_mode = #tpu.pipeline_mode<synchronous>, transform_indices = @transform_3, window_bounds = array<i64: 1, 4>}, {pipeline_mode = #tpu.pipeline_mode<synchronous>, transform_indices = @transform_4, window_bounds = array<i64: 1, 4>}, {pipeline_mode = #tpu.pipeline_mode<synchronous>, transform_indices = @transform_5, window_bounds = array<i64: 36, 4>}, {pipeline_mode = #tpu.pipeline_mode<synchronous>, transform_indices = @transform_6, window_bounds = array<i64: 36, 4>}, {pipeline_mode = #tpu.pipeline_mode<synchronous>, transform_indices = @transform_7, window_bounds = array<i64: 1, 4>}, {pipeline_mode = #tpu.pipeline_mode<synchronous>, transform_indices = @transform_8, window_bounds = array<i64: 1, 4>}, {pipeline_mode = #tpu.pipeline_mode<synchronous>, transform_indices = @transform_9, window_bounds = array<i64: 36, 4>}, {pipeline_mode = #tpu.pipeline_mode<synchronous>, transform_indices = @transform_10, window_bounds = array<i64: 1, 4>}, {pipeline_mode = #tpu.pipeline_mode<synchronous>, transform_indices = @transform_11, window_bounds = array<i64: 1, 4>}, {transform_indices = @transform_12, window_bounds = array<i64: 1, 1, 128, 4>}]} {
    %c0 = arith.constant 0 : index
    %c0_0 = arith.constant 0 : index
    %c0_1 = arith.constant 0 : index
    %c0_2 = arith.constant 0 : index
    %c0_3 = arith.constant 0 : index
    %0 = vector.load %arg3[%c0, %c0_0, %c0_1, %c0_2, %c0_3] : memref<1x1x8x8x8xbf16, #tpu.memory_space<vmem>>, vector<1x1x8x8x8xbf16>
    %1 = vector.shape_cast %0 : vector<1x1x8x8x8xbf16> to vector<8x8x8xbf16>
    %2 = vector.shape_cast %1 : vector<8x8x8xbf16> to vector<64x8xbf16>
    %c0_4 = arith.constant 0 : index
    %c0_5 = arith.constant 0 : index
    %3 = vector.load %arg4[%c0_4, %c0_5] : memref<8x4xbf16, #tpu.memory_space<vmem>>, vector<8x4xbf16>
    %cst = arith.constant dense<0.000000e+00> : vector<64x4xf32>
    %4 = tpu.matmul %2, %3, %cst {dimension_numbers = #tpu.dot_dimension_numbers<[1], [0], [0], [1], [0, 0, 1, 1], [], []>} : vector<64x8xbf16>, vector<8x4xbf16>, vector<64x4xf32> -> vector<64x4xf32>
    %c0_6 = arith.constant 0 : index
    %c0_7 = arith.constant 0 : index
    %5 = vector.load %arg5[%c0_6, %c0_7] : memref<1x4xf32, #tpu.memory_space<vmem>>, vector<1x4xf32>
    %6 = vector.broadcast %5 : vector<1x4xf32> to vector<64x4xf32>
    %7 = arith.mulf %4, %6 : vector<64x4xf32>
    %c0_8 = arith.constant 0 : index
    %c0_9 = arith.constant 0 : index
    %8 = vector.load %arg6[%c0_8, %c0_9] : memref<1x4xf32, #tpu.memory_space<vmem>>, vector<1x4xf32>
    %9 = vector.broadcast %8 : vector<1x4xf32> to vector<64x4xf32>
    %10 = arith.addf %7, %9 : vector<64x4xf32>
    %11 = vector.shape_cast %10 : vector<64x4xf32> to vector<8x8x4xf32>
    %12 = vector.extract_strided_slice %11 {offsets = [0, 0, 0], sizes = [1, 8, 4], strides = [1, 1, 1]} : vector<8x8x4xf32> to vector<1x8x4xf32>
    %13 = vector.extract_strided_slice %11 {offsets = [0, 0, 0], sizes = [7, 8, 4], strides = [1, 1, 1]} : vector<8x8x4xf32> to vector<7x8x4xf32>
    %14 = tpu.concatenate %12, %13 in 0 : vector<1x8x4xf32>, vector<7x8x4xf32> -> vector<8x8x4xf32>
    %15 = vector.extract_strided_slice %11 {offsets = [1, 0, 0], sizes = [7, 8, 4], strides = [1, 1, 1]} : vector<8x8x4xf32> to vector<7x8x4xf32>
    %16 = vector.extract_strided_slice %11 {offsets = [7, 0, 0], sizes = [1, 8, 4], strides = [1, 1, 1]} : vector<8x8x4xf32> to vector<1x8x4xf32>
    %17 = tpu.concatenate %15, %16 in 0 : vector<7x8x4xf32>, vector<1x8x4xf32> -> vector<8x8x4xf32>
    %cst_10 = arith.constant 2.500000e-01 : f32
    %18 = vector.broadcast %cst_10 : f32 to vector<8x8x4xf32>
    %19 = arith.mulf %18, %14 : vector<8x8x4xf32>
    %cst_11 = arith.constant 7.500000e-01 : f32
    %20 = vector.broadcast %cst_11 : f32 to vector<8x8x4xf32>
    %21 = arith.mulf %20, %11 : vector<8x8x4xf32>
    %22 = arith.addf %19, %21 : vector<8x8x4xf32>
    %cst_12 = arith.constant 7.500000e-01 : f32
    %23 = vector.broadcast %cst_12 : f32 to vector<8x8x4xf32>
    %24 = arith.mulf %23, %11 : vector<8x8x4xf32>
    %cst_13 = arith.constant 2.500000e-01 : f32
    %25 = vector.broadcast %cst_13 : f32 to vector<8x8x4xf32>
    %26 = arith.mulf %25, %17 : vector<8x8x4xf32>
    %27 = arith.addf %24, %26 : vector<8x8x4xf32>
    %28 = vector.shape_cast %22 : vector<8x8x4xf32> to vector<8x1x8x4xf32>
    %29 = vector.shape_cast %27 : vector<8x8x4xf32> to vector<8x1x8x4xf32>
    %30 = tpu.concatenate %28, %29 in 1 : vector<8x1x8x4xf32>, vector<8x1x8x4xf32> -> vector<8x2x8x4xf32>
    %31 = vector.shape_cast %30 : vector<8x2x8x4xf32> to vector<16x8x4xf32>
    %32 = vector.extract_strided_slice %31 {offsets = [0, 0, 0], sizes = [16, 1, 4], strides = [1, 1, 1]} : vector<16x8x4xf32> to vector<16x1x4xf32>
    %33 = vector.extract_strided_slice %31 {offsets = [0, 0, 0], sizes = [16, 7, 4], strides = [1, 1, 1]} : vector<16x8x4xf32> to vector<16x7x4xf32>
    %34 = tpu.concatenate %32, %33 in 1 : vector<16x1x4xf32>, vector<16x7x4xf32> -> vector<16x8x4xf32>
    %35 = vector.extract_strided_slice %31 {offsets = [0, 1, 0], sizes = [16, 7, 4], strides = [1, 1, 1]} : vector<16x8x4xf32> to vector<16x7x4xf32>
    %36 = vector.extract_strided_slice %31 {offsets = [0, 7, 0], sizes = [16, 1, 4], strides = [1, 1, 1]} : vector<16x8x4xf32> to vector<16x1x4xf32>
    %37 = tpu.concatenate %35, %36 in 1 : vector<16x7x4xf32>, vector<16x1x4xf32> -> vector<16x8x4xf32>
    %cst_14 = arith.constant 2.500000e-01 : f32
    %38 = vector.broadcast %cst_14 : f32 to vector<16x8x4xf32>
    %39 = arith.mulf %38, %34 : vector<16x8x4xf32>
    %cst_15 = arith.constant 7.500000e-01 : f32
    %40 = vector.broadcast %cst_15 : f32 to vector<16x8x4xf32>
    %41 = arith.mulf %40, %31 : vector<16x8x4xf32>
    %42 = arith.addf %39, %41 : vector<16x8x4xf32>
    %cst_16 = arith.constant 7.500000e-01 : f32
    %43 = vector.broadcast %cst_16 : f32 to vector<16x8x4xf32>
    %44 = arith.mulf %43, %31 : vector<16x8x4xf32>
    %cst_17 = arith.constant 2.500000e-01 : f32
    %45 = vector.broadcast %cst_17 : f32 to vector<16x8x4xf32>
    %46 = arith.mulf %45, %37 : vector<16x8x4xf32>
    %47 = arith.addf %44, %46 : vector<16x8x4xf32>
    %48 = vector.extract_strided_slice %42 {offsets = [0, 0, 0], sizes = [16, 1, 4], strides = [1, 1, 1]} : vector<16x8x4xf32> to vector<16x1x4xf32>
    %49 = vector.extract_strided_slice %47 {offsets = [0, 0, 0], sizes = [16, 1, 4], strides = [1, 1, 1]} : vector<16x8x4xf32> to vector<16x1x4xf32>
    %50 = vector.extract_strided_slice %42 {offsets = [0, 1, 0], sizes = [16, 1, 4], strides = [1, 1, 1]} : vector<16x8x4xf32> to vector<16x1x4xf32>
    %51 = vector.extract_strided_slice %47 {offsets = [0, 1, 0], sizes = [16, 1, 4], strides = [1, 1, 1]} : vector<16x8x4xf32> to vector<16x1x4xf32>
    %52 = vector.extract_strided_slice %42 {offsets = [0, 2, 0], sizes = [16, 1, 4], strides = [1, 1, 1]} : vector<16x8x4xf32> to vector<16x1x4xf32>
    %53 = vector.extract_strided_slice %47 {offsets = [0, 2, 0], sizes = [16, 1, 4], strides = [1, 1, 1]} : vector<16x8x4xf32> to vector<16x1x4xf32>
    %54 = vector.extract_strided_slice %42 {offsets = [0, 3, 0], sizes = [16, 1, 4], strides = [1, 1, 1]} : vector<16x8x4xf32> to vector<16x1x4xf32>
    %55 = vector.extract_strided_slice %47 {offsets = [0, 3, 0], sizes = [16, 1, 4], strides = [1, 1, 1]} : vector<16x8x4xf32> to vector<16x1x4xf32>
    %56 = vector.extract_strided_slice %42 {offsets = [0, 4, 0], sizes = [16, 1, 4], strides = [1, 1, 1]} : vector<16x8x4xf32> to vector<16x1x4xf32>
    %57 = vector.extract_strided_slice %47 {offsets = [0, 4, 0], sizes = [16, 1, 4], strides = [1, 1, 1]} : vector<16x8x4xf32> to vector<16x1x4xf32>
    %58 = vector.extract_strided_slice %42 {offsets = [0, 5, 0], sizes = [16, 1, 4], strides = [1, 1, 1]} : vector<16x8x4xf32> to vector<16x1x4xf32>
    %59 = vector.extract_strided_slice %47 {offsets = [0, 5, 0], sizes = [16, 1, 4], strides = [1, 1, 1]} : vector<16x8x4xf32> to vector<16x1x4xf32>
    %60 = vector.extract_strided_slice %42 {offsets = [0, 6, 0], sizes = [16, 1, 4], strides = [1, 1, 1]} : vector<16x8x4xf32> to vector<16x1x4xf32>
    %61 = vector.extract_strided_slice %47 {offsets = [0, 6, 0], sizes = [16, 1, 4], strides = [1, 1, 1]} : vector<16x8x4xf32> to vector<16x1x4xf32>
    %62 = vector.extract_strided_slice %42 {offsets = [0, 7, 0], sizes = [16, 1, 4], strides = [1, 1, 1]} : vector<16x8x4xf32> to vector<16x1x4xf32>
    %63 = vector.extract_strided_slice %47 {offsets = [0, 7, 0], sizes = [16, 1, 4], strides = [1, 1, 1]} : vector<16x8x4xf32> to vector<16x1x4xf32>
    %64 = tpu.concatenate %48, %49, %50, %51, %52, %53, %54, %55, %56, %57, %58, %59, %60, %61, %62, %63 in 1 : vector<16x1x4xf32>, vector<16x1x4xf32>, vector<16x1x4xf32>, vector<16x1x4xf32>, vector<16x1x4xf32>, vector<16x1x4xf32>, vector<16x1x4xf32>, vector<16x1x4xf32>, vector<16x1x4xf32>, vector<16x1x4xf32>, vector<16x1x4xf32>, vector<16x1x4xf32>, vector<16x1x4xf32>, vector<16x1x4xf32>, vector<16x1x4xf32>, vector<16x1x4xf32> -> vector<16x16x4xf32>
    %65 = vector.extract_strided_slice %64 {offsets = [2, 0, 0], sizes = [12, 16, 4], strides = [1, 1, 1]} : vector<16x16x4xf32> to vector<12x16x4xf32>
    %66 = tpu.iota {dimensions = array<i32: 0>} : vector<12x1x1xi32>
    %c8_i32 = arith.constant 8 : i32
    %67 = arith.muli %arg1, %c8_i32 : i32
    %c2_i32 = arith.constant 2 : i32
    %68 = arith.subi %67, %c2_i32 : i32
    %69 = vector.broadcast %68 : i32 to vector<12x1x1xi32>
    %70 = arith.addi %66, %69 : vector<12x1x1xi32>
    %c0_i32 = arith.constant 0 : i32
    %71 = vector.broadcast %c0_i32 : i32 to vector<12x1x1xi32>
    %72 = arith.cmpi sge, %70, %71 : vector<12x1x1xi32>
    %c16_i32 = arith.constant 16 : i32
    %73 = vector.broadcast %c16_i32 : i32 to vector<12x1x1xi32>
    %74 = arith.cmpi slt, %70, %73 : vector<12x1x1xi32>
    %75 = arith.andi %72, %74 : vector<12x1x1xi1>
    %cst_18 = arith.constant 0.000000e+00 : f32
    %76 = vector.broadcast %cst_18 : f32 to vector<12x16x4xf32>
    %77 = arith.maximumf %65, %76 : vector<12x16x4xf32>
    %cst_19 = arith.constant 0.000000e+00 : f32
    %78 = vector.shape_cast %75 : vector<12x1x1xi1> to vector<12x1x1xi1>
    %79 = vector.broadcast %78 : vector<12x1x1xi1> to vector<12x16x4xi1>
    %80 = vector.broadcast %cst_19 : f32 to vector<12x16x4xf32>
    %81 = arith.select %79, %77, %80 : vector<12x16x4xi1>, vector<12x16x4xf32>
    %cst_20 = arith.constant 0.000000e+00 : f32
    %82 = vector.broadcast %cst_20 : f32 to vector<12x1x4xf32>
    %c0_21 = arith.constant 0 : index
    %c0_22 = arith.constant 0 : index
    %c0_23 = arith.constant 0 : index
    %83 = vector.load %arg15[%c0_21, %c0_22, %c0_23] : memref<12x18x4xf32, #tpu.memory_space<vmem>>, vector<12x1x4xf32>
    tpu.vector_store %arg15[%c0_21, %c0_22, %c0_23], %82 {strides = array<i32>} : memref<12x18x4xf32, #tpu.memory_space<vmem>>, vector<12x1x4xf32>,
    %c0_24 = arith.constant 0 : index
    %c17 = arith.constant 17 : index
    %c0_25 = arith.constant 0 : index
    %84 = vector.load %arg15[%c0_24, %c17, %c0_25] : memref<12x18x4xf32, #tpu.memory_space<vmem>>, vector<12x1x4xf32>
    tpu.vector_store %arg15[%c0_24, %c17, %c0_25], %82 {strides = array<i32>} : memref<12x18x4xf32, #tpu.memory_space<vmem>>, vector<12x1x4xf32>,
    %c0_26 = arith.constant 0 : index
    %c1 = arith.constant 1 : index
    %c0_27 = arith.constant 0 : index
    %85 = vector.load %arg15[%c0_26, %c1, %c0_27] : memref<12x18x4xf32, #tpu.memory_space<vmem>>, vector<12x16x4xf32>
    tpu.vector_store %arg15[%c0_26, %c1, %c0_27], %81 {strides = array<i32>} : memref<12x18x4xf32, #tpu.memory_space<vmem>>, vector<12x16x4xf32>,
    %c0_28 = arith.constant 0 : index
    %c0_29 = arith.constant 0 : index
    %c0_30 = arith.constant 0 : index
    %c0_31 = arith.constant 0 : index
    %c0_32 = arith.constant 0 : index
    %86 = vector.load %arg2[%c0_28, %c0_29, %c0_30, %c0_31, %c0_32] : memref<1x1x12x18x4xbf16, #tpu.memory_space<vmem>>, vector<1x1x12x18x4xbf16>
    %87 = vector.shape_cast %86 : vector<1x1x12x18x4xbf16> to vector<12x18x4xbf16>
    %88 = vector.extract_strided_slice %87 {offsets = [0, 0, 0], sizes = [10, 16, 4], strides = [1, 1, 1]} : vector<12x18x4xbf16> to vector<10x16x4xbf16>
    %89 = vector.extract_strided_slice %87 {offsets = [0, 1, 0], sizes = [10, 16, 4], strides = [1, 1, 1]} : vector<12x18x4xbf16> to vector<10x16x4xbf16>
    %90 = vector.extract_strided_slice %87 {offsets = [0, 2, 0], sizes = [10, 16, 4], strides = [1, 1, 1]} : vector<12x18x4xbf16> to vector<10x16x4xbf16>
    %91 = vector.extract_strided_slice %87 {offsets = [1, 0, 0], sizes = [10, 16, 4], strides = [1, 1, 1]} : vector<12x18x4xbf16> to vector<10x16x4xbf16>
    %92 = vector.extract_strided_slice %87 {offsets = [1, 1, 0], sizes = [10, 16, 4], strides = [1, 1, 1]} : vector<12x18x4xbf16> to vector<10x16x4xbf16>
    %93 = vector.extract_strided_slice %87 {offsets = [1, 2, 0], sizes = [10, 16, 4], strides = [1, 1, 1]} : vector<12x18x4xbf16> to vector<10x16x4xbf16>
    %94 = vector.extract_strided_slice %87 {offsets = [2, 0, 0], sizes = [10, 16, 4], strides = [1, 1, 1]} : vector<12x18x4xbf16> to vector<10x16x4xbf16>
    %95 = vector.extract_strided_slice %87 {offsets = [2, 1, 0], sizes = [10, 16, 4], strides = [1, 1, 1]} : vector<12x18x4xbf16> to vector<10x16x4xbf16>
    %96 = vector.extract_strided_slice %87 {offsets = [2, 2, 0], sizes = [10, 16, 4], strides = [1, 1, 1]} : vector<12x18x4xbf16> to vector<10x16x4xbf16>
    %97 = tpu.concatenate %88, %89, %90, %91, %92, %93, %94, %95, %96 in 2 : vector<10x16x4xbf16>, vector<10x16x4xbf16>, vector<10x16x4xbf16>, vector<10x16x4xbf16>, vector<10x16x4xbf16>, vector<10x16x4xbf16>, vector<10x16x4xbf16>, vector<10x16x4xbf16>, vector<10x16x4xbf16> -> vector<10x16x36xbf16>
    %98 = vector.shape_cast %97 : vector<10x16x36xbf16> to vector<160x36xbf16>
    %c0_33 = arith.constant 0 : index
    %c0_34 = arith.constant 0 : index
    %c0_35 = arith.constant 0 : index
    %99 = vector.load %arg15[%c0_33, %c0_34, %c0_35] : memref<12x18x4xf32, #tpu.memory_space<vmem>>, vector<12x18x4xf32>
    %100 = vector.extract_strided_slice %99 {offsets = [0, 0, 0], sizes = [10, 16, 4], strides = [1, 1, 1]} : vector<12x18x4xf32> to vector<10x16x4xf32>
    %101 = vector.extract_strided_slice %99 {offsets = [0, 1, 0], sizes = [10, 16, 4], strides = [1, 1, 1]} : vector<12x18x4xf32> to vector<10x16x4xf32>
    %102 = vector.extract_strided_slice %99 {offsets = [0, 2, 0], sizes = [10, 16, 4], strides = [1, 1, 1]} : vector<12x18x4xf32> to vector<10x16x4xf32>
    %103 = vector.extract_strided_slice %99 {offsets = [1, 0, 0], sizes = [10, 16, 4], strides = [1, 1, 1]} : vector<12x18x4xf32> to vector<10x16x4xf32>
    %104 = vector.extract_strided_slice %99 {offsets = [1, 1, 0], sizes = [10, 16, 4], strides = [1, 1, 1]} : vector<12x18x4xf32> to vector<10x16x4xf32>
    %105 = vector.extract_strided_slice %99 {offsets = [1, 2, 0], sizes = [10, 16, 4], strides = [1, 1, 1]} : vector<12x18x4xf32> to vector<10x16x4xf32>
    %106 = vector.extract_strided_slice %99 {offsets = [2, 0, 0], sizes = [10, 16, 4], strides = [1, 1, 1]} : vector<12x18x4xf32> to vector<10x16x4xf32>
    %107 = vector.extract_strided_slice %99 {offsets = [2, 1, 0], sizes = [10, 16, 4], strides = [1, 1, 1]} : vector<12x18x4xf32> to vector<10x16x4xf32>
    %108 = vector.extract_strided_slice %99 {offsets = [2, 2, 0], sizes = [10, 16, 4], strides = [1, 1, 1]} : vector<12x18x4xf32> to vector<10x16x4xf32>
    %109 = tpu.concatenate %100, %101, %102, %103, %104, %105, %106, %107, %108 in 2 : vector<10x16x4xf32>, vector<10x16x4xf32>, vector<10x16x4xf32>, vector<10x16x4xf32>, vector<10x16x4xf32>, vector<10x16x4xf32>, vector<10x16x4xf32>, vector<10x16x4xf32>, vector<10x16x4xf32> -> vector<10x16x36xf32>
    %110 = vector.shape_cast %109 : vector<10x16x36xf32> to vector<160x36xf32>
    %c0_36 = arith.constant 0 : index
    %c0_37 = arith.constant 0 : index
    %111 = vector.load %arg7[%c0_36, %c0_37] : memref<36x4xbf16, #tpu.memory_space<vmem>>, vector<36x4xbf16>
    %cst_38 = arith.constant dense<0.000000e+00> : vector<160x4xf32>
    %112 = tpu.matmul %98, %111, %cst_38 {dimension_numbers = #tpu.dot_dimension_numbers<[1], [0], [0], [1], [0, 0, 1, 1], [], []>} : vector<160x36xbf16>, vector<36x4xbf16>, vector<160x4xf32> -> vector<160x4xf32>
    %c0_39 = arith.constant 0 : index
    %c0_40 = arith.constant 0 : index
    %113 = vector.load %arg8[%c0_39, %c0_40] : memref<36x4xbf16, #tpu.memory_space<vmem>>, vector<36x4xbf16>
    %114 = arith.extf %113 : vector<36x4xbf16> to vector<36x4xf32>
    %cst_41 = arith.constant dense<0.000000e+00> : vector<160x4xf32>
    %115 = tpu.matmul %110, %114, %cst_41 {dimension_numbers = #tpu.dot_dimension_numbers<[1], [0], [0], [1], [0, 0, 1, 1], [], []>} : vector<160x36xf32>, vector<36x4xf32>, vector<160x4xf32> -> vector<160x4xf32>
    %116 = arith.addf %112, %115 : vector<160x4xf32>
    %c0_42 = arith.constant 0 : index
    %c0_43 = arith.constant 0 : index
    %117 = vector.load %arg9[%c0_42, %c0_43] : memref<1x4xf32, #tpu.memory_space<vmem>>, vector<1x4xf32>
    %118 = vector.broadcast %117 : vector<1x4xf32> to vector<160x4xf32>
    %119 = arith.mulf %116, %118 : vector<160x4xf32>
    %c0_44 = arith.constant 0 : index
    %c0_45 = arith.constant 0 : index
    %120 = vector.load %arg10[%c0_44, %c0_45] : memref<1x4xf32, #tpu.memory_space<vmem>>, vector<1x4xf32>
    %121 = vector.broadcast %120 : vector<1x4xf32> to vector<160x4xf32>
    %122 = arith.addf %119, %121 : vector<160x4xf32>
    %cst_46 = arith.constant 0.000000e+00 : f32
    %123 = vector.broadcast %cst_46 : f32 to vector<160x4xf32>
    %124 = arith.maximumf %122, %123 : vector<160x4xf32>
    %125 = vector.shape_cast %124 : vector<160x4xf32> to vector<10x16x4xf32>
    %126 = tpu.iota {dimensions = array<i32: 0>} : vector<10x1x1xi32>
    %c8_i32_47 = arith.constant 8 : i32
    %127 = arith.muli %arg1, %c8_i32_47 : i32
    %c1_i32 = arith.constant 1 : i32
    %128 = arith.subi %127, %c1_i32 : i32
    %129 = vector.broadcast %128 : i32 to vector<10x1x1xi32>
    %130 = arith.addi %126, %129 : vector<10x1x1xi32>
    %c0_i32_48 = arith.constant 0 : i32
    %131 = vector.broadcast %c0_i32_48 : i32 to vector<10x1x1xi32>
    %132 = arith.cmpi sge, %130, %131 : vector<10x1x1xi32>
    %c16_i32_49 = arith.constant 16 : i32
    %133 = vector.broadcast %c16_i32_49 : i32 to vector<10x1x1xi32>
    %134 = arith.cmpi slt, %130, %133 : vector<10x1x1xi32>
    %135 = arith.andi %132, %134 : vector<10x1x1xi1>
    %cst_50 = arith.constant 0.000000e+00 : f32
    %136 = vector.shape_cast %135 : vector<10x1x1xi1> to vector<10x1x1xi1>
    %137 = vector.broadcast %136 : vector<10x1x1xi1> to vector<10x16x4xi1>
    %138 = vector.broadcast %cst_50 : f32 to vector<10x16x4xf32>
    %139 = arith.select %137, %125, %138 : vector<10x16x4xi1>, vector<10x16x4xf32>
    %cst_51 = arith.constant 0.000000e+00 : f32
    %140 = vector.broadcast %cst_51 : f32 to vector<10x1x4xf32>
    %c0_52 = arith.constant 0 : index
    %c0_53 = arith.constant 0 : index
    %c0_54 = arith.constant 0 : index
    %141 = vector.load %arg16[%c0_52, %c0_53, %c0_54] : memref<10x18x4xf32, #tpu.memory_space<vmem>>, vector<10x1x4xf32>
    tpu.vector_store %arg16[%c0_52, %c0_53, %c0_54], %140 {strides = array<i32>} : memref<10x18x4xf32, #tpu.memory_space<vmem>>, vector<10x1x4xf32>,
    %c0_55 = arith.constant 0 : index
    %c17_56 = arith.constant 17 : index
    %c0_57 = arith.constant 0 : index
    %142 = vector.load %arg16[%c0_55, %c17_56, %c0_57] : memref<10x18x4xf32, #tpu.memory_space<vmem>>, vector<10x1x4xf32>
    tpu.vector_store %arg16[%c0_55, %c17_56, %c0_57], %140 {strides = array<i32>} : memref<10x18x4xf32, #tpu.memory_space<vmem>>, vector<10x1x4xf32>,
    %c0_58 = arith.constant 0 : index
    %c1_59 = arith.constant 1 : index
    %c0_60 = arith.constant 0 : index
    %143 = vector.load %arg16[%c0_58, %c1_59, %c0_60] : memref<10x18x4xf32, #tpu.memory_space<vmem>>, vector<10x16x4xf32>
    tpu.vector_store %arg16[%c0_58, %c1_59, %c0_60], %139 {strides = array<i32>} : memref<10x18x4xf32, #tpu.memory_space<vmem>>, vector<10x16x4xf32>,
    %c0_61 = arith.constant 0 : index
    %c0_62 = arith.constant 0 : index
    %c0_63 = arith.constant 0 : index
    %144 = vector.load %arg16[%c0_61, %c0_62, %c0_63] : memref<10x18x4xf32, #tpu.memory_space<vmem>>, vector<10x18x4xf32>
    %145 = vector.extract_strided_slice %144 {offsets = [0, 0, 0], sizes = [8, 16, 4], strides = [1, 1, 1]} : vector<10x18x4xf32> to vector<8x16x4xf32>
    %146 = vector.extract_strided_slice %144 {offsets = [0, 1, 0], sizes = [8, 16, 4], strides = [1, 1, 1]} : vector<10x18x4xf32> to vector<8x16x4xf32>
    %147 = vector.extract_strided_slice %144 {offsets = [0, 2, 0], sizes = [8, 16, 4], strides = [1, 1, 1]} : vector<10x18x4xf32> to vector<8x16x4xf32>
    %148 = vector.extract_strided_slice %144 {offsets = [1, 0, 0], sizes = [8, 16, 4], strides = [1, 1, 1]} : vector<10x18x4xf32> to vector<8x16x4xf32>
    %149 = vector.extract_strided_slice %144 {offsets = [1, 1, 0], sizes = [8, 16, 4], strides = [1, 1, 1]} : vector<10x18x4xf32> to vector<8x16x4xf32>
    %150 = vector.extract_strided_slice %144 {offsets = [1, 2, 0], sizes = [8, 16, 4], strides = [1, 1, 1]} : vector<10x18x4xf32> to vector<8x16x4xf32>
    %151 = vector.extract_strided_slice %144 {offsets = [2, 0, 0], sizes = [8, 16, 4], strides = [1, 1, 1]} : vector<10x18x4xf32> to vector<8x16x4xf32>
    %152 = vector.extract_strided_slice %144 {offsets = [2, 1, 0], sizes = [8, 16, 4], strides = [1, 1, 1]} : vector<10x18x4xf32> to vector<8x16x4xf32>
    %153 = vector.extract_strided_slice %144 {offsets = [2, 2, 0], sizes = [8, 16, 4], strides = [1, 1, 1]} : vector<10x18x4xf32> to vector<8x16x4xf32>
    %154 = tpu.concatenate %145, %146, %147, %148, %149, %150, %151, %152, %153 in 2 : vector<8x16x4xf32>, vector<8x16x4xf32>, vector<8x16x4xf32>, vector<8x16x4xf32>, vector<8x16x4xf32>, vector<8x16x4xf32>, vector<8x16x4xf32>, vector<8x16x4xf32>, vector<8x16x4xf32> -> vector<8x16x36xf32>
    %155 = vector.shape_cast %154 : vector<8x16x36xf32> to vector<128x36xf32>
    %c0_64 = arith.constant 0 : index
    %c0_65 = arith.constant 0 : index
    %156 = vector.load %arg11[%c0_64, %c0_65] : memref<36x4xbf16, #tpu.memory_space<vmem>>, vector<36x4xbf16>
    %157 = arith.extf %156 : vector<36x4xbf16> to vector<36x4xf32>
    %cst_66 = arith.constant dense<0.000000e+00> : vector<128x4xf32>
    %158 = tpu.matmul %155, %157, %cst_66 {dimension_numbers = #tpu.dot_dimension_numbers<[1], [0], [0], [1], [0, 0, 1, 1], [], []>} : vector<128x36xf32>, vector<36x4xf32>, vector<128x4xf32> -> vector<128x4xf32>
    %c0_67 = arith.constant 0 : index
    %c0_68 = arith.constant 0 : index
    %159 = vector.load %arg12[%c0_67, %c0_68] : memref<1x4xf32, #tpu.memory_space<vmem>>, vector<1x4xf32>
    %160 = vector.broadcast %159 : vector<1x4xf32> to vector<128x4xf32>
    %161 = arith.mulf %158, %160 : vector<128x4xf32>
    %c0_69 = arith.constant 0 : index
    %c0_70 = arith.constant 0 : index
    %162 = vector.load %arg13[%c0_69, %c0_70] : memref<1x4xf32, #tpu.memory_space<vmem>>, vector<1x4xf32>
    %163 = vector.broadcast %162 : vector<1x4xf32> to vector<128x4xf32>
    %164 = arith.addf %161, %163 : vector<128x4xf32>
    %cst_71 = arith.constant 0.000000e+00 : f32
    %165 = vector.broadcast %cst_71 : f32 to vector<128x4xf32>
    %166 = arith.maximumf %164, %165 : vector<128x4xf32>
    %c0_72 = arith.constant 0 : index
    %c0_73 = arith.constant 0 : index
    %c0_74 = arith.constant 0 : index
    %c0_75 = arith.constant 0 : index
    %167 = vector.load %arg14[%c0_72, %c0_73, %c0_74, %c0_75] : memref<1x1x128x4xf32, #tpu.memory_space<vmem>>, vector<1x1x128x4xf32>
    %168 = vector.shape_cast %167 : vector<1x1x128x4xf32> to vector<128x4xf32>
    %169 = vector.shape_cast %166 : vector<128x4xf32> to vector<1x1x128x4xf32>
    tpu.vector_store %arg14[%c0_72, %c0_73, %c0_74, %c0_75], %169 {strides = array<i32>} : memref<1x1x128x4xf32, #tpu.memory_space<vmem>>, vector<1x1x128x4xf32>,
    return
  }
  func.func @transform_0(%arg0: i32, %arg1: i32) -> (i32, i32, i32, i32, i32) {
    %c0_i32 = arith.constant 0 : i32
    %c0_i32_0 = arith.constant 0 : i32
    %c0_i32_1 = arith.constant 0 : i32
    %c0_i32_2 = arith.constant 0 : i32
    return %arg0, %arg1, %c0_i32, %c0_i32_0, %c0_i32_1 : i32, i32, i32, i32, i32
  }
  func.func @transform_1(%arg0: i32, %arg1: i32) -> (i32, i32, i32, i32, i32) {
    %c0_i32 = arith.constant 0 : i32
    %c0_i32_0 = arith.constant 0 : i32
    %c0_i32_1 = arith.constant 0 : i32
    %c0_i32_2 = arith.constant 0 : i32
    return %arg0, %arg1, %c0_i32, %c0_i32_0, %c0_i32_1 : i32, i32, i32, i32, i32
  }
  func.func @transform_2(%arg0: i32, %arg1: i32) -> (i32, i32) {
    %c0_i32 = arith.constant 0 : i32
    %c0_i32_0 = arith.constant 0 : i32
    %c0_i32_1 = arith.constant 0 : i32
    return %c0_i32, %c0_i32_0 : i32, i32
  }
  func.func @transform_3(%arg0: i32, %arg1: i32) -> (i32, i32) {
    %c0_i32 = arith.constant 0 : i32
    %c0_i32_0 = arith.constant 0 : i32
    %c0_i32_1 = arith.constant 0 : i32
    return %c0_i32, %c0_i32_0 : i32, i32
  }
  func.func @transform_4(%arg0: i32, %arg1: i32) -> (i32, i32) {
    %c0_i32 = arith.constant 0 : i32
    %c0_i32_0 = arith.constant 0 : i32
    %c0_i32_1 = arith.constant 0 : i32
    return %c0_i32, %c0_i32_0 : i32, i32
  }
  func.func @transform_5(%arg0: i32, %arg1: i32) -> (i32, i32) {
    %c0_i32 = arith.constant 0 : i32
    %c0_i32_0 = arith.constant 0 : i32
    %c0_i32_1 = arith.constant 0 : i32
    return %c0_i32, %c0_i32_0 : i32, i32
  }
  func.func @transform_6(%arg0: i32, %arg1: i32) -> (i32, i32) {
    %c0_i32 = arith.constant 0 : i32
    %c0_i32_0 = arith.constant 0 : i32
    %c0_i32_1 = arith.constant 0 : i32
    return %c0_i32, %c0_i32_0 : i32, i32
  }
  func.func @transform_7(%arg0: i32, %arg1: i32) -> (i32, i32) {
    %c0_i32 = arith.constant 0 : i32
    %c0_i32_0 = arith.constant 0 : i32
    %c0_i32_1 = arith.constant 0 : i32
    return %c0_i32, %c0_i32_0 : i32, i32
  }
  func.func @transform_8(%arg0: i32, %arg1: i32) -> (i32, i32) {
    %c0_i32 = arith.constant 0 : i32
    %c0_i32_0 = arith.constant 0 : i32
    %c0_i32_1 = arith.constant 0 : i32
    return %c0_i32, %c0_i32_0 : i32, i32
  }
  func.func @transform_9(%arg0: i32, %arg1: i32) -> (i32, i32) {
    %c0_i32 = arith.constant 0 : i32
    %c0_i32_0 = arith.constant 0 : i32
    %c0_i32_1 = arith.constant 0 : i32
    return %c0_i32, %c0_i32_0 : i32, i32
  }
  func.func @transform_10(%arg0: i32, %arg1: i32) -> (i32, i32) {
    %c0_i32 = arith.constant 0 : i32
    %c0_i32_0 = arith.constant 0 : i32
    %c0_i32_1 = arith.constant 0 : i32
    return %c0_i32, %c0_i32_0 : i32, i32
  }
  func.func @transform_11(%arg0: i32, %arg1: i32) -> (i32, i32) {
    %c0_i32 = arith.constant 0 : i32
    %c0_i32_0 = arith.constant 0 : i32
    %c0_i32_1 = arith.constant 0 : i32
    return %c0_i32, %c0_i32_0 : i32, i32
  }
  func.func @transform_12(%arg0: i32, %arg1: i32) -> (i32, i32, i32, i32) {
    %c0_i32 = arith.constant 0 : i32
    %c0_i32_0 = arith.constant 0 : i32
    %c0_i32_1 = arith.constant 0 : i32
    return %arg0, %arg1, %c0_i32, %c0_i32_0 : i32, i32, i32, i32
  }
}

</mosaic_0001>

<llo_original>
// kernel: upconv_block_forward.1
$region0: #{upconv_block_forward.1}
  #allocation0 [shape = 'u32[]', space=smem, size = 0x4, offset = 0x4, fixed_abs, tag = 'smem constant byte address 0x4 - core index']
  #allocation1 [shape = 'u32[144,128]{1,0:T(1,128)}', space=vmem, size = 0x12000, scoped, tag = 'internal scratch']
  #allocation2 [shape = 'f32[12,18,4]{2,1,0:T(8,128)}', space=vmem, size = 0x24000, scoped, tag = 'scratch operand']
  #allocation3 [shape = 'f32[10,18,4]{2,1,0:T(8,128)}', space=vmem, size = 0x1e000, scoped, tag = 'scratch operand']
  %s0 = inlined_call_operand.vmem [shape: bf16[2,2,12,18,4], index: 0, kind: input, shape index: {}]
  %s1 = inlined_call_operand.vmem [shape: bf16[2,2,8,8,8], index: 1, kind: input, shape index: {}]
  %s2 = inlined_call_operand.vmem [shape: bf16[8,4], index: 2, kind: input, shape index: {}]
  %s3 = inlined_call_operand.vmem [shape: f32[1,4], index: 3, kind: input, shape index: {}]
  %s4 = inlined_call_operand.vmem [shape: f32[1,4], index: 4, kind: input, shape index: {}]
  %s5 = inlined_call_operand.vmem [shape: bf16[36,4], index: 5, kind: input, shape index: {}]
  %s6 = inlined_call_operand.vmem [shape: bf16[36,4], index: 6, kind: input, shape index: {}]
  %s7 = inlined_call_operand.vmem [shape: f32[1,4], index: 7, kind: input, shape index: {}]
  %s8 = inlined_call_operand.vmem [shape: f32[1,4], index: 8, kind: input, shape index: {}]
  %s9 = inlined_call_operand.vmem [shape: bf16[36,4], index: 9, kind: input, shape index: {}]
  %s10 = inlined_call_operand.vmem [shape: f32[1,4], index: 10, kind: input, shape index: {}]
  %s11 = inlined_call_operand.vmem [shape: f32[1,4], index: 11, kind: input, shape index: {}]
  %s12 = inlined_call_operand.vmem [shape: f32[2,2,128,4], index: 12, kind: output, shape index: {}]
  %s13 = sld [smem:[#allocation0]]
  $region81: #{upconv_block_forward.1} parent=0
    _
  %s15 = ssub.s32 1, %s13
  %s16 = scalar_select 0, %s15, %s13
  loop: start=0, step=1, limit=6
  $region2: #{upconv_block_forward.1} parent=0 // loop_pre_header
    _
  $region3: #{upconv_block_forward.1} parent=0 // loop_header
    %s18 = sphi 0, %s22
    %p19 = scmp.ge.s32.totalorder %s18, 6
    %s25 = sphi 0, %s37
    %s26 = sphi 0, %s33
    %s27 = sphi 0, %s25
    %s28 = sphi 0, %s26
    %s29 = sphi 0, %s27
    %s30 = sphi 0, %s28
    %s42 = sphi 0, %s44
    %s45 = sphi 0, %s42
    %s46 = sphi 0, %s45
    %s62 = sphi 0, %s46
    %s70 = sphi 0, %s72
    %s73 = sphi 0, %s70
    %s74 = sphi 0, %s73
    %s90 = sphi 0, %s74
    %s94 = sphi 0, %s94
    %s96 = sphi 0, %s94
    %s97 = sphi 0, %s96
    %s111 = sphi 0, %s97
    %s115 = sphi 0, %s115
    %s117 = sphi 0, %s115
    %s118 = sphi 0, %s117
    %s132 = sphi 0, %s118
    %s136 = sphi 0, %s136
    %s138 = sphi 0, %s136
    %s139 = sphi 0, %s138
    %s153 = sphi 0, %s139
    %s157 = sphi 0, %s157
    %s159 = sphi 0, %s157
    %s160 = sphi 0, %s159
    %s174 = sphi 0, %s160
    %s178 = sphi 0, %s178
    %s180 = sphi 0, %s178
    %s181 = sphi 0, %s180
    %s195 = sphi 0, %s181
    %s199 = sphi 0, %s199
    %s201 = sphi 0, %s199
    %s202 = sphi 0, %s201
    %s216 = sphi 0, %s202
    %s220 = sphi 0, %s220
    %s222 = sphi 0, %s220
    %s223 = sphi 0, %s222
    %s237 = sphi 0, %s223
    %s241 = sphi 0, %s241
    %s243 = sphi 0, %s241
    %s244 = sphi 0, %s243
    %s258 = sphi 0, %s244
    %s262 = sphi 0, %s262
    %s264 = sphi 0, %s262
    %s265 = sphi 0, %s264
    %s279 = sphi 0, %s265
    %s283 = sphi 0, %s283
    %s285 = sphi 0, %s283
    %s286 = sphi 0, %s285
    %s300 = sphi 0, %s286
    %s308 = sphi 0, %s310
    %s311 = sphi 0, %s308
    %s312 = sphi 0, %s311
    %s328 = sphi 0, %s312
  $region4: #{upconv_block_forward.1} parent=0 // loop_header_branch
    %21 = sbr.rel (%p19) target = $region8
  $region5: #{upconv_block_forward.1} parent=0 // loop_body
    %s23 = ssub.s32 %s18, 1
    %s24 = ssub.s32 %s18, 2
    %s31 = sadd.s32 1, %s26
    %p32 = scmp.ge.s32.totalorder %s31, 2
    %s33 = scalar_select %p32, 0, %s31
    %s34 = sadd.s32 1, %s25
    %s35 = scalar_select %p32, %s34, %s25
    %p36 = scmp.ge.s32.totalorder %s35, 2
    %s37 = scalar_select %p36, 0, %s35
    %s38 = ssub.s32 %s25, %s37
    %s39 = ssub.s32 %s26, %s33
    %s40 = sor.u32 %s38, %s39
    %p41 = scmp.eq.s32.totalorder %s40, 0
    %s43 = sadd.s32 %s42, 1
    %s44 = scalar_select %p41, %s42, %s43
    %p47 = pneg %p41
    %p48 = scmp.eq.s32.totalorder %s18, 3
    %p49 = por %p47, %p48
    %p50 = scmp.ne.s32.totalorder %s42, %s45
    %p51 = scmp.eq.s32.totalorder %s18, 0
    %p52 = por %p50, %p51
    %p53 = scmp.ne.s32.totalorder %s42, %s45
    %p54 = scmp.eq.s32.totalorder %s23, 3
    %p55 = por %p53, %p54
    %p56 = scmp.ne.s32.totalorder %s45, %s46
    %p57 = scmp.eq.s32.totalorder %s23, 0
    %p58 = por %p56, %p57
    %p59 = scmp.ne.s32.totalorder %s45, %s46
    %p60 = scmp.eq.s32.totalorder %s24, 3
    %p61 = por %p59, %p60
    %p63 = scmp.ne.s32.totalorder %s46, %s62
    %p64 = scmp.eq.s32.totalorder %s24, 0
    %p65 = por %p63, %p64
    %s66 = ssub.s32 %s25, %s37
    %s67 = ssub.s32 %s26, %s33
    %s68 = sor.u32 %s66, %s67
    %p69 = scmp.eq.s32.totalorder %s68, 0
    %s71 = sadd.s32 %s70, 1
    %s72 = scalar_select %p69, %s70, %s71
    %p75 = pneg %p69
    %p76 = scmp.eq.s32.totalorder %s18, 3
    %p77 = por %p75, %p76
    %p78 = scmp.ne.s32.totalorder %s70, %s73
    %p79 = scmp.eq.s32.totalorder %s18, 0
    %p80 = por %p78, %p79
    %p81 = scmp.ne.s32.totalorder %s70, %s73
    %p82 = scmp.eq.s32.totalorder %s23, 3
    %p83 = por %p81, %p82
    %p84 = scmp.ne.s32.totalorder %s73, %s74
    %p85 = scmp.eq.s32.totalorder %s23, 0
    %p86 = por %p84, %p85
    %p87 = scmp.ne.s32.totalorder %s73, %s74
    %p88 = scmp.eq.s32.totalorder %s24, 3
    %p89 = por %p87, %p88
    %p91 = scmp.ne.s32.totalorder %s74, %s90
    %p92 = scmp.eq.s32.totalorder %s24, 0
    %p93 = por %p91, %p92
    %s95 = sadd.s32 %s94, 1
    %p98 = scmp.eq.s32.totalorder %s18, 3
    %p99 = scmp.ne.s32.totalorder %s94, %s96
    %p100 = scmp.eq.s32.totalorder %s18, 0
    %p101 = por %p99, %p100
    %p102 = scmp.ne.s32.totalorder %s94, %s96
    %p103 = scmp.eq.s32.totalorder %s23, 3
    %p104 = por %p102, %p103
    %p105 = scmp.ne.s32.totalorder %s96, %s97
    %p106 = scmp.eq.s32.totalorder %s23, 0
    %p107 = por %p105, %p106
    %p108 = scmp.ne.s32.totalorder %s96, %s97
    %p109 = scmp.eq.s32.totalorder %s24, 3
    %p110 = por %p108, %p109
    %p112 = scmp.ne.s32.totalorder %s97, %s111
    %p113 = scmp.eq.s32.totalorder %s24, 0
    %p114 = por %p112, %p113
    %s116 = sadd.s32 %s115, 1
    %p119 = scmp.eq.s32.totalorder %s18, 3
    %p120 = scmp.ne.s32.totalorder %s115, %s117
    %p121 = scmp.eq.s32.totalorder %s18, 0
    %p122 = por %p120, %p121
    %p123 = scmp.ne.s32.totalorder %s115, %s117
    %p124 = scmp.eq.s32.totalorder %s23, 3
    %p125 = por %p123, %p124
    %p126 = scmp.ne.s32.totalorder %s117, %s118
    %p127 = scmp.eq.s32.totalorder %s23, 0
    %p128 = por %p126, %p127
    %p129 = scmp.ne.s32.totalorder %s117, %s118
    %p130 = scmp.eq.s32.totalorder %s24, 3
    %p131 = por %p129, %p130
    %p133 = scmp.ne.s32.totalorder %s118, %s132
    %p134 = scmp.eq.s32.totalorder %s24, 0
    %p135 = por %p133, %p134
    %s137 = sadd.s32 %s136, 1
    %p140 = scmp.eq.s32.totalorder %s18, 3
    %p141 = scmp.ne.s32.totalorder %s136, %s138
    %p142 = scmp.eq.s32.totalorder %s18, 0
    %p143 = por %p141, %p142
    %p144 = scmp.ne.s32.totalorder %s136, %s138
    %p145 = scmp.eq.s32.totalorder %s23, 3
    %p146 = por %p144, %p145
    %p147 = scmp.ne.s32.totalorder %s138, %s139
    %p148 = scmp.eq.s32.totalorder %s23, 0
    %p149 = por %p147, %p148
    %p150 = scmp.ne.s32.totalorder %s138, %s139
    %p151 = scmp.eq.s32.totalorder %s24, 3
    %p152 = por %p150, %p151
    %p154 = scmp.ne.s32.totalorder %s139, %s153
    %p155 = scmp.eq.s32.totalorder %s24, 0
    %p156 = por %p154, %p155
    %s158 = sadd.s32 %s157, 1
    %p161 = scmp.eq.s32.totalorder %s18, 3
    %p162 = scmp.ne.s32.totalorder %s157, %s159
    %p163 = scmp.eq.s32.totalorder %s18, 0
    %p164 = por %p162, %p163
    %p165 = scmp.ne.s32.totalorder %s157, %s159
    %p166 = scmp.eq.s32.totalorder %s23, 3
    %p167 = por %p165, %p166
    %p168 = scmp.ne.s32.totalorder %s159, %s160
    %p169 = scmp.eq.s32.totalorder %s23, 0
    %p170 = por %p168, %p169
    %p171 = scmp.ne.s32.totalorder %s159, %s160
    %p172 = scmp.eq.s32.totalorder %s24, 3
    %p173 = por %p171, %p172
    %p175 = scmp.ne.s32.totalorder %s160, %s174
    %p176 = scmp.eq.s32.totalorder %s24, 0
    %p177 = por %p175, %p176
    %s179 = sadd.s32 %s178, 1
    %p182 = scmp.eq.s32.totalorder %s18, 3
    %p183 = scmp.ne.s32.totalorder %s178, %s180
    %p184 = scmp.eq.s32.totalorder %s18, 0
    %p185 = por %p183, %p184
    %p186 = scmp.ne.s32.totalorder %s178, %s180
    %p187 = scmp.eq.s32.totalorder %s23, 3
    %p188 = por %p186, %p187
    %p189 = scmp.ne.s32.totalorder %s180, %s181
    %p190 = scmp.eq.s32.totalorder %s23, 0
    %p191 = por %p189, %p190
    %p192 = scmp.ne.s32.totalorder %s180, %s181
    %p193 = scmp.eq.s32.totalorder %s24, 3
    %p194 = por %p192, %p193
    %p196 = scmp.ne.s32.totalorder %s181, %s195
    %p197 = scmp.eq.s32.totalorder %s24, 0
    %p198 = por %p196, %p197
    %s200 = sadd.s32 %s199, 1
    %p203 = scmp.eq.s32.totalorder %s18, 3
    %p204 = scmp.ne.s32.totalorder %s199, %s201
    %p205 = scmp.eq.s32.totalorder %s18, 0
    %p206 = por %p204, %p205
    %p207 = scmp.ne.s32.totalorder %s199, %s201
    %p208 = scmp.eq.s32.totalorder %s23, 3
    %p209 = por %p207, %p208
    %p210 = scmp.ne.s32.totalorder %s201, %s202
    %p211 = scmp.eq.s32.totalorder %s23, 0
    %p212 = por %p210, %p211
    %p213 = scmp.ne.s32.totalorder %s201, %s202
    %p214 = scmp.eq.s32.totalorder %s24, 3
    %p215 = por %p213, %p214
    %p217 = scmp.ne.s32.totalorder %s202, %s216
    %p218 = scmp.eq.s32.totalorder %s24, 0
    %p219 = por %p217, %p218
    %s221 = sadd.s32 %s220, 1
    %p224 = scmp.eq.s32.totalorder %s18, 3
    %p225 = scmp.ne.s32.totalorder %s220, %s222
    %p226 = scmp.eq.s32.totalorder %s18, 0
    %p227 = por %p225, %p226
    %p228 = scmp.ne.s32.totalorder %s220, %s222
    %p229 = scmp.eq.s32.totalorder %s23, 3
    %p230 = por %p228, %p229
    %p231 = scmp.ne.s32.totalorder %s222, %s223
    %p232 = scmp.eq.s32.totalorder %s23, 0
    %p233 = por %p231, %p232
    %p234 = scmp.ne.s32.totalorder %s222, %s223
    %p235 = scmp.eq.s32.totalorder %s24, 3
    %p236 = por %p234, %p235
    %p238 = scmp.ne.s32.totalorder %s223, %s237
    %p239 = scmp.eq.s32.totalorder %s24, 0
    %p240 = por %p238, %p239
    %s242 = sadd.s32 %s241, 1
    %p245 = scmp.eq.s32.totalorder %s18, 3
    %p246 = scmp.ne.s32.totalorder %s241, %s243
    %p247 = scmp.eq.s32.totalorder %s18, 0
    %p248 = por %p246, %p247
    %p249 = scmp.ne.s32.totalorder %s241, %s243
    %p250 = scmp.eq.s32.totalorder %s23, 3
    %p251 = por %p249, %p250
    %p252 = scmp.ne.s32.totalorder %s243, %s244
    %p253 = scmp.eq.s32.totalorder %s23, 0
    %p254 = por %p252, %p253
    %p255 = scmp.ne.s32.totalorder %s243, %s244
    %p256 = scmp.eq.s32.totalorder %s24, 3
    %p257 = por %p255, %p256
    %p259 = scmp.ne.s32.totalorder %s244, %s258
    %p260 = scmp.eq.s32.totalorder %s24, 0
    %p261 = por %p259, %p260
    %s263 = sadd.s32 %s262, 1
    %p266 = scmp.eq.s32.totalorder %s18, 3
    %p267 = scmp.ne.s32.totalorder %s262, %s264
    %p268 = scmp.eq.s32.totalorder %s18, 0
    %p269 = por %p267, %p268
    %p270 = scmp.ne.s32.totalorder %s262, %s264
    %p271 = scmp.eq.s32.totalorder %s23, 3
    %p272 = por %p270, %p271
    %p273 = scmp.ne.s32.totalorder %s264, %s265
    %p274 = scmp.eq.s32.totalorder %s23, 0
    %p275 = por %p273, %p274
    %p276 = scmp.ne.s32.totalorder %s264, %s265
    %p277 = scmp.eq.s32.totalorder %s24, 3
    %p278 = por %p276, %p277
    %p280 = scmp.ne.s32.totalorder %s265, %s279
    %p281 = scmp.eq.s32.totalorder %s24, 0
    %p282 = por %p280, %p281
    %s284 = sadd.s32 %s283, 1
    %p287 = scmp.eq.s32.totalorder %s18, 3
    %p288 = scmp.ne.s32.totalorder %s283, %s285
    %p289 = scmp.eq.s32.totalorder %s18, 0
    %p290 = por %p288, %p289
    %p291 = scmp.ne.s32.totalorder %s283, %s285
    %p292 = scmp.eq.s32.totalorder %s23, 3
    %p293 = por %p291, %p292
    %p294 = scmp.ne.s32.totalorder %s285, %s286
    %p295 = scmp.eq.s32.totalorder %s23, 0
    %p296 = por %p294, %p295
    %p297 = scmp.ne.s32.totalorder %s285, %s286
    %p298 = scmp.eq.s32.totalorder %s24, 3
    %p299 = por %p297, %p298
    %p301 = scmp.ne.s32.totalorder %s286, %s300
    %p302 = scmp.eq.s32.totalorder %s24, 0
    %p303 = por %p301, %p302
    %s304 = ssub.s32 %s25, %s37
    %s305 = ssub.s32 %s26, %s33
    %s306 = sor.u32 %s304, %s305
    %p307 = scmp.eq.s32.totalorder %s306, 0
    %s309 = sadd.s32 %s308, 1
    %s310 = scalar_select %p307, %s308, %s309
    %p313 = pneg %p307
    %p314 = scmp.eq.s32.totalorder %s18, 3
    %p315 = por %p313, %p314
    %p316 = scmp.ne.s32.totalorder %s308, %s311
    %p317 = scmp.eq.s32.totalorder %s18, 0
    %p318 = por %p316, %p317
    %p319 = scmp.ne.s32.totalorder %s308, %s311
    %p320 = scmp.eq.s32.totalorder %s23, 3
    %p321 = por %p319, %p320
    %p322 = scmp.ne.s32.totalorder %s311, %s312
    %p323 = scmp.eq.s32.totalorder %s23, 0
    %p324 = por %p322, %p323
    %p325 = scmp.ne.s32.totalorder %s311, %s312
    %p326 = scmp.eq.s32.totalorder %s24, 3
    %p327 = por %p325, %p326
    %p329 = scmp.ne.s32.totalorder %s312, %s328
    %p330 = scmp.eq.s32.totalorder %s24, 0
    %p331 = por %p329, %p330
    %p332 = scmp.le.s32.totalorder 1, %s18
    %p333 = scmp.lt.s32.totalorder %s18, 5
    %p334 = pnand %p332, %p333
    %p335 = pneg %p334
    // Predicated region
    $region9: #{upconv_block_forward.1} parent=5 // pred_check
      _
    $region10: #{upconv_block_forward.1} parent=5 // pred_check_branch
      %337 = sbr.rel (%p334) target = $region12
    $region11: #{upconv_block_forward.1} parent=5 // pred_region
      %s338 = ssub.s32 %s18, 1
      // Predicated region
      $region13: #{upconv_block_forward.1} parent=11 // pred_check
        %p339 = pneg %p107
      $region14: #{upconv_block_forward.1} parent=11 // pred_check_branch
        %341 = sbr.rel (%p339) target = $region16
      $region15: #{upconv_block_forward.1} parent=11 // pred_region
        _
      $region16: #{upconv_block_forward.1} parent=11 // pred_fallthru
        _
      // Predicated region
      $region17: #{upconv_block_forward.1} parent=11 // pred_check
        %p342 = pneg %p128
      $region18: #{upconv_block_forward.1} parent=11 // pred_check_branch
        %344 = sbr.rel (%p342) target = $region20
      $region19: #{upconv_block_forward.1} parent=11 // pred_region
        _
      $region20: #{upconv_block_forward.1} parent=11 // pred_fallthru
        _
      // Predicated region
      $region21: #{upconv_block_forward.1} parent=11 // pred_check
        %p345 = pneg %p149
      $region22: #{upconv_block_forward.1} parent=11 // pred_check_branch
        %347 = sbr.rel (%p345) target = $region24
      $region23: #{upconv_block_forward.1} parent=11 // pred_region
        _
      $region24: #{upconv_block_forward.1} parent=11 // pred_fallthru
        _
      // Predicated region
      $region25: #{upconv_block_forward.1} parent=11 // pred_check
        %p348 = pneg %p170
      $region26: #{upconv_block_forward.1} parent=11 // pred_check_branch
        %350 = sbr.rel (%p348) target = $region28
      $region27: #{upconv_block_forward.1} parent=11 // pred_region
        _
      $region28: #{upconv_block_forward.1} parent=11 // pred_fallthru
        _
      // Predicated region
      $region29: #{upconv_block_forward.1} parent=11 // pred_check
        %p351 = pneg %p191
      $region30: #{upconv_block_forward.1} parent=11 // pred_check_branch
        %353 = sbr.rel (%p351) target = $region32
      $region31: #{upconv_block_forward.1} parent=11 // pred_region
        _
      $region32: #{upconv_block_forward.1} parent=11 // pred_fallthru
        _
      // Predicated region
      $region33: #{upconv_block_forward.1} parent=11 // pred_check
        %p354 = pneg %p212
      $region34: #{upconv_block_forward.1} parent=11 // pred_check_branch
        %356 = sbr.rel (%p354) target = $region36
      $region35: #{upconv_block_forward.1} parent=11 // pred_region
        _
      $region36: #{upconv_block_forward.1} parent=11 // pred_fallthru
        _
      // Predicated region
      $region37: #{upconv_block_forward.1} parent=11 // pred_check
        %p357 = pneg %p233
      $region38: #{upconv_block_forward.1} parent=11 // pred_check_branch
        %359 = sbr.rel (%p357) target = $region40
      $region39: #{upconv_block_forward.1} parent=11 // pred_region
        _
      $region40: #{upconv_block_forward.1} parent=11 // pred_fallthru
        _
      // Predicated region
      $region41: #{upconv_block_forward.1} parent=11 // pred_check
        %p360 = pneg %p254
      $region42: #{upconv_block_forward.1} parent=11 // pred_check_branch
        %362 = sbr.rel (%p360) target = $region44
      $region43: #{upconv_block_forward.1} parent=11 // pred_region
        _
      $region44: #{upconv_block_forward.1} parent=11 // pred_fallthru
        _
      // Predicated region
      $region45: #{upconv_block_forward.1} parent=11 // pred_check
        %p363 = pneg %p275
      $region46: #{upconv_block_forward.1} parent=11 // pred_check_branch
        %365 = sbr.rel (%p363) target = $region48
      $region47: #{upconv_block_forward.1} parent=11 // pred_region
        _
      $region48: #{upconv_block_forward.1} parent=11 // pred_fallthru
        _
      // Predicated region
      $region49: #{upconv_block_forward.1} parent=11 // pred_check
        %p366 = pneg %p296
      $region50: #{upconv_block_forward.1} parent=11 // pred_check_branch
        %368 = sbr.rel (%p366) target = $region52
      $region51: #{upconv_block_forward.1} parent=11 // pred_region
        _
      $region52: #{upconv_block_forward.1} parent=11 // pred_fallthru
        _
    $region12: #{upconv_block_forward.1} parent=5 // pred_fallthru
      _
    %p369 = scmp.lt.s32.totalorder %s18, 4
    // Predicated region
    $region53: #{upconv_block_forward.1} parent=5 // pred_check
      %p370 = pneg %p369
    $region54: #{upconv_block_forward.1} parent=5 // pred_check_branch
      %372 = sbr.rel (%p370) target = $region56
    $region55: #{upconv_block_forward.1} parent=5 // pred_region
      // Predicated region
      $region57: #{upconv_block_forward.1} parent=55 // pred_check
        %p373 = pneg %p52
      $region58: #{upconv_block_forward.1} parent=55 // pred_check_branch
        %375 = sbr.rel (%p373) target = $region60
      $region59: #{upconv_block_forward.1} parent=55 // pred_region
        %p376 = scmp.lt.s32.totalorder %s25, 1
        %s377 = scalar_select %p376, %s25, 1
        %p378 = scmp.lt.s32.totalorder %s26, 1
        %s379 = scalar_select %p378, %s26, 1
        %s380 = smul.addr %s379, 36
        %s381 = smul.addr %s377, 72
        %s382 = sadd.s32 %s380, %s381
        %s383 = smul.addr %s382, 4
        %s384 = scalar_lea.vmem %s0, %s383
      $region60: #{upconv_block_forward.1} parent=55 // pred_fallthru
        _
      // Predicated region
      $region61: #{upconv_block_forward.1} parent=55 // pred_check
        %p385 = pneg %p80
      $region62: #{upconv_block_forward.1} parent=55 // pred_check_branch
        %387 = sbr.rel (%p385) target = $region64
      $region63: #{upconv_block_forward.1} parent=55 // pred_region
        %p388 = scmp.lt.s32.totalorder %s25, 1
        %s389 = scalar_select %p388, %s25, 1
        %p390 = scmp.lt.s32.totalorder %s26, 1
        %s391 = scalar_select %p390, %s26, 1
        %s392 = smul.addr %s391, 8
        %s393 = smul.addr %s389, 16
        %s394 = sadd.s32 %s392, %s393
        %s395 = smul.addr %s394, 4
        %s396 = scalar_lea.vmem %s1, %s395
      $region64: #{upconv_block_forward.1} parent=55 // pred_fallthru
        _
    $region56: #{upconv_block_forward.1} parent=5 // pred_fallthru
      _
    %p397 = scmp.le.s32.totalorder 1, %s18
    %p398 = scmp.lt.s32.totalorder %s18, 5
    %p399 = pnand %p397, %p398
    %p400 = pneg %p399
    // Predicated region
    $region65: #{upconv_block_forward.1} parent=5 // pred_check
      _
    $region66: #{upconv_block_forward.1} parent=5 // pred_check_branch
      %402 = sbr.rel (%p399) target = $region68
    $region67: #{upconv_block_forward.1} parent=5 // pred_region
      %s403 = ssub.s32 %s18, 1
      %p404 = scmp.lt.s32.totalorder %s27, 1
      %s405 = scalar_select %p404, %s27, 1
      %p406 = scmp.lt.s32.totalorder %s28, 1
      %s407 = scalar_select %p406, %s28, 1
      %s408 = smul.addr %s407, 36
      %s409 = smul.addr %s405, 72
      %s410 = sadd.s32 %s408, %s409
      %s411 = smul.addr %s410, 4
      %s412 = scalar_lea.vmem %s0, %s411
      %p413 = pneg %p58
      %p414 = pneg %p55
      %p415 = scmp.lt.s32.totalorder %s27, 1
      %s416 = scalar_select %p415, %s27, 1
      %p417 = scmp.lt.s32.totalorder %s28, 1
      %s418 = scalar_select %p417, %s28, 1
      %s419 = smul.addr %s418, 8
      %s420 = smul.addr %s416, 16
      %s421 = sadd.s32 %s419, %s420
      %s422 = smul.addr %s421, 4
      %s423 = scalar_lea.vmem %s1, %s422
      %p424 = pneg %p86
      %p425 = pneg %p83
      %p426 = pneg %p107
      %p427 = pneg %p104
      %p428 = pneg %p128
      %p429 = pneg %p125
      %p430 = pneg %p149
      %p431 = pneg %p146
      %p432 = pneg %p170
      %p433 = pneg %p167
      %p434 = pneg %p191
      %p435 = pneg %p188
      %p436 = pneg %p212
      %p437 = pneg %p209
      %p438 = pneg %p233
      %p439 = pneg %p230
      %p440 = pneg %p254
      %p441 = pneg %p251
      %p442 = pneg %p275
      %p443 = pneg %p272
      %p444 = pneg %p296
      %p445 = pneg %p293
      %p446 = pneg %p324
      %p447 = pneg %p321
      %p448 = scmp.lt.s32.totalorder %s27, 1
      %s449 = scalar_select %p448, %s27, 1
      %p450 = scmp.lt.s32.totalorder %s28, 1
      %s451 = scalar_select %p450, %s28, 1
      %s452 = smul.addr %s451, 16
      %s453 = smul.addr %s449, 32
      %s454 = sadd.s32 %s452, %s453
      %s455 = smul.addr %s454, 8
      %s456 = scalar_lea.vmem %s12, %s455
      %p457 = scmp.lt.s32.totalorder %s27, 1
      %s458 = scalar_select %p457, %s27, 1
      %p459 = scmp.lt.s32.totalorder %s28, 1
      %s460 = scalar_select %p459, %s28, 1
      %s461 = smul.addr %s460, 36
      %s462 = smul.addr %s458, 72
      %s463 = sadd.s32 %s461, %s462
      %s464 = smul.addr %s463, 4
      %s465 = scalar_lea.vmem %s0, %s464
      %p466 = scmp.lt.s32.totalorder %s27, 1
      %s467 = scalar_select %p466, %s27, 1
      %p468 = scmp.lt.s32.totalorder %s28, 1
      %s469 = scalar_select %p468, %s28, 1
      %s470 = smul.addr %s469, 8
      %s471 = smul.addr %s467, 16
      %s472 = sadd.s32 %s470, %s471
      %s473 = smul.addr %s472, 4
      %s474 = scalar_lea.vmem %s1, %s473
      %p475 = scmp.lt.s32.totalorder %s27, 1
      %s476 = scalar_select %p475, %s27, 1
      %p477 = scmp.lt.s32.totalorder %s28, 1
      %s478 = scalar_select %p477, %s28, 1
      %s479 = smul.addr %s478, 16
      %s480 = smul.addr %s476, 32
      %s481 = sadd.s32 %s479, %s480
      %s482 = smul.addr %s481, 8
      %s483 = scalar_lea.vmem %s12, %s482
      %v485 = vld [vmem:[%s474] sm:$0xf]
      %v486 = vld [vmem:[%s474 + $0x4] sm:$0xf]
      %v487 = vld [vmem:[%s474 + $0x8] sm:$0xf]
      %v488 = vld [vmem:[%s474 + $0xc] sm:$0xf]
      %v489 = vld [vmem:[%s474 + $0x10] sm:$0xf]
      %v490 = vld [vmem:[%s474 + $0x14] sm:$0xf]
      %v491 = vld [vmem:[%s474 + $0x18] sm:$0xf]
      %v492 = vld [vmem:[%s474 + $0x1c] sm:$0xf]
      %v493 = vld [vmem:[%s2] sm:$0xf]
      %v502 = vunpack.c.l.b16 %v485
      %v503 = vunpack.c.l.b16 %v486
      %v504 = vunpack.c.l.b16 %v487
      %v505 = vunpack.c.l.b16 %v488
      %v506 = vunpack.c.l.b16 %v489
      %v507 = vunpack.c.l.b16 %v490
      %v508 = vunpack.c.l.b16 %v491
      %v509 = vunpack.c.l.b16 %v492
      %v510 = vpack.c.b16 %v503, %v502
      %v511 = vpack.c.b16 %v505, %v504
      %v512 = vpack.c.b16 %v507, %v506
      %v513 = vpack.c.b16 %v509, %v508
      %vm514 = vcmask 64512
      %v516 = vsel %vm514, %v510, 0
      %v519 = vsel %vm514, %v511, 0
      %v522 = vsel %vm514, %v512, 0
      %v525 = vsel %vm514, %v513, 0
      %vm527 = vcmask 1043456
      %v529 = vsel %vm527, %v493, 0
      %531 = vmatprep.subr.bf16.mxu0 0
      %532 = vmatpush1.bf16.msra.mxu0 0
      %533 = vmatprep.subr.bf16.mxu0 0
      %534 = vmatpush1.bf16.msra.mxu0 0
      %535 = vmatprep.subr.bf16.mxu0 0
      %536 = vmatpush1.bf16.msra.mxu0 0
      %537 = vmatprep.subr.bf16.mxu0 0
      %538 = vmatpush1.bf16.msra.mxu0 0
      %539 = vmatprep.subr.bf16.mxu0 0
      %540 = vmatpush1.bf16.msra.mxu0 0
      %541 = vmatprep.subr.bf16.mxu0 0
      %542 = vmatpush1.bf16.msra.mxu0 0
      %543 = vmatprep.subr.bf16.mxu0 0
      %544 = vmatpush1.bf16.msra.mxu0 0
      %545 = vmatprep.subr.bf16.mxu0 0
      %546 = vmatpush1.bf16.msra.mxu0 %v529
      %547 = vmatprep.subr.bf16.mxu0 0
      %548 = vmatpush2.bf16.msra.mxu0 0
      %549 = vmatprep.subr.bf16.mxu0 0
      %550 = vmatpush2.bf16.msra.mxu0 0
      %551 = vmatprep.subr.bf16.mxu0 0
      %552 = vmatpush2.bf16.msra.mxu0 0
      %553 = vmatprep.subr.bf16.mxu0 0
      %554 = vmatpush2.bf16.msra.mxu0 0
      %555 = vmatprep.subr.bf16.mxu0 0
      %556 = vmatpush2.bf16.msra.mxu0 0
      %557 = vmatprep.subr.bf16.mxu0 0
      %558 = vmatpush2.bf16.msra.mxu0 0
      %559 = vmatprep.subr.bf16.mxu0 0
      %560 = vmatpush2.bf16.msra.mxu0 0
      %561 = vmatprep.subr.bf16.mxu0 0
      %562 = vmatpush2.bf16.msra.mxu0 0
      %563 = vmatprep.mubr.bf16.mxu0 0
      %564 = vmatmul.mubr.bf16.gmra.mxu0 %v516
      %v565 = vpop.f32.mrf.mxu0
      %v566 = vadd.f32 0.0, %v565
      %v567 = vpop.f32.mrf.mxu0
      %v568 = vpop.f32.mrf.mxu0
      %v569 = vadd.f32 0.0, %v568
      %v570 = vpop.f32.mrf.mxu0
      %571 = vmatprep.mubr.bf16.mxu0 0
      %572 = vmatmul.mubr.bf16.gmra.mxu0 %v519
      %v573 = vpop.f32.mrf.mxu0
      %v574 = vadd.f32 0.0, %v573
      %v575 = vpop.f32.mrf.mxu0
      %v576 = vpop.f32.mrf.mxu0
      %v577 = vadd.f32 0.0, %v576
      %v578 = vpop.f32.mrf.mxu0
      %579 = vmatprep.mubr.bf16.mxu0 0
      %580 = vmatmul.mubr.bf16.gmra.mxu0 %v522
      %v581 = vpop.f32.mrf.mxu0
      %v582 = vadd.f32 0.0, %v581
      %v583 = vpop.f32.mrf.mxu0
      %v584 = vpop.f32.mrf.mxu0
      %v585 = vadd.f32 0.0, %v584
      %v586 = vpop.f32.mrf.mxu0
      %587 = vmatprep.mubr.bf16.mxu0 0
      %588 = vmatmul.mubr.bf16.gmra.mxu0 %v525
      %v589 = vpop.f32.mrf.mxu0
      %v590 = vadd.f32 0.0, %v589
      %v591 = vpop.f32.mrf.mxu0
      %v592 = vpop.f32.mrf.mxu0
      %v593 = vadd.f32 0.0, %v592
      %v594 = vpop.f32.mrf.mxu0
      %595 = vdwg.mxu0
      %v596 = vld [vmem:[%s3] sm:$0x1]
      %v598 = vlaneseq
      %v599 = vshrl.u32 %v598, 7
      %v600 = vsub.s32 0, %v599
      %v601 = vrot.slane %v596, %v600
      %v603 = vmul.f32 %v566, %v601
      %v604 = vmul.f32 %v569, %v601
      %v605 = vmul.f32 %v574, %v601
      %v606 = vmul.f32 %v577, %v601
      %v607 = vmul.f32 %v582, %v601
      %v608 = vmul.f32 %v585, %v601
      %v609 = vmul.f32 %v590, %v601
      %v610 = vmul.f32 %v593, %v601
      %v611 = vld [vmem:[%s4] sm:$0x1]
      %v613 = vlaneseq
      %v614 = vshrl.u32 %v613, 7
      %v615 = vsub.s32 0, %v614
      %v616 = vrot.slane %v611, %v615
      %v618 = vadd.f32 %v603, %v616
      %v619 = vadd.f32 %v604, %v616
      %v620 = vadd.f32 %v605, %v616
      %v621 = vadd.f32 %v606, %v616
      %v622 = vadd.f32 %v607, %v616
      %v623 = vadd.f32 %v608, %v616
      %v624 = vadd.f32 %v609, %v616
      %v625 = vadd.f32 %v610, %v616
      %v626 = vmul.f32 %v618, 0.25
      %v627 = vmul.f32 %v619, 0.25
      %v628 = vmul.f32 %v620, 0.25
      %v629 = vmul.f32 %v621, 0.25
      %v630 = vmul.f32 %v622, 0.25
      %v631 = vmul.f32 %v623, 0.25
      %v632 = vmul.f32 %v619, 0.75
      %v633 = vmul.f32 %v620, 0.75
      %v634 = vmul.f32 %v621, 0.75
      %v635 = vmul.f32 %v622, 0.75
      %v636 = vmul.f32 %v623, 0.75
      %v637 = vmul.f32 %v624, 0.75
      %v638 = vadd.f32 %v626, %v632
      %v639 = vadd.f32 %v627, %v633
      %v640 = vadd.f32 %v628, %v634
      %v641 = vadd.f32 %v629, %v635
      %v642 = vadd.f32 %v630, %v636
      %v643 = vadd.f32 %v631, %v637
      %v644 = vmul.f32 %v624, 0.25
      %v645 = vmul.f32 %v625, 0.25
      %v646 = vadd.f32 %v632, %v628
      %v647 = vadd.f32 %v633, %v629
      %v648 = vadd.f32 %v634, %v630
      %v649 = vadd.f32 %v635, %v631
      %v650 = vadd.f32 %v636, %v644
      %v651 = vadd.f32 %v637, %v645
      %v664 = vrot.slane %v638, 7
      %v665 = vrot.slane %v646, 7
      %v666 = vrot.slane %v639, 7
      %v667 = vrot.slane %v647, 7
      %v668 = vrot.slane %v640, 7
      %v669 = vrot.slane %v648, 7
      %v670 = vrot.slane %v641, 7
      %v671 = vrot.slane %v649, 7
      %v672 = vrot.slane %v642, 7
      %v673 = vrot.slane %v650, 7
      %v674 = vrot.slane %v643, 7
      %v675 = vrot.slane %v651, 7
      %vm688 = vcmask 1040384
      %v689 = vsel %vm688, %v638, %v664
      %v690 = vsel %vm688, %v646, %v665
      %v691 = vsel %vm688, %v639, %v666
      %v692 = vsel %vm688, %v647, %v667
      %v693 = vsel %vm688, %v640, %v668
      %v694 = vsel %vm688, %v648, %v669
      %v695 = vsel %vm688, %v641, %v670
      %v696 = vsel %vm688, %v649, %v671
      %v697 = vsel %vm688, %v642, %v672
      %v698 = vsel %vm688, %v650, %v673
      %v699 = vsel %vm688, %v643, %v674
      %v700 = vsel %vm688, %v651, %v675
      %v701 = vrot.slane %v638, 1
      %v702 = vrot.slane %v646, 1
      %v703 = vrot.slane %v639, 1
      %v704 = vrot.slane %v647, 1
      %v705 = vrot.slane %v640, 1
      %v706 = vrot.slane %v648, 1
      %v707 = vrot.slane %v641, 1
      %v708 = vrot.slane %v649, 1
      %v709 = vrot.slane %v642, 1
      %v710 = vrot.slane %v650, 1
      %v711 = vrot.slane %v643, 1
      %v712 = vrot.slane %v651, 1
      %vm725 = vcmask 1046528
      %v726 = vsel %vm725, %v701, %v638
      %v727 = vsel %vm725, %v702, %v646
      %v728 = vsel %vm725, %v703, %v639
      %v729 = vsel %vm725, %v704, %v647
      %v730 = vsel %vm725, %v705, %v640
      %v731 = vsel %vm725, %v706, %v648
      %v732 = vsel %vm725, %v707, %v641
      %v733 = vsel %vm725, %v708, %v649
      %v734 = vsel %vm725, %v709, %v642
      %v735 = vsel %vm725, %v710, %v650
      %v736 = vsel %vm725, %v711, %v643
      %v737 = vsel %vm725, %v712, %v651
      %v738 = vmul.f32 %v689, 0.25
      %v739 = vmul.f32 %v690, 0.25
      %v740 = vmul.f32 %v691, 0.25
      %v741 = vmul.f32 %v692, 0.25
      %v742 = vmul.f32 %v693, 0.25
      %v743 = vmul.f32 %v694, 0.25
      %v744 = vmul.f32 %v695, 0.25
      %v745 = vmul.f32 %v696, 0.25
      %v746 = vmul.f32 %v697, 0.25
      %v747 = vmul.f32 %v698, 0.25
      %v748 = vmul.f32 %v699, 0.25
      %v749 = vmul.f32 %v700, 0.25
      %v750 = vmul.f32 %v638, 0.75
      %v751 = vmul.f32 %v646, 0.75
      %v752 = vmul.f32 %v639, 0.75
      %v753 = vmul.f32 %v647, 0.75
      %v754 = vmul.f32 %v640, 0.75
      %v755 = vmul.f32 %v648, 0.75
      %v756 = vmul.f32 %v641, 0.75
      %v757 = vmul.f32 %v649, 0.75
      %v758 = vmul.f32 %v642, 0.75
      %v759 = vmul.f32 %v650, 0.75
      %v760 = vmul.f32 %v643, 0.75
      %v761 = vmul.f32 %v651, 0.75
      %v762 = vadd.f32 %v738, %v750
      %v763 = vadd.f32 %v739, %v751
      %v764 = vadd.f32 %v740, %v752
      %v765 = vadd.f32 %v741, %v753
      %v766 = vadd.f32 %v742, %v754
      %v767 = vadd.f32 %v743, %v755
      %v768 = vadd.f32 %v744, %v756
      %v769 = vadd.f32 %v745, %v757
      %v770 = vadd.f32 %v746, %v758
      %v771 = vadd.f32 %v747, %v759
      %v772 = vadd.f32 %v748, %v760
      %v773 = vadd.f32 %v749, %v761
      %v774 = vmul.f32 %v726, 0.25
      %v775 = vmul.f32 %v727, 0.25
      %v776 = vmul.f32 %v728, 0.25
      %v777 = vmul.f32 %v729, 0.25
      %v778 = vmul.f32 %v730, 0.25
      %v779 = vmul.f32 %v731, 0.25
      %v780 = vmul.f32 %v732, 0.25
      %v781 = vmul.f32 %v733, 0.25
      %v782 = vmul.f32 %v734, 0.25
      %v783 = vmul.f32 %v735, 0.25
      %v784 = vmul.f32 %v736, 0.25
      %v785 = vmul.f32 %v737, 0.25
      %v786 = vadd.f32 %v750, %v774
      %v787 = vadd.f32 %v751, %v775
      %v788 = vadd.f32 %v752, %v776
      %v789 = vadd.f32 %v753, %v777
      %v790 = vadd.f32 %v754, %v778
      %v791 = vadd.f32 %v755, %v779
      %v792 = vadd.f32 %v756, %v780
      %v793 = vadd.f32 %v757, %v781
      %v794 = vadd.f32 %v758, %v782
      %v795 = vadd.f32 %v759, %v783
      %v796 = vadd.f32 %v760, %v784
      %v797 = vadd.f32 %v761, %v785
      %v810 = vrot.slane %v786, 7
      %v811 = vrot.slane %v787, 7
      %v812 = vrot.slane %v788, 7
      %v813 = vrot.slane %v789, 7
      %v814 = vrot.slane %v790, 7
      %v815 = vrot.slane %v791, 7
      %v816 = vrot.slane %v792, 7
      %v817 = vrot.slane %v793, 7
      %v818 = vrot.slane %v794, 7
      %v819 = vrot.slane %v795, 7
      %v820 = vrot.slane %v796, 7
      %v821 = vrot.slane %v797, 7
      %v846 = vrot.slane %v762, 7
      %v847 = vrot.slane %v763, 7
      %v848 = vrot.slane %v764, 7
      %v849 = vrot.slane %v765, 7
      %v850 = vrot.slane %v766, 7
      %v851 = vrot.slane %v767, 7
      %v852 = vrot.slane %v768, 7
      %v853 = vrot.slane %v769, 7
      %v854 = vrot.slane %v770, 7
      %v855 = vrot.slane %v771, 7
      %v856 = vrot.slane %v772, 7
      %v857 = vrot.slane %v773, 7
      %v870 = vrot.slane %v786, 6
      %v871 = vrot.slane %v787, 6
      %v872 = vrot.slane %v788, 6
      %v873 = vrot.slane %v789, 6
      %v874 = vrot.slane %v790, 6
      %v875 = vrot.slane %v791, 6
      %v876 = vrot.slane %v792, 6
      %v877 = vrot.slane %v793, 6
      %v878 = vrot.slane %v794, 6
      %v879 = vrot.slane %v795, 6
      %v880 = vrot.slane %v796, 6
      %v881 = vrot.slane %v797, 6
      %v894 = vrot.slane %v762, 6
      %v895 = vrot.slane %v763, 6
      %v896 = vrot.slane %v764, 6
      %v897 = vrot.slane %v765, 6
      %v898 = vrot.slane %v766, 6
      %v899 = vrot.slane %v767, 6
      %v900 = vrot.slane %v768, 6
      %v901 = vrot.slane %v769, 6
      %v902 = vrot.slane %v770, 6
      %v903 = vrot.slane %v771, 6
      %v904 = vrot.slane %v772, 6
      %v905 = vrot.slane %v773, 6
      %v918 = vrot.slane %v786, 5
      %v919 = vrot.slane %v787, 5
      %v920 = vrot.slane %v788, 5
      %v921 = vrot.slane %v789, 5
      %v922 = vrot.slane %v790, 5
      %v923 = vrot.slane %v791, 5
      %v924 = vrot.slane %v792, 5
      %v925 = vrot.slane %v793, 5
      %v926 = vrot.slane %v794, 5
      %v927 = vrot.slane %v795, 5
      %v928 = vrot.slane %v796, 5
      %v929 = vrot.slane %v797, 5
      %v942 = vrot.slane %v762, 5
      %v943 = vrot.slane %v763, 5
      %v944 = vrot.slane %v764, 5
      %v945 = vrot.slane %v765, 5
      %v946 = vrot.slane %v766, 5
      %v947 = vrot.slane %v767, 5
      %v948 = vrot.slane %v768, 5
      %v949 = vrot.slane %v769, 5
      %v950 = vrot.slane %v770, 5
      %v951 = vrot.slane %v771, 5
      %v952 = vrot.slane %v772, 5
      %v953 = vrot.slane %v773, 5
      %v966 = vrot.slane %v786, 4
      %v967 = vrot.slane %v787, 4
      %v968 = vrot.slane %v788, 4
      %v969 = vrot.slane %v789, 4
      %v970 = vrot.slane %v790, 4
      %v971 = vrot.slane %v791, 4
      %v972 = vrot.slane %v792, 4
      %v973 = vrot.slane %v793, 4
      %v974 = vrot.slane %v794, 4
      %v975 = vrot.slane %v795, 4
      %v976 = vrot.slane %v796, 4
      %v977 = vrot.slane %v797, 4
      %v990 = vrot.slane %v762, 4
      %v991 = vrot.slane %v763, 4
      %v992 = vrot.slane %v764, 4
      %v993 = vrot.slane %v765, 4
      %v994 = vrot.slane %v766, 4
      %v995 = vrot.slane %v767, 4
      %v996 = vrot.slane %v768, 4
      %v997 = vrot.slane %v769, 4
      %v998 = vrot.slane %v770, 4
      %v999 = vrot.slane %v771, 4
      %v1000 = vrot.slane %v772, 4
      %v1001 = vrot.slane %v773, 4
      %v1014 = vrot.slane %v786, 3
      %v1015 = vrot.slane %v787, 3
      %v1016 = vrot.slane %v788, 3
      %v1017 = vrot.slane %v789, 3
      %v1018 = vrot.slane %v790, 3
      %v1019 = vrot.slane %v791, 3
      %v1020 = vrot.slane %v792, 3
      %v1021 = vrot.slane %v793, 3
      %v1022 = vrot.slane %v794, 3
      %v1023 = vrot.slane %v795, 3
      %v1024 = vrot.slane %v796, 3
      %v1025 = vrot.slane %v797, 3
      %v1038 = vrot.slane %v762, 3
      %v1039 = vrot.slane %v763, 3
      %v1040 = vrot.slane %v764, 3
      %v1041 = vrot.slane %v765, 3
      %v1042 = vrot.slane %v766, 3
      %v1043 = vrot.slane %v767, 3
      %v1044 = vrot.slane %v768, 3
      %v1045 = vrot.slane %v769, 3
      %v1046 = vrot.slane %v770, 3
      %v1047 = vrot.slane %v771, 3
      %v1048 = vrot.slane %v772, 3
      %v1049 = vrot.slane %v773, 3
      %v1062 = vrot.slane %v786, 2
      %v1063 = vrot.slane %v787, 2
      %v1064 = vrot.slane %v788, 2
      %v1065 = vrot.slane %v789, 2
      %v1066 = vrot.slane %v790, 2
      %v1067 = vrot.slane %v791, 2
      %v1068 = vrot.slane %v792, 2
      %v1069 = vrot.slane %v793, 2
      %v1070 = vrot.slane %v794, 2
      %v1071 = vrot.slane %v795, 2
      %v1072 = vrot.slane %v796, 2
      %v1073 = vrot.slane %v797, 2
      %v1086 = vrot.slane %v762, 2
      %v1087 = vrot.slane %v763, 2
      %v1088 = vrot.slane %v764, 2
      %v1089 = vrot.slane %v765, 2
      %v1090 = vrot.slane %v766, 2
      %v1091 = vrot.slane %v767, 2
      %v1092 = vrot.slane %v768, 2
      %v1093 = vrot.slane %v769, 2
      %v1094 = vrot.slane %v770, 2
      %v1095 = vrot.slane %v771, 2
      %v1096 = vrot.slane %v772, 2
      %v1097 = vrot.slane %v773, 2
      %v1110 = vrot.slane %v786, 1
      %v1111 = vrot.slane %v787, 1
      %v1112 = vrot.slane %v788, 1
      %v1113 = vrot.slane %v789, 1
      %v1114 = vrot.slane %v790, 1
      %v1115 = vrot.slane %v791, 1
      %v1116 = vrot.slane %v792, 1
      %v1117 = vrot.slane %v793, 1
      %v1118 = vrot.slane %v794, 1
      %v1119 = vrot.slane %v795, 1
      %v1120 = vrot.slane %v796, 1
      %v1121 = vrot.slane %v797, 1
      %v1134 = vrot.slane %v762, 1
      %v1135 = vrot.slane %v763, 1
      %v1136 = vrot.slane %v764, 1
      %v1137 = vrot.slane %v765, 1
      %v1138 = vrot.slane %v766, 1
      %v1139 = vrot.slane %v767, 1
      %v1140 = vrot.slane %v768, 1
      %v1141 = vrot.slane %v769, 1
      %v1142 = vrot.slane %v770, 1
      %v1143 = vrot.slane %v771, 1
      %v1144 = vrot.slane %v772, 1
      %v1145 = vrot.slane %v773, 1
      %v1158 = vsel %vm688, %v762, %v810
      %v1159 = vsel %vm688, %v763, %v811
      %v1160 = vsel %vm688, %v764, %v812
      %v1161 = vsel %vm688, %v765, %v813
      %v1162 = vsel %vm688, %v766, %v814
      %v1163 = vsel %vm688, %v767, %v815
      %v1164 = vsel %vm688, %v768, %v816
      %v1165 = vsel %vm688, %v769, %v817
      %v1166 = vsel %vm688, %v770, %v818
      %v1167 = vsel %vm688, %v771, %v819
      %v1168 = vsel %vm688, %v772, %v820
      %v1169 = vsel %vm688, %v773, %v821
      %vm1170 = vcmask 1041408
      %v1171 = vsel %vm1170, %v1158, %v846
      %v1172 = vsel %vm1170, %v1159, %v847
      %v1173 = vsel %vm1170, %v1160, %v848
      %v1174 = vsel %vm1170, %v1161, %v849
      %v1175 = vsel %vm1170, %v1162, %v850
      %v1176 = vsel %vm1170, %v1163, %v851
      %v1177 = vsel %vm1170, %v1164, %v852
      %v1178 = vsel %vm1170, %v1165, %v853
      %v1179 = vsel %vm1170, %v1166, %v854
      %v1180 = vsel %vm1170, %v1167, %v855
      %v1181 = vsel %vm1170, %v1168, %v856
      %v1182 = vsel %vm1170, %v1169, %v857
      %vm1183 = vcmask 1042432
      %v1184 = vsel %vm1183, %v1171, %v870
      %v1185 = vsel %vm1183, %v1172, %v871
      %v1186 = vsel %vm1183, %v1173, %v872
      %v1187 = vsel %vm1183, %v1174, %v873
      %v1188 = vsel %vm1183, %v1175, %v874
      %v1189 = vsel %vm1183, %v1176, %v875
      %v1190 = vsel %vm1183, %v1177, %v876
      %v1191 = vsel %vm1183, %v1178, %v877
      %v1192 = vsel %vm1183, %v1179, %v878
      %v1193 = vsel %vm1183, %v1180, %v879
      %v1194 = vsel %vm1183, %v1181, %v880
      %v1195 = vsel %vm1183, %v1182, %v881
      %v1196 = vsel %vm527, %v1184, %v894
      %v1197 = vsel %vm527, %v1185, %v895
      %v1198 = vsel %vm527, %v1186, %v896
      %v1199 = vsel %vm527, %v1187, %v897
      %v1200 = vsel %vm527, %v1188, %v898
      %v1201 = vsel %vm527, %v1189, %v899
      %v1202 = vsel %vm527, %v1190, %v900
      %v1203 = vsel %vm527, %v1191, %v901
      %v1204 = vsel %vm527, %v1192, %v902
      %v1205 = vsel %vm527, %v1193, %v903
      %v1206 = vsel %vm527, %v1194, %v904
      %v1207 = vsel %vm527, %v1195, %v905
      %vm1208 = vcmask 1044480
      %v1209 = vsel %vm1208, %v1196, %v918
      %v1210 = vsel %vm1208, %v1197, %v919
      %v1211 = vsel %vm1208, %v1198, %v920
      %v1212 = vsel %vm1208, %v1199, %v921
      %v1213 = vsel %vm1208, %v1200, %v922
      %v1214 = vsel %vm1208, %v1201, %v923
      %v1215 = vsel %vm1208, %v1202, %v924
      %v1216 = vsel %vm1208, %v1203, %v925
      %v1217 = vsel %vm1208, %v1204, %v926
      %v1218 = vsel %vm1208, %v1205, %v927
      %v1219 = vsel %vm1208, %v1206, %v928
      %v1220 = vsel %vm1208, %v1207, %v929
      %vm1221 = vcmask 1045504
      %v1222 = vsel %vm1221, %v1209, %v942
      %v1223 = vsel %vm1221, %v1210, %v943
      %v1224 = vsel %vm1221, %v1211, %v944
      %v1225 = vsel %vm1221, %v1212, %v945
      %v1226 = vsel %vm1221, %v1213, %v946
      %v1227 = vsel %vm1221, %v1214, %v947
      %v1228 = vsel %vm1221, %v1215, %v948
      %v1229 = vsel %vm1221, %v1216, %v949
      %v1230 = vsel %vm1221, %v1217, %v950
      %v1231 = vsel %vm1221, %v1218, %v951
      %v1232 = vsel %vm1221, %v1219, %v952
      %v1233 = vsel %vm1221, %v1220, %v953
      %v1234 = vsel %vm725, %v1222, %v966
      %v1235 = vsel %vm725, %v1223, %v967
      %v1236 = vsel %vm725, %v1224, %v968
      %v1237 = vsel %vm725, %v1225, %v969
      %v1238 = vsel %vm725, %v1226, %v970
      %v1239 = vsel %vm725, %v1227, %v971
      %v1240 = vsel %vm725, %v1228, %v972
      %v1241 = vsel %vm725, %v1229, %v973
      %v1242 = vsel %vm725, %v1230, %v974
      %v1243 = vsel %vm725, %v1231, %v975
      %v1244 = vsel %vm725, %v1232, %v976
      %v1245 = vsel %vm725, %v1233, %v977
      %v1246 = vsel %vm688, %v990, %v1014
      %v1247 = vsel %vm688, %v991, %v1015
      %v1248 = vsel %vm688, %v992, %v1016
      %v1249 = vsel %vm688, %v993, %v1017
      %v1250 = vsel %vm688, %v994, %v1018
      %v1251 = vsel %vm688, %v995, %v1019
      %v1252 = vsel %vm688, %v996, %v1020
      %v1253 = vsel %vm688, %v997, %v1021
      %v1254 = vsel %vm688, %v998, %v1022
      %v1255 = vsel %vm688, %v999, %v1023
      %v1256 = vsel %vm688, %v1000, %v1024
      %v1257 = vsel %vm688, %v1001, %v1025
      %v1258 = vsel %vm1170, %v1246, %v1038
      %v1259 = vsel %vm1170, %v1247, %v1039
      %v1260 = vsel %vm1170, %v1248, %v1040
      %v1261 = vsel %vm1170, %v1249, %v1041
      %v1262 = vsel %vm1170, %v1250, %v1042
      %v1263 = vsel %vm1170, %v1251, %v1043
      %v1264 = vsel %vm1170, %v1252, %v1044
      %v1265 = vsel %vm1170, %v1253, %v1045
      %v1266 = vsel %vm1170, %v1254, %v1046
      %v1267 = vsel %vm1170, %v1255, %v1047
      %v1268 = vsel %vm1170, %v1256, %v1048
      %v1269 = vsel %vm1170, %v1257, %v1049
      %v1270 = vsel %vm1183, %v1258, %v1062
      %v1271 = vsel %vm1183, %v1259, %v1063
      %v1272 = vsel %vm1183, %v1260, %v1064
      %v1273 = vsel %vm1183, %v1261, %v1065
      %v1274 = vsel %vm1183, %v1262, %v1066
      %v1275 = vsel %vm1183, %v1263, %v1067
      %v1276 = vsel %vm1183, %v1264, %v1068
      %v1277 = vsel %vm1183, %v1265, %v1069
      %v1278 = vsel %vm1183, %v1266, %v1070
      %v1279 = vsel %vm1183, %v1267, %v1071
      %v1280 = vsel %vm1183, %v1268, %v1072
      %v1281 = vsel %vm1183, %v1269, %v1073
      %v1282 = vsel %vm527, %v1270, %v1086
      %v1283 = vsel %vm527, %v1271, %v1087
      %v1284 = vsel %vm527, %v1272, %v1088
      %v1285 = vsel %vm527, %v1273, %v1089
      %v1286 = vsel %vm527, %v1274, %v1090
      %v1287 = vsel %vm527, %v1275, %v1091
      %v1288 = vsel %vm527, %v1276, %v1092
      %v1289 = vsel %vm527, %v1277, %v1093
      %v1290 = vsel %vm527, %v1278, %v1094
      %v1291 = vsel %vm527, %v1279, %v1095
      %v1292 = vsel %vm527, %v1280, %v1096
      %v1293 = vsel %vm527, %v1281, %v1097
      %v1294 = vsel %vm1208, %v1282, %v1110
      %v1295 = vsel %vm1208, %v1283, %v1111
      %v1296 = vsel %vm1208, %v1284, %v1112
      %v1297 = vsel %vm1208, %v1285, %v1113
      %v1298 = vsel %vm1208, %v1286, %v1114
      %v1299 = vsel %vm1208, %v1287, %v1115
      %v1300 = vsel %vm1208, %v1288, %v1116
      %v1301 = vsel %vm1208, %v1289, %v1117
      %v1302 = vsel %vm1208, %v1290, %v1118
      %v1303 = vsel %vm1208, %v1291, %v1119
      %v1304 = vsel %vm1208, %v1292, %v1120
      %v1305 = vsel %vm1208, %v1293, %v1121
      %v1306 = vsel %vm1221, %v1294, %v1134
      %v1307 = vsel %vm1221, %v1295, %v1135
      %v1308 = vsel %vm1221, %v1296, %v1136
      %v1309 = vsel %vm1221, %v1297, %v1137
      %v1310 = vsel %vm1221, %v1298, %v1138
      %v1311 = vsel %vm1221, %v1299, %v1139
      %v1312 = vsel %vm1221, %v1300, %v1140
      %v1313 = vsel %vm1221, %v1301, %v1141
      %v1314 = vsel %vm1221, %v1302, %v1142
      %v1315 = vsel %vm1221, %v1303, %v1143
      %v1316 = vsel %vm1221, %v1304, %v1144
      %v1317 = vsel %vm1221, %v1305, %v1145
      %v1318 = vsel %vm725, %v1306, %v786
      %v1319 = vsel %vm725, %v1307, %v787
      %v1320 = vsel %vm725, %v1308, %v788
      %v1321 = vsel %vm725, %v1309, %v789
      %v1322 = vsel %vm725, %v1310, %v790
      %v1323 = vsel %vm725, %v1311, %v791
      %v1324 = vsel %vm725, %v1312, %v792
      %v1325 = vsel %vm725, %v1313, %v793
      %v1326 = vsel %vm725, %v1314, %v794
      %v1327 = vsel %vm725, %v1315, %v795
      %v1328 = vsel %vm725, %v1316, %v796
      %v1329 = vsel %vm725, %v1317, %v797
      %s1330 = smul.u32 %s28, 8
      %s1331 = ssub.s32 %s1330, 2
      %v1332 = vstv %s1331
      %v1333 = vadd.s32 %v1332, 1
      %v1334 = vadd.s32 %v1332, 2
      %v1335 = vadd.s32 %v1332, 3
      %v1336 = vadd.s32 %v1332, 4
      %v1337 = vadd.s32 %v1332, 5
      %v1338 = vadd.s32 %v1332, 6
      %v1339 = vadd.s32 %v1332, 7
      %v1340 = vadd.s32 %v1332, 8
      %v1341 = vadd.s32 %v1332, 9
      %v1342 = vadd.s32 %v1332, 10
      %v1343 = vadd.s32 %v1332, 11
      %vm1344 = vcmp.ge.s32.totalorder %v1332, 0
      %vm1345 = vcmp.ge.s32.totalorder %v1333, 0
      %vm1346 = vcmp.ge.s32.totalorder %v1334, 0
      %vm1347 = vcmp.ge.s32.totalorder %v1335, 0
      %vm1348 = vcmp.ge.s32.totalorder %v1336, 0
      %vm1349 = vcmp.ge.s32.totalorder %v1337, 0
      %vm1350 = vcmp.ge.s32.totalorder %v1338, 0
      %vm1351 = vcmp.ge.s32.totalorder %v1339, 0
      %vm1352 = vcmp.ge.s32.totalorder %v1340, 0
      %vm1353 = vcmp.ge.s32.totalorder %v1341, 0
      %vm1354 = vcmp.ge.s32.totalorder %v1342, 0
      %vm1355 = vcmp.ge.s32.totalorder %v1343, 0
      %vm1356 = vcmp.lt.s32.totalorder %v1332, 16
      %vm1357 = vcmp.lt.s32.totalorder %v1333, 16
      %vm1358 = vcmp.lt.s32.totalorder %v1334, 16
      %vm1359 = vcmp.lt.s32.totalorder %v1335, 16
      %vm1360 = vcmp.lt.s32.totalorder %v1336, 16
      %vm1361 = vcmp.lt.s32.totalorder %v1337, 16
      %vm1362 = vcmp.lt.s32.totalorder %v1338, 16
      %vm1363 = vcmp.lt.s32.totalorder %v1339, 16
      %vm1364 = vcmp.lt.s32.totalorder %v1340, 16
      %vm1365 = vcmp.lt.s32.totalorder %v1341, 16
      %vm1366 = vcmp.lt.s32.totalorder %v1342, 16
      %vm1367 = vcmp.lt.s32.totalorder %v1343, 16
      %vm1368 = vmand %vm1344, %vm1356
      %vm1369 = vmand %vm1345, %vm1357
      %vm1370 = vmand %vm1346, %vm1358
      %vm1371 = vmand %vm1347, %vm1359
      %vm1372 = vmand %vm1348, %vm1360
      %vm1373 = vmand %vm1349, %vm1361
      %vm1374 = vmand %vm1350, %vm1362
      %vm1375 = vmand %vm1351, %vm1363
      %vm1376 = vmand %vm1352, %vm1364
      %vm1377 = vmand %vm1353, %vm1365
      %vm1378 = vmand %vm1354, %vm1366
      %vm1379 = vmand %vm1355, %vm1367
      %v1380 = vmax.f32 %v1234, 0.0
      %v1381 = vmax.f32 %v1318, 0.0
      %v1382 = vmax.f32 %v1235, 0.0
      %v1383 = vmax.f32 %v1319, 0.0
      %v1384 = vmax.f32 %v1236, 0.0
      %v1385 = vmax.f32 %v1320, 0.0
      %v1386 = vmax.f32 %v1237, 0.0
      %v1387 = vmax.f32 %v1321, 0.0
      %v1388 = vmax.f32 %v1238, 0.0
      %v1389 = vmax.f32 %v1322, 0.0
      %v1390 = vmax.f32 %v1239, 0.0
      %v1391 = vmax.f32 %v1323, 0.0
      %v1392 = vmax.f32 %v1240, 0.0
      %v1393 = vmax.f32 %v1324, 0.0
      %v1394 = vmax.f32 %v1241, 0.0
      %v1395 = vmax.f32 %v1325, 0.0
      %v1396 = vmax.f32 %v1242, 0.0
      %v1397 = vmax.f32 %v1326, 0.0
      %v1398 = vmax.f32 %v1243, 0.0
      %v1399 = vmax.f32 %v1327, 0.0
      %v1400 = vmax.f32 %v1244, 0.0
      %v1401 = vmax.f32 %v1328, 0.0
      %v1402 = vmax.f32 %v1245, 0.0
      %v1403 = vmax.f32 %v1329, 0.0
      %v1404 = vsel %vm1368, 1, 0
      %v1405 = vsel %vm1369, 1, 0
      %v1406 = vsel %vm1370, 1, 0
      %v1407 = vsel %vm1371, 1, 0
      %v1408 = vsel %vm1372, 1, 0
      %v1409 = vsel %vm1373, 1, 0
      %v1410 = vsel %vm1374, 1, 0
      %v1411 = vsel %vm1375, 1, 0
      %v1412 = vsel %vm1376, 1, 0
      %v1413 = vsel %vm1377, 1, 0
      %v1414 = vsel %vm1378, 1, 0
      %v1415 = vsel %vm1379, 1, 0
      %vm1416 = vcmp.eq.s32.totalorder %v1404, 1
      %vm1417 = vcmp.eq.s32.totalorder %v1405, 1
      %vm1418 = vcmp.eq.s32.totalorder %v1406, 1
      %vm1419 = vcmp.eq.s32.totalorder %v1407, 1
      %vm1420 = vcmp.eq.s32.totalorder %v1408, 1
      %vm1421 = vcmp.eq.s32.totalorder %v1409, 1
      %vm1422 = vcmp.eq.s32.totalorder %v1410, 1
      %vm1423 = vcmp.eq.s32.totalorder %v1411, 1
      %vm1424 = vcmp.eq.s32.totalorder %v1412, 1
      %vm1425 = vcmp.eq.s32.totalorder %v1413, 1
      %vm1426 = vcmp.eq.s32.totalorder %v1414, 1
      %vm1427 = vcmp.eq.s32.totalorder %v1415, 1
      %v1428 = vsel %vm1416, %v1380, 0.0
      %v1429 = vsel %vm1416, %v1381, 0.0
      %v1430 = vsel %vm1417, %v1382, 0.0
      %v1431 = vsel %vm1417, %v1383, 0.0
      %v1432 = vsel %vm1418, %v1384, 0.0
      %v1433 = vsel %vm1418, %v1385, 0.0
      %v1434 = vsel %vm1419, %v1386, 0.0
      %v1435 = vsel %vm1419, %v1387, 0.0
      %v1436 = vsel %vm1420, %v1388, 0.0
      %v1437 = vsel %vm1420, %v1389, 0.0
      %v1438 = vsel %vm1421, %v1390, 0.0
      %v1439 = vsel %vm1421, %v1391, 0.0
      %v1440 = vsel %vm1422, %v1392, 0.0
      %v1441 = vsel %vm1422, %v1393, 0.0
      %v1442 = vsel %vm1423, %v1394, 0.0
      %v1443 = vsel %vm1423, %v1395, 0.0
      %v1444 = vsel %vm1424, %v1396, 0.0
      %v1445 = vsel %vm1424, %v1397, 0.0
      %v1446 = vsel %vm1425, %v1398, 0.0
      %v1447 = vsel %vm1425, %v1399, 0.0
      %v1448 = vsel %vm1426, %v1400, 0.0
      %v1449 = vsel %vm1426, %v1401, 0.0
      %v1450 = vsel %vm1427, %v1402, 0.0
      %v1451 = vsel %vm1427, %v1403, 0.0
      %vm1452 = vcmask 24576
      %1453 = vst.msk [vmem:[#allocation2] sm:$0x1] %vm1452, 0.0
      %1454 = vst.msk [vmem:[#allocation2 + $0x18] sm:$0x1] %vm1452, 0.0
      %1455 = vst.msk [vmem:[#allocation2 + $0x30] sm:$0x1] %vm1452, 0.0
      %1456 = vst.msk [vmem:[#allocation2 + $0x48] sm:$0x1] %vm1452, 0.0
      %1457 = vst.msk [vmem:[#allocation2 + $0x60] sm:$0x1] %vm1452, 0.0
      %1458 = vst.msk [vmem:[#allocation2 + $0x78] sm:$0x1] %vm1452, 0.0
      %1459 = vst.msk [vmem:[#allocation2 + $0x90] sm:$0x1] %vm1452, 0.0
      %1460 = vst.msk [vmem:[#allocation2 + $0xa8] sm:$0x1] %vm1452, 0.0
      %1461 = vst.msk [vmem:[#allocation2 + $0xc0] sm:$0x1] %vm1452, 0.0
      %1462 = vst.msk [vmem:[#allocation2 + $0xd8] sm:$0x1] %vm1452, 0.0
      %1463 = vst.msk [vmem:[#allocation2 + $0xf0] sm:$0x1] %vm1452, 0.0
      %1464 = vst.msk [vmem:[#allocation2 + $0x108] sm:$0x1] %vm1452, 0.0
      %1465 = vst.msk [vmem:[#allocation2 + $0x11] sm:$0x1] %vm1452, 0.0
      %1466 = vst.msk [vmem:[#allocation2 + $0x29] sm:$0x1] %vm1452, 0.0
      %1467 = vst.msk [vmem:[#allocation2 + $0x41] sm:$0x1] %vm1452, 0.0
      %1468 = vst.msk [vmem:[#allocation2 + $0x59] sm:$0x1] %vm1452, 0.0
      %1469 = vst.msk [vmem:[#allocation2 + $0x71] sm:$0x1] %vm1452, 0.0
      %1470 = vst.msk [vmem:[#allocation2 + $0x89] sm:$0x1] %vm1452, 0.0
      %1471 = vst.msk [vmem:[#allocation2 + $0xa1] sm:$0x1] %vm1452, 0.0
      %1472 = vst.msk [vmem:[#allocation2 + $0xb9] sm:$0x1] %vm1452, 0.0
      %1473 = vst.msk [vmem:[#allocation2 + $0xd1] sm:$0x1] %vm1452, 0.0
      %1474 = vst.msk [vmem:[#allocation2 + $0xe9] sm:$0x1] %vm1452, 0.0
      %1475 = vst.msk [vmem:[#allocation2 + $0x101] sm:$0x1] %vm1452, 0.0
      %1476 = vst.msk [vmem:[#allocation2 + $0x119] sm:$0x1] %vm1452, 0.0
      %vm1477 = vcmask 31744
      %1478 = vst.msk [vmem:[#allocation2 + $0x1] sm:$0xff] %vm1477, %v1428
      %1479 = vst.msk [vmem:[#allocation2 + $0x9] sm:$0xff] %vm1477, %v1429
      %1480 = vst.msk [vmem:[#allocation2 + $0x19] sm:$0xff] %vm1477, %v1430
      %1481 = vst.msk [vmem:[#allocation2 + $0x21] sm:$0xff] %vm1477, %v1431
      %1482 = vst.msk [vmem:[#allocation2 + $0x31] sm:$0xff] %vm1477, %v1432
      %1483 = vst.msk [vmem:[#allocation2 + $0x39] sm:$0xff] %vm1477, %v1433
      %1484 = vst.msk [vmem:[#allocation2 + $0x49] sm:$0xff] %vm1477, %v1434
      %1485 = vst.msk [vmem:[#allocation2 + $0x51] sm:$0xff] %vm1477, %v1435
      %1486 = vst.msk [vmem:[#allocation2 + $0x61] sm:$0xff] %vm1477, %v1436
      %1487 = vst.msk [vmem:[#allocation2 + $0x69] sm:$0xff] %vm1477, %v1437
      %1488 = vst.msk [vmem:[#allocation2 + $0x79] sm:$0xff] %vm1477, %v1438
      %1489 = vst.msk [vmem:[#allocation2 + $0x81] sm:$0xff] %vm1477, %v1439
      %1490 = vst.msk [vmem:[#allocation2 + $0x91] sm:$0xff] %vm1477, %v1440
      %1491 = vst.msk [vmem:[#allocation2 + $0x99] sm:$0xff] %vm1477, %v1441
      %1492 = vst.msk [vmem:[#allocation2 + $0xa9] sm:$0xff] %vm1477, %v1442
      %1493 = vst.msk [vmem:[#allocation2 + $0xb1] sm:$0xff] %vm1477, %v1443
      %1494 = vst.msk [vmem:[#allocation2 + $0xc1] sm:$0xff] %vm1477, %v1444
      %1495 = vst.msk [vmem:[#allocation2 + $0xc9] sm:$0xff] %vm1477, %v1445
      %1496 = vst.msk [vmem:[#allocation2 + $0xd9] sm:$0xff] %vm1477, %v1446
      %1497 = vst.msk [vmem:[#allocation2 + $0xe1] sm:$0xff] %vm1477, %v1447
      %1498 = vst.msk [vmem:[#allocation2 + $0xf1] sm:$0xff] %vm1477, %v1448
      %1499 = vst.msk [vmem:[#allocation2 + $0xf9] sm:$0xff] %vm1477, %v1449
      %1500 = vst.msk [vmem:[#allocation2 + $0x109] sm:$0xff] %vm1477, %v1450
      %1501 = vst.msk [vmem:[#allocation2 + $0x111] sm:$0xff] %vm1477, %v1451
      %v1502 = vld [vmem:[%s465] sm:$0xf]
      %v1503 = vld [vmem:[%s465 + $0x4] sm:$0xf]
      %v1504 = vld [vmem:[%s465 + $0x8] sm:$0x1]
      %v1505 = vld [vmem:[%s465 + $0xc] sm:$0xf]
      %v1506 = vld [vmem:[%s465 + $0x10] sm:$0xf]
      %v1507 = vld [vmem:[%s465 + $0x14] sm:$0x1]
      %v1508 = vld [vmem:[%s465 + $0x18] sm:$0xf]
      %v1509 = vld [vmem:[%s465 + $0x1c] sm:$0xf]
      %v1510 = vld [vmem:[%s465 + $0x20] sm:$0x1]
      %v1511 = vld [vmem:[%s465 + $0x24] sm:$0xf]
      %v1512 = vld [vmem:[%s465 + $0x28] sm:$0xf]
      %v1513 = vld [vmem:[%s465 + $0x2c] sm:$0x1]
      %v1514 = vld [vmem:[%s465 + $0x30] sm:$0xf]
      %v1515 = vld [vmem:[%s465 + $0x34] sm:$0xf]
      %v1516 = vld [vmem:[%s465 + $0x38] sm:$0x1]
      %v1517 = vld [vmem:[%s465 + $0x3c] sm:$0xf]
      %v1518 = vld [vmem:[%s465 + $0x40] sm:$0xf]
      %v1519 = vld [vmem:[%s465 + $0x44] sm:$0x1]
      %v1520 = vld [vmem:[%s465 + $0x48] sm:$0xf]
      %v1521 = vld [vmem:[%s465 + $0x4c] sm:$0xf]
      %v1522 = vld [vmem:[%s465 + $0x50] sm:$0x1]
      %v1523 = vld [vmem:[%s465 + $0x54] sm:$0xf]
      %v1524 = vld [vmem:[%s465 + $0x58] sm:$0xf]
      %v1525 = vld [vmem:[%s465 + $0x5c] sm:$0x1]
      %v1526 = vld [vmem:[%s465 + $0x60] sm:$0xf]
      %v1527 = vld [vmem:[%s465 + $0x64] sm:$0xf]
      %v1528 = vld [vmem:[%s465 + $0x68] sm:$0x1]
      %v1529 = vld [vmem:[%s465 + $0x6c] sm:$0xf]
      %v1530 = vld [vmem:[%s465 + $0x70] sm:$0xf]
      %v1531 = vld [vmem:[%s465 + $0x74] sm:$0x1]
      %v1532 = vld [vmem:[%s465 + $0x78] sm:$0xf]
      %v1533 = vld [vmem:[%s465 + $0x7c] sm:$0xf]
      %v1534 = vld [vmem:[%s465 + $0x80] sm:$0x1]
      %v1535 = vld [vmem:[%s465 + $0x84] sm:$0xf]
      %v1536 = vld [vmem:[%s465 + $0x88] sm:$0xf]
      %v1537 = vld [vmem:[%s465 + $0x8c] sm:$0x1]
      %v1558 = vunpack.c.l.b16 %v1502
      %v1559 = vunpack.c.l.b16 %v1503
      %v1560 = vunpack.c.l.b16 %v1505
      %v1561 = vunpack.c.l.b16 %v1506
      %v1562 = vunpack.c.l.b16 %v1508
      %v1563 = vunpack.c.l.b16 %v1509
      %v1564 = vunpack.c.l.b16 %v1511
      %v1565 = vunpack.c.l.b16 %v1512
      %v1566 = vunpack.c.l.b16 %v1514
      %v1567 = vunpack.c.l.b16 %v1515
      %v1568 = vunpack.c.l.b16 %v1517
      %v1569 = vunpack.c.l.b16 %v1518
      %v1570 = vunpack.c.l.b16 %v1520
      %v1571 = vunpack.c.l.b16 %v1521
      %v1572 = vunpack.c.l.b16 %v1523
      %v1573 = vunpack.c.l.b16 %v1524
      %v1574 = vunpack.c.l.b16 %v1526
      %v1575 = vunpack.c.l.b16 %v1527
      %v1576 = vunpack.c.l.b16 %v1529
      %v1577 = vunpack.c.l.b16 %v1530
      %v1578 = vpack.c.b16 %v1559, %v1558
      %v1579 = vpack.c.b16 %v1561, %v1560
      %v1580 = vpack.c.b16 %v1563, %v1562
      %v1581 = vpack.c.b16 %v1565, %v1564
      %v1582 = vpack.c.b16 %v1567, %v1566
      %v1583 = vpack.c.b16 %v1569, %v1568
      %v1584 = vpack.c.b16 %v1571, %v1570
      %v1585 = vpack.c.b16 %v1573, %v1572
      %v1586 = vpack.c.b16 %v1575, %v1574
      %v1587 = vpack.c.b16 %v1577, %v1576
      %v1598 = vunpack.c.l.b16 %v1504
      %v1599 = vunpack.c.l.b16 %v1507
      %v1600 = vunpack.c.l.b16 %v1510
      %v1601 = vunpack.c.l.b16 %v1513
      %v1602 = vunpack.c.l.b16 %v1516
      %v1603 = vunpack.c.l.b16 %v1519
      %v1604 = vunpack.c.l.b16 %v1522
      %v1605 = vunpack.c.l.b16 %v1525
      %v1606 = vunpack.c.l.b16 %v1528
      %v1607 = vunpack.c.l.b16 %v1531
      %v1608 = vpack.c.b16 %v1598, %v1598
      %v1609 = vpack.c.b16 %v1599, %v1599
      %v1610 = vpack.c.b16 %v1600, %v1600
      %v1611 = vpack.c.b16 %v1601, %v1601
      %v1612 = vpack.c.b16 %v1602, %v1602
      %v1613 = vpack.c.b16 %v1603, %v1603
      %v1614 = vpack.c.b16 %v1604, %v1604
      %v1615 = vpack.c.b16 %v1605, %v1605
      %v1616 = vpack.c.b16 %v1606, %v1606
      %v1617 = vpack.c.b16 %v1607, %v1607
      %vm1618 = vsmask.f32 7424
      %v1620 = vshrl.u32 %v1578, 16
      %v1622 = vshll.u32 %v1578, 16
      %v1624 = vrot.slane %v1622, 1
      %v1625 = vor.u32 %v1620, %v1624
      %v1627 = vshll.u32 %v1608, 16
      %v1629 = vrot.slane %v1627, 1
      %v1630 = vsel %vm1618, %v1625, %v1629
      %v1632 = vshrl.u32 %v1579, 16
      %v1634 = vshll.u32 %v1579, 16
      %v1636 = vrot.slane %v1634, 1
      %v1637 = vor.u32 %v1632, %v1636
      %v1639 = vshll.u32 %v1609, 16
      %v1641 = vrot.slane %v1639, 1
      %v1642 = vsel %vm1618, %v1637, %v1641
      %v1644 = vshrl.u32 %v1580, 16
      %v1646 = vshll.u32 %v1580, 16
      %v1648 = vrot.slane %v1646, 1
      %v1649 = vor.u32 %v1644, %v1648
      %v1651 = vshll.u32 %v1610, 16
      %v1653 = vrot.slane %v1651, 1
      %v1654 = vsel %vm1618, %v1649, %v1653
      %v1656 = vshrl.u32 %v1581, 16
      %v1658 = vshll.u32 %v1581, 16
      %v1660 = vrot.slane %v1658, 1
      %v1661 = vor.u32 %v1656, %v1660
      %v1663 = vshll.u32 %v1611, 16
      %v1665 = vrot.slane %v1663, 1
      %v1666 = vsel %vm1618, %v1661, %v1665
      %v1668 = vshrl.u32 %v1582, 16
      %v1670 = vshll.u32 %v1582, 16
      %v1672 = vrot.slane %v1670, 1
      %v1673 = vor.u32 %v1668, %v1672
      %v1675 = vshll.u32 %v1612, 16
      %v1677 = vrot.slane %v1675, 1
      %v1678 = vsel %vm1618, %v1673, %v1677
      %v1680 = vshrl.u32 %v1583, 16
      %v1682 = vshll.u32 %v1583, 16
      %v1684 = vrot.slane %v1682, 1
      %v1685 = vor.u32 %v1680, %v1684
      %v1687 = vshll.u32 %v1613, 16
      %v1689 = vrot.slane %v1687, 1
      %v1690 = vsel %vm1618, %v1685, %v1689
      %v1692 = vshrl.u32 %v1584, 16
      %v1694 = vshll.u32 %v1584, 16
      %v1696 = vrot.slane %v1694, 1
      %v1697 = vor.u32 %v1692, %v1696
      %v1699 = vshll.u32 %v1614, 16
      %v1701 = vrot.slane %v1699, 1
      %v1702 = vsel %vm1618, %v1697, %v1701
      %v1704 = vshrl.u32 %v1585, 16
      %v1706 = vshll.u32 %v1585, 16
      %v1708 = vrot.slane %v1706, 1
      %v1709 = vor.u32 %v1704, %v1708
      %v1711 = vshll.u32 %v1615, 16
      %v1713 = vrot.slane %v1711, 1
      %v1714 = vsel %vm1618, %v1709, %v1713
      %v1716 = vshrl.u32 %v1586, 16
      %v1718 = vshll.u32 %v1586, 16
      %v1720 = vrot.slane %v1718, 1
      %v1721 = vor.u32 %v1716, %v1720
      %v1723 = vshll.u32 %v1616, 16
      %v1725 = vrot.slane %v1723, 1
      %v1726 = vsel %vm1618, %v1721, %v1725
      %v1728 = vshrl.u32 %v1587, 16
      %v1730 = vshll.u32 %v1587, 16
      %v1732 = vrot.slane %v1730, 1
      %v1733 = vor.u32 %v1728, %v1732
      %v1735 = vshll.u32 %v1617, 16
      %v1737 = vrot.slane %v1735, 1
      %v1738 = vsel %vm1618, %v1733, %v1737
      %1739 = vrot.lane.b32.xlu0 %v1630, 4
      %v1740 = vpop.permute.xlu0 %1739
      %1741 = vrot.lane.b32.xlu0 %v1642, 4
      %v1742 = vpop.permute.xlu0 %1741
      %1743 = vrot.lane.b32.xlu0 %v1654, 4
      %v1744 = vpop.permute.xlu0 %1743
      %1745 = vrot.lane.b32.xlu0 %v1666, 4
      %v1746 = vpop.permute.xlu0 %1745
      %1747 = vrot.lane.b32.xlu0 %v1678, 4
      %v1748 = vpop.permute.xlu0 %1747
      %1749 = vrot.lane.b32.xlu0 %v1690, 4
      %v1750 = vpop.permute.xlu0 %1749
      %1751 = vrot.lane.b32.xlu0 %v1702, 4
      %v1752 = vpop.permute.xlu0 %1751
      %1753 = vrot.lane.b32.xlu0 %v1714, 4
      %v1754 = vpop.permute.xlu0 %1753
      %1755 = vrot.lane.b32.xlu0 %v1726, 4
      %v1756 = vpop.permute.xlu0 %1755
      %1757 = vrot.lane.b32.xlu0 %v1738, 4
      %v1758 = vpop.permute.xlu0 %1757
      %vm1759 = vcmask 1046528
      %v1760 = vrot.slane %v1578, 1
      %v1761 = vrot.slane %v1608, 1
      %v1762 = vsel %vm1759, %v1760, %v1761
      %v1763 = vrot.slane %v1579, 1
      %v1764 = vrot.slane %v1609, 1
      %v1765 = vsel %vm1759, %v1763, %v1764
      %v1766 = vrot.slane %v1580, 1
      %v1767 = vrot.slane %v1610, 1
      %v1768 = vsel %vm1759, %v1766, %v1767
      %v1769 = vrot.slane %v1581, 1
      %v1770 = vrot.slane %v1611, 1
      %v1771 = vsel %vm1759, %v1769, %v1770
      %v1772 = vrot.slane %v1582, 1
      %v1773 = vrot.slane %v1612, 1
      %v1774 = vsel %vm1759, %v1772, %v1773
      %v1775 = vrot.slane %v1583, 1
      %v1776 = vrot.slane %v1613, 1
      %v1777 = vsel %vm1759, %v1775, %v1776
      %v1778 = vrot.slane %v1584, 1
      %v1779 = vrot.slane %v1614, 1
      %v1780 = vsel %vm1759, %v1778, %v1779
      %v1781 = vrot.slane %v1585, 1
      %v1782 = vrot.slane %v1615, 1
      %v1783 = vsel %vm1759, %v1781, %v1782
      %v1784 = vrot.slane %v1586, 1
      %v1785 = vrot.slane %v1616, 1
      %v1786 = vsel %vm1759, %v1784, %v1785
      %v1787 = vrot.slane %v1587, 1
      %v1788 = vrot.slane %v1617, 1
      %v1789 = vsel %vm1759, %v1787, %v1788
      %1790 = vrot.lane.b32.xlu0 %v1762, 8
      %v1791 = vpop.permute.xlu0 %1790
      %1792 = vrot.lane.b32.xlu0 %v1765, 8
      %v1793 = vpop.permute.xlu0 %1792
      %1794 = vrot.lane.b32.xlu0 %v1768, 8
      %v1795 = vpop.permute.xlu0 %1794
      %1796 = vrot.lane.b32.xlu0 %v1771, 8
      %v1797 = vpop.permute.xlu0 %1796
      %1798 = vrot.lane.b32.xlu0 %v1774, 8
      %v1799 = vpop.permute.xlu0 %1798
      %1800 = vrot.lane.b32.xlu0 %v1777, 8
      %v1801 = vpop.permute.xlu0 %1800
      %1802 = vrot.lane.b32.xlu0 %v1780, 8
      %v1803 = vpop.permute.xlu0 %1802
      %1804 = vrot.lane.b32.xlu0 %v1783, 8
      %v1805 = vpop.permute.xlu0 %1804
      %1806 = vrot.lane.b32.xlu0 %v1786, 8
      %v1807 = vpop.permute.xlu0 %1806
      %1808 = vrot.lane.b32.xlu0 %v1789, 8
      %v1809 = vpop.permute.xlu0 %1808
      %v1812 = vunpack.c.l.b16 %v1532
      %v1813 = vunpack.c.l.b16 %v1533
      %v1814 = vpack.c.b16 %v1813, %v1812
      %1815 = vrot.lane.b32.xlu0 %v1579, 12
      %v1816 = vpop.permute.xlu0 %1815
      %1817 = vrot.lane.b32.xlu0 %v1580, 12
      %v1818 = vpop.permute.xlu0 %1817
      %1819 = vrot.lane.b32.xlu0 %v1581, 12
      %v1820 = vpop.permute.xlu0 %1819
      %1821 = vrot.lane.b32.xlu0 %v1582, 12
      %v1822 = vpop.permute.xlu0 %1821
      %1823 = vrot.lane.b32.xlu0 %v1583, 12
      %v1824 = vpop.permute.xlu0 %1823
      %1825 = vrot.lane.b32.xlu0 %v1584, 12
      %v1826 = vpop.permute.xlu0 %1825
      %1827 = vrot.lane.b32.xlu0 %v1585, 12
      %v1828 = vpop.permute.xlu0 %1827
      %1829 = vrot.lane.b32.xlu0 %v1586, 12
      %v1830 = vpop.permute.xlu0 %1829
      %1831 = vrot.lane.b32.xlu0 %v1587, 12
      %v1832 = vpop.permute.xlu0 %1831
      %1833 = vrot.lane.b32.xlu0 %v1814, 12
      %v1834 = vpop.permute.xlu0 %1833
      %v1836 = vunpack.c.l.b16 %v1534
      %v1837 = vpack.c.b16 %v1836, %v1836
      %v1839 = vshrl.u32 %v1814, 16
      %v1841 = vshll.u32 %v1814, 16
      %v1843 = vrot.slane %v1841, 1
      %v1844 = vor.u32 %v1839, %v1843
      %v1846 = vshll.u32 %v1837, 16
      %v1848 = vrot.slane %v1846, 1
      %v1849 = vsel %vm1618, %v1844, %v1848
      %1850 = vrot.lane.b32.xlu0 %v1642, 16
      %v1851 = vpop.permute.xlu0 %1850
      %1852 = vrot.lane.b32.xlu0 %v1654, 16
      %v1853 = vpop.permute.xlu0 %1852
      %1854 = vrot.lane.b32.xlu0 %v1666, 16
      %v1855 = vpop.permute.xlu0 %1854
      %1856 = vrot.lane.b32.xlu0 %v1678, 16
      %v1857 = vpop.permute.xlu0 %1856
      %1858 = vrot.lane.b32.xlu0 %v1690, 16
      %v1859 = vpop.permute.xlu0 %1858
      %1860 = vrot.lane.b32.xlu0 %v1702, 16
      %v1861 = vpop.permute.xlu0 %1860
      %1862 = vrot.lane.b32.xlu0 %v1714, 16
      %v1863 = vpop.permute.xlu0 %1862
      %1864 = vrot.lane.b32.xlu0 %v1726, 16
      %v1865 = vpop.permute.xlu0 %1864
      %1866 = vrot.lane.b32.xlu0 %v1738, 16
      %v1867 = vpop.permute.xlu0 %1866
      %1868 = vrot.lane.b32.xlu0 %v1849, 16
      %v1869 = vpop.permute.xlu0 %1868
      %v1870 = vrot.slane %v1814, 1
      %v1871 = vrot.slane %v1837, 1
      %v1872 = vsel %vm1759, %v1870, %v1871
      %1873 = vrot.lane.b32.xlu0 %v1765, 20
      %v1874 = vpop.permute.xlu0 %1873
      %1875 = vrot.lane.b32.xlu0 %v1768, 20
      %v1876 = vpop.permute.xlu0 %1875
      %1877 = vrot.lane.b32.xlu0 %v1771, 20
      %v1878 = vpop.permute.xlu0 %1877
      %1879 = vrot.lane.b32.xlu0 %v1774, 20
      %v1880 = vpop.permute.xlu0 %1879
      %1881 = vrot.lane.b32.xlu0 %v1777, 20
      %v1882 = vpop.permute.xlu0 %1881
      %1883 = vrot.lane.b32.xlu0 %v1780, 20
      %v1884 = vpop.permute.xlu0 %1883
      %1885 = vrot.lane.b32.xlu0 %v1783, 20
      %v1886 = vpop.permute.xlu0 %1885
      %1887 = vrot.lane.b32.xlu0 %v1786, 20
      %v1888 = vpop.permute.xlu0 %1887
      %1889 = vrot.lane.b32.xlu0 %v1789, 20
      %v1890 = vpop.permute.xlu0 %1889
      %1891 = vrot.lane.b32.xlu0 %v1872, 20
      %v1892 = vpop.permute.xlu0 %1891
      %v1895 = vunpack.c.l.b16 %v1535
      %v1896 = vunpack.c.l.b16 %v1536
      %v1897 = vpack.c.b16 %v1896, %v1895
      %1898 = vrot.lane.b32.xlu0 %v1580, 24
      %v1899 = vpop.permute.xlu0 %1898
      %1900 = vrot.lane.b32.xlu0 %v1581, 24
      %v1901 = vpop.permute.xlu0 %1900
      %1902 = vrot.lane.b32.xlu0 %v1582, 24
      %v1903 = vpop.permute.xlu0 %1902
      %1904 = vrot.lane.b32.xlu0 %v1583, 24
      %v1905 = vpop.permute.xlu0 %1904
      %1906 = vrot.lane.b32.xlu0 %v1584, 24
      %v1907 = vpop.permute.xlu0 %1906
      %1908 = vrot.lane.b32.xlu0 %v1585, 24
      %v1909 = vpop.permute.xlu0 %1908
      %1910 = vrot.lane.b32.xlu0 %v1586, 24
      %v1911 = vpop.permute.xlu0 %1910
      %1912 = vrot.lane.b32.xlu0 %v1587, 24
      %v1913 = vpop.permute.xlu0 %1912
      %1914 = vrot.lane.b32.xlu0 %v1814, 24
      %v1915 = vpop.permute.xlu0 %1914
      %1916 = vrot.lane.b32.xlu0 %v1897, 24
      %v1917 = vpop.permute.xlu0 %1916
      %v1919 = vunpack.c.l.b16 %v1537
      %v1920 = vpack.c.b16 %v1919, %v1919
      %v1922 = vshrl.u32 %v1897, 16
      %v1924 = vshll.u32 %v1897, 16
      %v1926 = vrot.slane %v1924, 1
      %v1927 = vor.u32 %v1922, %v1926
      %v1929 = vshll.u32 %v1920, 16
      %v1931 = vrot.slane %v1929, 1
      %v1932 = vsel %vm1618, %v1927, %v1931
      %1933 = vrot.lane.b32.xlu0 %v1654, 28
      %v1934 = vpop.permute.xlu0 %1933
      %1935 = vrot.lane.b32.xlu0 %v1666, 28
      %v1936 = vpop.permute.xlu0 %1935
      %1937 = vrot.lane.b32.xlu0 %v1678, 28
      %v1938 = vpop.permute.xlu0 %1937
      %1939 = vrot.lane.b32.xlu0 %v1690, 28
      %v1940 = vpop.permute.xlu0 %1939
      %1941 = vrot.lane.b32.xlu0 %v1702, 28
      %v1942 = vpop.permute.xlu0 %1941
      %1943 = vrot.lane.b32.xlu0 %v1714, 28
      %v1944 = vpop.permute.xlu0 %1943
      %1945 = vrot.lane.b32.xlu0 %v1726, 28
      %v1946 = vpop.permute.xlu0 %1945
      %1947 = vrot.lane.b32.xlu0 %v1738, 28
      %v1948 = vpop.permute.xlu0 %1947
      %1949 = vrot.lane.b32.xlu0 %v1849, 28
      %v1950 = vpop.permute.xlu0 %1949
      %1951 = vrot.lane.b32.xlu0 %v1932, 28
      %v1952 = vpop.permute.xlu0 %1951
      %v1953 = vrot.slane %v1897, 1
      %v1954 = vrot.slane %v1920, 1
      %v1955 = vsel %vm1759, %v1953, %v1954
      %1956 = vrot.lane.b32.xlu0 %v1768, 32
      %v1957 = vpop.permute.xlu0 %1956
      %1958 = vrot.lane.b32.xlu0 %v1771, 32
      %v1959 = vpop.permute.xlu0 %1958
      %1960 = vrot.lane.b32.xlu0 %v1774, 32
      %v1961 = vpop.permute.xlu0 %1960
      %1962 = vrot.lane.b32.xlu0 %v1777, 32
      %v1963 = vpop.permute.xlu0 %1962
      %1964 = vrot.lane.b32.xlu0 %v1780, 32
      %v1965 = vpop.permute.xlu0 %1964
      %1966 = vrot.lane.b32.xlu0 %v1783, 32
      %v1967 = vpop.permute.xlu0 %1966
      %1968 = vrot.lane.b32.xlu0 %v1786, 32
      %v1969 = vpop.permute.xlu0 %1968
      %1970 = vrot.lane.b32.xlu0 %v1789, 32
      %v1971 = vpop.permute.xlu0 %1970
      %1972 = vrot.lane.b32.xlu0 %v1872, 32
      %v1973 = vpop.permute.xlu0 %1972
      %1974 = vrot.lane.b32.xlu0 %v1955, 32
      %v1975 = vpop.permute.xlu0 %1974
      %v1977 = vsel %vm1477, %v1578, %v1740
      %v1979 = vsel %vm1477, %v1579, %v1742
      %v1981 = vsel %vm1477, %v1580, %v1744
      %v1983 = vsel %vm1477, %v1581, %v1746
      %v1985 = vsel %vm1477, %v1582, %v1748
      %v1987 = vsel %vm1477, %v1583, %v1750
      %v1989 = vsel %vm1477, %v1584, %v1752
      %v1991 = vsel %vm1477, %v1585, %v1754
      %v1993 = vsel %vm1477, %v1586, %v1756
      %v1995 = vsel %vm1477, %v1587, %v1758
      %v1997 = vsel %vm514, %v1977, %v1791
      %v1999 = vsel %vm514, %v1979, %v1793
      %v2001 = vsel %vm514, %v1981, %v1795
      %v2003 = vsel %vm514, %v1983, %v1797
      %v2005 = vsel %vm514, %v1985, %v1799
      %v2007 = vsel %vm514, %v1987, %v1801
      %v2009 = vsel %vm514, %v1989, %v1803
      %v2011 = vsel %vm514, %v1991, %v1805
      %v2013 = vsel %vm514, %v1993, %v1807
      %v2015 = vsel %vm514, %v1995, %v1809
      %vm2016 = vcmask 97280
      %v2018 = vsel %vm2016, %v1997, %v1816
      %v2020 = vsel %vm2016, %v1999, %v1818
      %v2022 = vsel %vm2016, %v2001, %v1820
      %v2024 = vsel %vm2016, %v2003, %v1822
      %v2026 = vsel %vm2016, %v2005, %v1824
      %v2028 = vsel %vm2016, %v2007, %v1826
      %v2030 = vsel %vm2016, %v2009, %v1828
      %v2032 = vsel %vm2016, %v2011, %v1830
      %v2034 = vsel %vm2016, %v2013, %v1832
      %v2036 = vsel %vm2016, %v2015, %v1834
      %vm2037 = vcmask 130048
      %v2039 = vsel %vm2037, %v2018, %v1851
      %v2041 = vsel %vm2037, %v2020, %v1853
      %v2043 = vsel %vm2037, %v2022, %v1855
      %v2045 = vsel %vm2037, %v2024, %v1857
      %v2047 = vsel %vm2037, %v2026, %v1859
      %v2049 = vsel %vm2037, %v2028, %v1861
      %v2051 = vsel %vm2037, %v2030, %v1863
      %v2053 = vsel %vm2037, %v2032, %v1865
      %v2055 = vsel %vm2037, %v2034, %v1867
      %v2057 = vsel %vm2037, %v2036, %v1869
      %vm2058 = vcmask 162816
      %v2060 = vsel %vm2058, %v2039, %v1874
      %v2062 = vsel %vm2058, %v2041, %v1876
      %v2064 = vsel %vm2058, %v2043, %v1878
      %v2066 = vsel %vm2058, %v2045, %v1880
      %v2068 = vsel %vm2058, %v2047, %v1882
      %v2070 = vsel %vm2058, %v2049, %v1884
      %v2072 = vsel %vm2058, %v2051, %v1886
      %v2074 = vsel %vm2058, %v2053, %v1888
      %v2076 = vsel %vm2058, %v2055, %v1890
      %v2078 = vsel %vm2058, %v2057, %v1892
      %vm2079 = vcmask 195584
      %v2081 = vsel %vm2079, %v2060, %v1899
      %v2083 = vsel %vm2079, %v2062, %v1901
      %v2085 = vsel %vm2079, %v2064, %v1903
      %v2087 = vsel %vm2079, %v2066, %v1905
      %v2089 = vsel %vm2079, %v2068, %v1907
      %v2091 = vsel %vm2079, %v2070, %v1909
      %v2093 = vsel %vm2079, %v2072, %v1911
      %v2095 = vsel %vm2079, %v2074, %v1913
      %v2097 = vsel %vm2079, %v2076, %v1915
      %v2099 = vsel %vm2079, %v2078, %v1917
      %vm2100 = vcmask 228352
      %v2102 = vsel %vm2100, %v2081, %v1934
      %v2104 = vsel %vm2100, %v2083, %v1936
      %v2106 = vsel %vm2100, %v2085, %v1938
      %v2108 = vsel %vm2100, %v2087, %v1940
      %v2110 = vsel %vm2100, %v2089, %v1942
      %v2112 = vsel %vm2100, %v2091, %v1944
      %v2114 = vsel %vm2100, %v2093, %v1946
      %v2116 = vsel %vm2100, %v2095, %v1948
      %v2118 = vsel %vm2100, %v2097, %v1950
      %v2120 = vsel %vm2100, %v2099, %v1952
      %vm2121 = vcmask 261120
      %v2123 = vsel %vm2121, %v2102, %v1957
      %v2125 = vsel %vm2121, %v2104, %v1959
      %v2127 = vsel %vm2121, %v2106, %v1961
      %v2129 = vsel %vm2121, %v2108, %v1963
      %v2131 = vsel %vm2121, %v2110, %v1965
      %v2133 = vsel %vm2121, %v2112, %v1967
      %v2135 = vsel %vm2121, %v2114, %v1969
      %v2137 = vsel %vm2121, %v2116, %v1971
      %v2139 = vsel %vm2121, %v2118, %v1973
      %v2141 = vsel %vm2121, %v2120, %v1975
      %v2142 = vld [vmem:[#allocation2] sm:$0xff]
      %v2143 = vld [vmem:[#allocation2 + $0x8] sm:$0xff]
      %v2144 = vld [vmem:[#allocation2 + $0x10] sm:$0x3]
      %v2145 = vld [vmem:[#allocation2 + $0x18] sm:$0xff]
      %v2146 = vld [vmem:[#allocation2 + $0x20] sm:$0xff]
      %v2147 = vld [vmem:[#allocation2 + $0x28] sm:$0x3]
      %v2148 = vld [vmem:[#allocation2 + $0x30] sm:$0xff]
      %v2149 = vld [vmem:[#allocation2 + $0x38] sm:$0xff]
      %v2150 = vld [vmem:[#allocation2 + $0x40] sm:$0x3]
      %v2151 = vld [vmem:[#allocation2 + $0x48] sm:$0xff]
      %v2152 = vld [vmem:[#allocation2 + $0x50] sm:$0xff]
      %v2153 = vld [vmem:[#allocation2 + $0x58] sm:$0x3]
      %v2154 = vld [vmem:[#allocation2 + $0x60] sm:$0xff]
      %v2155 = vld [vmem:[#allocation2 + $0x68] sm:$0xff]
      %v2156 = vld [vmem:[#allocation2 + $0x70] sm:$0x3]
      %v2157 = vld [vmem:[#allocation2 + $0x78] sm:$0xff]
      %v2158 = vld [vmem:[#allocation2 + $0x80] sm:$0xff]
      %v2159 = vld [vmem:[#allocation2 + $0x88] sm:$0x3]
      %v2160 = vld [vmem:[#allocation2 + $0x90] sm:$0xff]
      %v2161 = vld [vmem:[#allocation2 + $0x98] sm:$0xff]
      %v2162 = vld [vmem:[#allocation2 + $0xa0] sm:$0x3]
      %v2163 = vld [vmem:[#allocation2 + $0xa8] sm:$0xff]
      %v2164 = vld [vmem:[#allocation2 + $0xb0] sm:$0xff]
      %v2165 = vld [vmem:[#allocation2 + $0xb8] sm:$0x3]
      %v2166 = vld [vmem:[#allocation2 + $0xc0] sm:$0xff]
      %v2167 = vld [vmem:[#allocation2 + $0xc8] sm:$0xff]
      %v2168 = vld [vmem:[#allocation2 + $0xd0] sm:$0x3]
      %v2169 = vld [vmem:[#allocation2 + $0xd8] sm:$0xff]
      %v2170 = vld [vmem:[#allocation2 + $0xe0] sm:$0xff]
      %v2171 = vld [vmem:[#allocation2 + $0xe8] sm:$0x3]
      %v2172 = vld [vmem:[#allocation2 + $0xf0] sm:$0xff]
      %v2173 = vld [vmem:[#allocation2 + $0xf8] sm:$0xff]
      %v2174 = vld [vmem:[#allocation2 + $0x100] sm:$0x3]
      %v2175 = vld [vmem:[#allocation2 + $0x108] sm:$0xff]
      %v2176 = vld [vmem:[#allocation2 + $0x110] sm:$0xff]
      %v2177 = vld [vmem:[#allocation2 + $0x118] sm:$0x3]
      %v2208 = vrot.slane %v2142, 1
      %v2209 = vrot.slane %v2143, 1
      %v2210 = vsel %vm725, %v2208, %v2209
      %v2211 = vrot.slane %v2144, 1
      %v2212 = vsel %vm725, %v2209, %v2211
      %v2213 = vrot.slane %v2145, 1
      %v2214 = vrot.slane %v2146, 1
      %v2215 = vsel %vm725, %v2213, %v2214
      %v2216 = vrot.slane %v2147, 1
      %v2217 = vsel %vm725, %v2214, %v2216
      %v2218 = vrot.slane %v2148, 1
      %v2219 = vrot.slane %v2149, 1
      %v2220 = vsel %vm725, %v2218, %v2219
      %v2221 = vrot.slane %v2150, 1
      %v2222 = vsel %vm725, %v2219, %v2221
      %v2223 = vrot.slane %v2151, 1
      %v2224 = vrot.slane %v2152, 1
      %v2225 = vsel %vm725, %v2223, %v2224
      %v2226 = vrot.slane %v2153, 1
      %v2227 = vsel %vm725, %v2224, %v2226
      %v2228 = vrot.slane %v2154, 1
      %v2229 = vrot.slane %v2155, 1
      %v2230 = vsel %vm725, %v2228, %v2229
      %v2231 = vrot.slane %v2156, 1
      %v2232 = vsel %vm725, %v2229, %v2231
      %v2233 = vrot.slane %v2157, 1
      %v2234 = vrot.slane %v2158, 1
      %v2235 = vsel %vm725, %v2233, %v2234
      %v2236 = vrot.slane %v2159, 1
      %v2237 = vsel %vm725, %v2234, %v2236
      %v2238 = vrot.slane %v2160, 1
      %v2239 = vrot.slane %v2161, 1
      %v2240 = vsel %vm725, %v2238, %v2239
      %v2241 = vrot.slane %v2162, 1
      %v2242 = vsel %vm725, %v2239, %v2241
      %v2243 = vrot.slane %v2163, 1
      %v2244 = vrot.slane %v2164, 1
      %v2245 = vsel %vm725, %v2243, %v2244
      %v2246 = vrot.slane %v2165, 1
      %v2247 = vsel %vm725, %v2244, %v2246
      %v2248 = vrot.slane %v2166, 1
      %v2249 = vrot.slane %v2167, 1
      %v2250 = vsel %vm725, %v2248, %v2249
      %v2251 = vrot.slane %v2168, 1
      %v2252 = vsel %vm725, %v2249, %v2251
      %v2253 = vrot.slane %v2169, 1
      %v2254 = vrot.slane %v2170, 1
      %v2255 = vsel %vm725, %v2253, %v2254
      %v2256 = vrot.slane %v2171, 1
      %v2257 = vsel %vm725, %v2254, %v2256
      %2258 = vrot.lane.b32.xlu0 %v2210, 4
      %v2259 = vpop.permute.xlu0 %2258
      %2260 = vrot.lane.b32.xlu0 %v2212, 4
      %v2261 = vpop.permute.xlu0 %2260
      %2262 = vrot.lane.b32.xlu0 %v2215, 4
      %v2263 = vpop.permute.xlu0 %2262
      %2264 = vrot.lane.b32.xlu0 %v2217, 4
      %v2265 = vpop.permute.xlu0 %2264
      %2266 = vrot.lane.b32.xlu0 %v2220, 4
      %v2267 = vpop.permute.xlu0 %2266
      %2268 = vrot.lane.b32.xlu0 %v2222, 4
      %v2269 = vpop.permute.xlu0 %2268
      %2270 = vrot.lane.b32.xlu0 %v2225, 4
      %v2271 = vpop.permute.xlu0 %2270
      %2272 = vrot.lane.b32.xlu0 %v2227, 4
      %v2273 = vpop.permute.xlu0 %2272
      %2274 = vrot.lane.b32.xlu0 %v2230, 4
      %v2275 = vpop.permute.xlu0 %2274
      %2276 = vrot.lane.b32.xlu0 %v2232, 4
      %v2277 = vpop.permute.xlu0 %2276
      %2278 = vrot.lane.b32.xlu0 %v2235, 4
      %v2279 = vpop.permute.xlu0 %2278
      %2280 = vrot.lane.b32.xlu0 %v2237, 4
      %v2281 = vpop.permute.xlu0 %2280
      %2282 = vrot.lane.b32.xlu0 %v2240, 4
      %v2283 = vpop.permute.xlu0 %2282
      %2284 = vrot.lane.b32.xlu0 %v2242, 4
      %v2285 = vpop.permute.xlu0 %2284
      %2286 = vrot.lane.b32.xlu0 %v2245, 4
      %v2287 = vpop.permute.xlu0 %2286
      %2288 = vrot.lane.b32.xlu0 %v2247, 4
      %v2289 = vpop.permute.xlu0 %2288
      %2290 = vrot.lane.b32.xlu0 %v2250, 4
      %v2291 = vpop.permute.xlu0 %2290
      %2292 = vrot.lane.b32.xlu0 %v2252, 4
      %v2293 = vpop.permute.xlu0 %2292
      %2294 = vrot.lane.b32.xlu0 %v2255, 4
      %v2295 = vpop.permute.xlu0 %2294
      %2296 = vrot.lane.b32.xlu0 %v2257, 4
      %v2297 = vpop.permute.xlu0 %2296
      %v2318 = vrot.slane %v2142, 2
      %v2319 = vrot.slane %v2143, 2
      %v2320 = vsel %vm1221, %v2318, %v2319
      %v2321 = vrot.slane %v2144, 2
      %v2322 = vsel %vm1221, %v2319, %v2321
      %v2323 = vrot.slane %v2145, 2
      %v2324 = vrot.slane %v2146, 2
      %v2325 = vsel %vm1221, %v2323, %v2324
      %v2326 = vrot.slane %v2147, 2
      %v2327 = vsel %vm1221, %v2324, %v2326
      %v2328 = vrot.slane %v2148, 2
      %v2329 = vrot.slane %v2149, 2
      %v2330 = vsel %vm1221, %v2328, %v2329
      %v2331 = vrot.slane %v2150, 2
      %v2332 = vsel %vm1221, %v2329, %v2331
      %v2333 = vrot.slane %v2151, 2
      %v2334 = vrot.slane %v2152, 2
      %v2335 = vsel %vm1221, %v2333, %v2334
      %v2336 = vrot.slane %v2153, 2
      %v2337 = vsel %vm1221, %v2334, %v2336
      %v2338 = vrot.slane %v2154, 2
      %v2339 = vrot.slane %v2155, 2
      %v2340 = vsel %vm1221, %v2338, %v2339
      %v2341 = vrot.slane %v2156, 2
      %v2342 = vsel %vm1221, %v2339, %v2341
      %v2343 = vrot.slane %v2157, 2
      %v2344 = vrot.slane %v2158, 2
      %v2345 = vsel %vm1221, %v2343, %v2344
      %v2346 = vrot.slane %v2159, 2
      %v2347 = vsel %vm1221, %v2344, %v2346
      %v2348 = vrot.slane %v2160, 2
      %v2349 = vrot.slane %v2161, 2
      %v2350 = vsel %vm1221, %v2348, %v2349
      %v2351 = vrot.slane %v2162, 2
      %v2352 = vsel %vm1221, %v2349, %v2351
      %v2353 = vrot.slane %v2163, 2
      %v2354 = vrot.slane %v2164, 2
      %v2355 = vsel %vm1221, %v2353, %v2354
      %v2356 = vrot.slane %v2165, 2
      %v2357 = vsel %vm1221, %v2354, %v2356
      %v2358 = vrot.slane %v2166, 2
      %v2359 = vrot.slane %v2167, 2
      %v2360 = vsel %vm1221, %v2358, %v2359
      %v2361 = vrot.slane %v2168, 2
      %v2362 = vsel %vm1221, %v2359, %v2361
      %v2363 = vrot.slane %v2169, 2
      %v2364 = vrot.slane %v2170, 2
      %v2365 = vsel %vm1221, %v2363, %v2364
      %v2366 = vrot.slane %v2171, 2
      %v2367 = vsel %vm1221, %v2364, %v2366
      %2368 = vrot.lane.b32.xlu0 %v2320, 8
      %v2369 = vpop.permute.xlu0 %2368
      %2370 = vrot.lane.b32.xlu0 %v2322, 8
      %v2371 = vpop.permute.xlu0 %2370
      %2372 = vrot.lane.b32.xlu0 %v2325, 8
      %v2373 = vpop.permute.xlu0 %2372
      %2374 = vrot.lane.b32.xlu0 %v2327, 8
      %v2375 = vpop.permute.xlu0 %2374
      %2376 = vrot.lane.b32.xlu0 %v2330, 8
      %v2377 = vpop.permute.xlu0 %2376
      %2378 = vrot.lane.b32.xlu0 %v2332, 8
      %v2379 = vpop.permute.xlu0 %2378
      %2380 = vrot.lane.b32.xlu0 %v2335, 8
      %v2381 = vpop.permute.xlu0 %2380
      %2382 = vrot.lane.b32.xlu0 %v2337, 8
      %v2383 = vpop.permute.xlu0 %2382
      %2384 = vrot.lane.b32.xlu0 %v2340, 8
      %v2385 = vpop.permute.xlu0 %2384
      %2386 = vrot.lane.b32.xlu0 %v2342, 8
      %v2387 = vpop.permute.xlu0 %2386
      %2388 = vrot.lane.b32.xlu0 %v2345, 8
      %v2389 = vpop.permute.xlu0 %2388
      %2390 = vrot.lane.b32.xlu0 %v2347, 8
      %v2391 = vpop.permute.xlu0 %2390
      %2392 = vrot.lane.b32.xlu0 %v2350, 8
      %v2393 = vpop.permute.xlu0 %2392
      %2394 = vrot.lane.b32.xlu0 %v2352, 8
      %v2395 = vpop.permute.xlu0 %2394
      %2396 = vrot.lane.b32.xlu0 %v2355, 8
      %v2397 = vpop.permute.xlu0 %2396
      %2398 = vrot.lane.b32.xlu0 %v2357, 8
      %v2399 = vpop.permute.xlu0 %2398
      %2400 = vrot.lane.b32.xlu0 %v2360, 8
      %v2401 = vpop.permute.xlu0 %2400
      %2402 = vrot.lane.b32.xlu0 %v2362, 8
      %v2403 = vpop.permute.xlu0 %2402
      %2404 = vrot.lane.b32.xlu0 %v2365, 8
      %v2405 = vpop.permute.xlu0 %2404
      %2406 = vrot.lane.b32.xlu0 %v2367, 8
      %v2407 = vpop.permute.xlu0 %2406
      %2430 = vrot.lane.b32.xlu0 %v2145, 12
      %v2431 = vpop.permute.xlu0 %2430
      %2432 = vrot.lane.b32.xlu0 %v2146, 12
      %v2433 = vpop.permute.xlu0 %2432
      %2434 = vrot.lane.b32.xlu0 %v2148, 12
      %v2435 = vpop.permute.xlu0 %2434
      %2436 = vrot.lane.b32.xlu0 %v2149, 12
      %v2437 = vpop.permute.xlu0 %2436
      %2438 = vrot.lane.b32.xlu0 %v2151, 12
      %v2439 = vpop.permute.xlu0 %2438
      %2440 = vrot.lane.b32.xlu0 %v2152, 12
      %v2441 = vpop.permute.xlu0 %2440
      %2442 = vrot.lane.b32.xlu0 %v2154, 12
      %v2443 = vpop.permute.xlu0 %2442
      %2444 = vrot.lane.b32.xlu0 %v2155, 12
      %v2445 = vpop.permute.xlu0 %2444
      %2446 = vrot.lane.b32.xlu0 %v2157, 12
      %v2447 = vpop.permute.xlu0 %2446
      %2448 = vrot.lane.b32.xlu0 %v2158, 12
      %v2449 = vpop.permute.xlu0 %2448
      %2450 = vrot.lane.b32.xlu0 %v2160, 12
      %v2451 = vpop.permute.xlu0 %2450
      %2452 = vrot.lane.b32.xlu0 %v2161, 12
      %v2453 = vpop.permute.xlu0 %2452
      %2454 = vrot.lane.b32.xlu0 %v2163, 12
      %v2455 = vpop.permute.xlu0 %2454
      %2456 = vrot.lane.b32.xlu0 %v2164, 12
      %v2457 = vpop.permute.xlu0 %2456
      %2458 = vrot.lane.b32.xlu0 %v2166, 12
      %v2459 = vpop.permute.xlu0 %2458
      %2460 = vrot.lane.b32.xlu0 %v2167, 12
      %v2461 = vpop.permute.xlu0 %2460
      %2462 = vrot.lane.b32.xlu0 %v2169, 12
      %v2463 = vpop.permute.xlu0 %2462
      %2464 = vrot.lane.b32.xlu0 %v2170, 12
      %v2465 = vpop.permute.xlu0 %2464
      %2466 = vrot.lane.b32.xlu0 %v2172, 12
      %v2467 = vpop.permute.xlu0 %2466
      %2468 = vrot.lane.b32.xlu0 %v2173, 12
      %v2469 = vpop.permute.xlu0 %2468
      %v2491 = vrot.slane %v2172, 1
      %v2492 = vrot.slane %v2173, 1
      %v2493 = vsel %vm725, %v2491, %v2492
      %v2494 = vrot.slane %v2174, 1
      %v2495 = vsel %vm725, %v2492, %v2494
      %2496 = vrot.lane.b32.xlu0 %v2215, 16
      %v2497 = vpop.permute.xlu0 %2496
      %2498 = vrot.lane.b32.xlu0 %v2217, 16
      %v2499 = vpop.permute.xlu0 %2498
      %2500 = vrot.lane.b32.xlu0 %v2220, 16
      %v2501 = vpop.permute.xlu0 %2500
      %2502 = vrot.lane.b32.xlu0 %v2222, 16
      %v2503 = vpop.permute.xlu0 %2502
      %2504 = vrot.lane.b32.xlu0 %v2225, 16
      %v2505 = vpop.permute.xlu0 %2504
      %2506 = vrot.lane.b32.xlu0 %v2227, 16
      %v2507 = vpop.permute.xlu0 %2506
      %2508 = vrot.lane.b32.xlu0 %v2230, 16
      %v2509 = vpop.permute.xlu0 %2508
      %2510 = vrot.lane.b32.xlu0 %v2232, 16
      %v2511 = vpop.permute.xlu0 %2510
      %2512 = vrot.lane.b32.xlu0 %v2235, 16
      %v2513 = vpop.permute.xlu0 %2512
      %2514 = vrot.lane.b32.xlu0 %v2237, 16
      %v2515 = vpop.permute.xlu0 %2514
      %2516 = vrot.lane.b32.xlu0 %v2240, 16
      %v2517 = vpop.permute.xlu0 %2516
      %2518 = vrot.lane.b32.xlu0 %v2242, 16
      %v2519 = vpop.permute.xlu0 %2518
      %2520 = vrot.lane.b32.xlu0 %v2245, 16
      %v2521 = vpop.permute.xlu0 %2520
      %2522 = vrot.lane.b32.xlu0 %v2247, 16
      %v2523 = vpop.permute.xlu0 %2522
      %2524 = vrot.lane.b32.xlu0 %v2250, 16
      %v2525 = vpop.permute.xlu0 %2524
      %2526 = vrot.lane.b32.xlu0 %v2252, 16
      %v2527 = vpop.permute.xlu0 %2526
      %2528 = vrot.lane.b32.xlu0 %v2255, 16
      %v2529 = vpop.permute.xlu0 %2528
      %2530 = vrot.lane.b32.xlu0 %v2257, 16
      %v2531 = vpop.permute.xlu0 %2530
      %2532 = vrot.lane.b32.xlu0 %v2493, 16
      %v2533 = vpop.permute.xlu0 %2532
      %2534 = vrot.lane.b32.xlu0 %v2495, 16
      %v2535 = vpop.permute.xlu0 %2534
      %v2556 = vrot.slane %v2172, 2
      %v2557 = vrot.slane %v2173, 2
      %v2558 = vsel %vm1221, %v2556, %v2557
      %v2559 = vrot.slane %v2174, 2
      %v2560 = vsel %vm1221, %v2557, %v2559
      %2561 = vrot.lane.b32.xlu0 %v2325, 20
      %v2562 = vpop.permute.xlu0 %2561
      %2563 = vrot.lane.b32.xlu0 %v2327, 20
      %v2564 = vpop.permute.xlu0 %2563
      %2565 = vrot.lane.b32.xlu0 %v2330, 20
      %v2566 = vpop.permute.xlu0 %2565
      %2567 = vrot.lane.b32.xlu0 %v2332, 20
      %v2568 = vpop.permute.xlu0 %2567
      %2569 = vrot.lane.b32.xlu0 %v2335, 20
      %v2570 = vpop.permute.xlu0 %2569
      %2571 = vrot.lane.b32.xlu0 %v2337, 20
      %v2572 = vpop.permute.xlu0 %2571
      %2573 = vrot.lane.b32.xlu0 %v2340, 20
      %v2574 = vpop.permute.xlu0 %2573
      %2575 = vrot.lane.b32.xlu0 %v2342, 20
      %v2576 = vpop.permute.xlu0 %2575
      %2577 = vrot.lane.b32.xlu0 %v2345, 20
      %v2578 = vpop.permute.xlu0 %2577
      %2579 = vrot.lane.b32.xlu0 %v2347, 20
      %v2580 = vpop.permute.xlu0 %2579
      %2581 = vrot.lane.b32.xlu0 %v2350, 20
      %v2582 = vpop.permute.xlu0 %2581
      %2583 = vrot.lane.b32.xlu0 %v2352, 20
      %v2584 = vpop.permute.xlu0 %2583
      %2585 = vrot.lane.b32.xlu0 %v2355, 20
      %v2586 = vpop.permute.xlu0 %2585
      %2587 = vrot.lane.b32.xlu0 %v2357, 20
      %v2588 = vpop.permute.xlu0 %2587
      %2589 = vrot.lane.b32.xlu0 %v2360, 20
      %v2590 = vpop.permute.xlu0 %2589
      %2591 = vrot.lane.b32.xlu0 %v2362, 20
      %v2592 = vpop.permute.xlu0 %2591
      %2593 = vrot.lane.b32.xlu0 %v2365, 20
      %v2594 = vpop.permute.xlu0 %2593
      %2595 = vrot.lane.b32.xlu0 %v2367, 20
      %v2596 = vpop.permute.xlu0 %2595
      %2597 = vrot.lane.b32.xlu0 %v2558, 20
      %v2598 = vpop.permute.xlu0 %2597
      %2599 = vrot.lane.b32.xlu0 %v2560, 20
      %v2600 = vpop.permute.xlu0 %2599
      %2623 = vrot.lane.b32.xlu0 %v2148, 24
      %v2624 = vpop.permute.xlu0 %2623
      %2625 = vrot.lane.b32.xlu0 %v2149, 24
      %v2626 = vpop.permute.xlu0 %2625
      %2627 = vrot.lane.b32.xlu0 %v2151, 24
      %v2628 = vpop.permute.xlu0 %2627
      %2629 = vrot.lane.b32.xlu0 %v2152, 24
      %v2630 = vpop.permute.xlu0 %2629
      %2631 = vrot.lane.b32.xlu0 %v2154, 24
      %v2632 = vpop.permute.xlu0 %2631
      %2633 = vrot.lane.b32.xlu0 %v2155, 24
      %v2634 = vpop.permute.xlu0 %2633
      %2635 = vrot.lane.b32.xlu0 %v2157, 24
      %v2636 = vpop.permute.xlu0 %2635
      %2637 = vrot.lane.b32.xlu0 %v2158, 24
      %v2638 = vpop.permute.xlu0 %2637
      %2639 = vrot.lane.b32.xlu0 %v2160, 24
      %v2640 = vpop.permute.xlu0 %2639
      %2641 = vrot.lane.b32.xlu0 %v2161, 24
      %v2642 = vpop.permute.xlu0 %2641
      %2643 = vrot.lane.b32.xlu0 %v2163, 24
      %v2644 = vpop.permute.xlu0 %2643
      %2645 = vrot.lane.b32.xlu0 %v2164, 24
      %v2646 = vpop.permute.xlu0 %2645
      %2647 = vrot.lane.b32.xlu0 %v2166, 24
      %v2648 = vpop.permute.xlu0 %2647
      %2649 = vrot.lane.b32.xlu0 %v2167, 24
      %v2650 = vpop.permute.xlu0 %2649
      %2651 = vrot.lane.b32.xlu0 %v2169, 24
      %v2652 = vpop.permute.xlu0 %2651
      %2653 = vrot.lane.b32.xlu0 %v2170, 24
      %v2654 = vpop.permute.xlu0 %2653
      %2655 = vrot.lane.b32.xlu0 %v2172, 24
      %v2656 = vpop.permute.xlu0 %2655
      %2657 = vrot.lane.b32.xlu0 %v2173, 24
      %v2658 = vpop.permute.xlu0 %2657
      %2659 = vrot.lane.b32.xlu0 %v2175, 24
      %v2660 = vpop.permute.xlu0 %2659
      %2661 = vrot.lane.b32.xlu0 %v2176, 24
      %v2662 = vpop.permute.xlu0 %2661
      %v2684 = vrot.slane %v2175, 1
      %v2685 = vrot.slane %v2176, 1
      %v2686 = vsel %vm725, %v2684, %v2685
      %v2687 = vrot.slane %v2177, 1
      %v2688 = vsel %vm725, %v2685, %v2687
      %2689 = vrot.lane.b32.xlu0 %v2220, 28
      %v2690 = vpop.permute.xlu0 %2689
      %2691 = vrot.lane.b32.xlu0 %v2222, 28
      %v2692 = vpop.permute.xlu0 %2691
      %2693 = vrot.lane.b32.xlu0 %v2225, 28
      %v2694 = vpop.permute.xlu0 %2693
      %2695 = vrot.lane.b32.xlu0 %v2227, 28
      %v2696 = vpop.permute.xlu0 %2695
      %2697 = vrot.lane.b32.xlu0 %v2230, 28
      %v2698 = vpop.permute.xlu0 %2697
      %2699 = vrot.lane.b32.xlu0 %v2232, 28
      %v2700 = vpop.permute.xlu0 %2699
      %2701 = vrot.lane.b32.xlu0 %v2235, 28
      %v2702 = vpop.permute.xlu0 %2701
      %2703 = vrot.lane.b32.xlu0 %v2237, 28
      %v2704 = vpop.permute.xlu0 %2703
      %2705 = vrot.lane.b32.xlu0 %v2240, 28
      %v2706 = vpop.permute.xlu0 %2705
      %2707 = vrot.lane.b32.xlu0 %v2242, 28
      %v2708 = vpop.permute.xlu0 %2707
      %2709 = vrot.lane.b32.xlu0 %v2245, 28
      %v2710 = vpop.permute.xlu0 %2709
      %2711 = vrot.lane.b32.xlu0 %v2247, 28
      %v2712 = vpop.permute.xlu0 %2711
      %2713 = vrot.lane.b32.xlu0 %v2250, 28
      %v2714 = vpop.permute.xlu0 %2713
      %2715 = vrot.lane.b32.xlu0 %v2252, 28
      %v2716 = vpop.permute.xlu0 %2715
      %2717 = vrot.lane.b32.xlu0 %v2255, 28
      %v2718 = vpop.permute.xlu0 %2717
      %2719 = vrot.lane.b32.xlu0 %v2257, 28
      %v2720 = vpop.permute.xlu0 %2719
      %2721 = vrot.lane.b32.xlu0 %v2493, 28
      %v2722 = vpop.permute.xlu0 %2721
      %2723 = vrot.lane.b32.xlu0 %v2495, 28
      %v2724 = vpop.permute.xlu0 %2723
      %2725 = vrot.lane.b32.xlu0 %v2686, 28
      %v2726 = vpop.permute.xlu0 %2725
      %2727 = vrot.lane.b32.xlu0 %v2688, 28
      %v2728 = vpop.permute.xlu0 %2727
      %v2749 = vrot.slane %v2175, 2
      %v2750 = vrot.slane %v2176, 2
      %v2751 = vsel %vm1221, %v2749, %v2750
      %v2752 = vrot.slane %v2177, 2
      %v2753 = vsel %vm1221, %v2750, %v2752
      %2754 = vrot.lane.b32.xlu0 %v2330, 32
      %v2755 = vpop.permute.xlu0 %2754
      %2756 = vrot.lane.b32.xlu0 %v2332, 32
      %v2757 = vpop.permute.xlu0 %2756
      %2758 = vrot.lane.b32.xlu0 %v2335, 32
      %v2759 = vpop.permute.xlu0 %2758
      %2760 = vrot.lane.b32.xlu0 %v2337, 32
      %v2761 = vpop.permute.xlu0 %2760
      %2762 = vrot.lane.b32.xlu0 %v2340, 32
      %v2763 = vpop.permute.xlu0 %2762
      %2764 = vrot.lane.b32.xlu0 %v2342, 32
      %v2765 = vpop.permute.xlu0 %2764
      %2766 = vrot.lane.b32.xlu0 %v2345, 32
      %v2767 = vpop.permute.xlu0 %2766
      %2768 = vrot.lane.b32.xlu0 %v2347, 32
      %v2769 = vpop.permute.xlu0 %2768
      %2770 = vrot.lane.b32.xlu0 %v2350, 32
      %v2771 = vpop.permute.xlu0 %2770
      %2772 = vrot.lane.b32.xlu0 %v2352, 32
      %v2773 = vpop.permute.xlu0 %2772
      %2774 = vrot.lane.b32.xlu0 %v2355, 32
      %v2775 = vpop.permute.xlu0 %2774
      %2776 = vrot.lane.b32.xlu0 %v2357, 32
      %v2777 = vpop.permute.xlu0 %2776
      %2778 = vrot.lane.b32.xlu0 %v2360, 32
      %v2779 = vpop.permute.xlu0 %2778
      %2780 = vrot.lane.b32.xlu0 %v2362, 32
      %v2781 = vpop.permute.xlu0 %2780
      %2782 = vrot.lane.b32.xlu0 %v2365, 32
      %v2783 = vpop.permute.xlu0 %2782
      %2784 = vrot.lane.b32.xlu0 %v2367, 32
      %v2785 = vpop.permute.xlu0 %2784
      %2786 = vrot.lane.b32.xlu0 %v2558, 32
      %v2787 = vpop.permute.xlu0 %2786
      %2788 = vrot.lane.b32.xlu0 %v2560, 32
      %v2789 = vpop.permute.xlu0 %2788
      %2790 = vrot.lane.b32.xlu0 %v2751, 32
      %v2791 = vpop.permute.xlu0 %2790
      %2792 = vrot.lane.b32.xlu0 %v2753, 32
      %v2793 = vpop.permute.xlu0 %2792
      %v2814 = vsel %vm1477, %v2142, %v2259
      %v2815 = vsel %vm1477, %v2143, %v2261
      %v2816 = vsel %vm1477, %v2145, %v2263
      %v2817 = vsel %vm1477, %v2146, %v2265
      %v2818 = vsel %vm1477, %v2148, %v2267
      %v2819 = vsel %vm1477, %v2149, %v2269
      %v2820 = vsel %vm1477, %v2151, %v2271
      %v2821 = vsel %vm1477, %v2152, %v2273
      %v2822 = vsel %vm1477, %v2154, %v2275
      %v2823 = vsel %vm1477, %v2155, %v2277
      %v2824 = vsel %vm1477, %v2157, %v2279
      %v2825 = vsel %vm1477, %v2158, %v2281
      %v2826 = vsel %vm1477, %v2160, %v2283
      %v2827 = vsel %vm1477, %v2161, %v2285
      %v2828 = vsel %vm1477, %v2163, %v2287
      %v2829 = vsel %vm1477, %v2164, %v2289
      %v2830 = vsel %vm1477, %v2166, %v2291
      %v2831 = vsel %vm1477, %v2167, %v2293
      %v2832 = vsel %vm1477, %v2169, %v2295
      %v2833 = vsel %vm1477, %v2170, %v2297
      %v2834 = vsel %vm514, %v2814, %v2369
      %v2835 = vsel %vm514, %v2815, %v2371
      %v2836 = vsel %vm514, %v2816, %v2373
      %v2837 = vsel %vm514, %v2817, %v2375
      %v2838 = vsel %vm514, %v2818, %v2377
      %v2839 = vsel %vm514, %v2819, %v2379
      %v2840 = vsel %vm514, %v2820, %v2381
      %v2841 = vsel %vm514, %v2821, %v2383
      %v2842 = vsel %vm514, %v2822, %v2385
      %v2843 = vsel %vm514, %v2823, %v2387
      %v2844 = vsel %vm514, %v2824, %v2389
      %v2845 = vsel %vm514, %v2825, %v2391
      %v2846 = vsel %vm514, %v2826, %v2393
      %v2847 = vsel %vm514, %v2827, %v2395
      %v2848 = vsel %vm514, %v2828, %v2397
      %v2849 = vsel %vm514, %v2829, %v2399
      %v2850 = vsel %vm514, %v2830, %v2401
      %v2851 = vsel %vm514, %v2831, %v2403
      %v2852 = vsel %vm514, %v2832, %v2405
      %v2853 = vsel %vm514, %v2833, %v2407
      %v2854 = vsel %vm2016, %v2834, %v2431
      %v2855 = vsel %vm2016, %v2835, %v2433
      %v2856 = vsel %vm2016, %v2836, %v2435
      %v2857 = vsel %vm2016, %v2837, %v2437
      %v2858 = vsel %vm2016, %v2838, %v2439
      %v2859 = vsel %vm2016, %v2839, %v2441
      %v2860 = vsel %vm2016, %v2840, %v2443
      %v2861 = vsel %vm2016, %v2841, %v2445
      %v2862 = vsel %vm2016, %v2842, %v2447
      %v2863 = vsel %vm2016, %v2843, %v2449
      %v2864 = vsel %vm2016, %v2844, %v2451
      %v2865 = vsel %vm2016, %v2845, %v2453
      %v2866 = vsel %vm2016, %v2846, %v2455
      %v2867 = vsel %vm2016, %v2847, %v2457
      %v2868 = vsel %vm2016, %v2848, %v2459
      %v2869 = vsel %vm2016, %v2849, %v2461
      %v2870 = vsel %vm2016, %v2850, %v2463
      %v2871 = vsel %vm2016, %v2851, %v2465
      %v2872 = vsel %vm2016, %v2852, %v2467
      %v2873 = vsel %vm2016, %v2853, %v2469
      %v2874 = vsel %vm2037, %v2854, %v2497
      %v2875 = vsel %vm2037, %v2855, %v2499
      %v2876 = vsel %vm2037, %v2856, %v2501
      %v2877 = vsel %vm2037, %v2857, %v2503
      %v2878 = vsel %vm2037, %v2858, %v2505
      %v2879 = vsel %vm2037, %v2859, %v2507
      %v2880 = vsel %vm2037, %v2860, %v2509
      %v2881 = vsel %vm2037, %v2861, %v2511
      %v2882 = vsel %vm2037, %v2862, %v2513
      %v2883 = vsel %vm2037, %v2863, %v2515
      %v2884 = vsel %vm2037, %v2864, %v2517
      %v2885 = vsel %vm2037, %v2865, %v2519
      %v2886 = vsel %vm2037, %v2866, %v2521
      %v2887 = vsel %vm2037, %v2867, %v2523
      %v2888 = vsel %vm2037, %v2868, %v2525
      %v2889 = vsel %vm2037, %v2869, %v2527
      %v2890 = vsel %vm2037, %v2870, %v2529
      %v2891 = vsel %vm2037, %v2871, %v2531
      %v2892 = vsel %vm2037, %v2872, %v2533
      %v2893 = vsel %vm2037, %v2873, %v2535
      %v2894 = vsel %vm2058, %v2874, %v2562
      %v2895 = vsel %vm2058, %v2875, %v2564
      %v2896 = vsel %vm2058, %v2876, %v2566
      %v2897 = vsel %vm2058, %v2877, %v2568
      %v2898 = vsel %vm2058, %v2878, %v2570
      %v2899 = vsel %vm2058, %v2879, %v2572
      %v2900 = vsel %vm2058, %v2880, %v2574
      %v2901 = vsel %vm2058, %v2881, %v2576
      %v2902 = vsel %vm2058, %v2882, %v2578
      %v2903 = vsel %vm2058, %v2883, %v2580
      %v2904 = vsel %vm2058, %v2884, %v2582
      %v2905 = vsel %vm2058, %v2885, %v2584
      %v2906 = vsel %vm2058, %v2886, %v2586
      %v2907 = vsel %vm2058, %v2887, %v2588
      %v2908 = vsel %vm2058, %v2888, %v2590
      %v2909 = vsel %vm2058, %v2889, %v2592
      %v2910 = vsel %vm2058, %v2890, %v2594
      %v2911 = vsel %vm2058, %v2891, %v2596
      %v2912 = vsel %vm2058, %v2892, %v2598
      %v2913 = vsel %vm2058, %v2893, %v2600
      %v2914 = vsel %vm2079, %v2894, %v2624
      %v2915 = vsel %vm2079, %v2895, %v2626
      %v2916 = vsel %vm2079, %v2896, %v2628
      %v2917 = vsel %vm2079, %v2897, %v2630
      %v2918 = vsel %vm2079, %v2898, %v2632
      %v2919 = vsel %vm2079, %v2899, %v2634
      %v2920 = vsel %vm2079, %v2900, %v2636
      %v2921 = vsel %vm2079, %v2901, %v2638
      %v2922 = vsel %vm2079, %v2902, %v2640
      %v2923 = vsel %vm2079, %v2903, %v2642
      %v2924 = vsel %vm2079, %v2904, %v2644
      %v2925 = vsel %vm2079, %v2905, %v2646
      %v2926 = vsel %vm2079, %v2906, %v2648
      %v2927 = vsel %vm2079, %v2907, %v2650
      %v2928 = vsel %vm2079, %v2908, %v2652
      %v2929 = vsel %vm2079, %v2909, %v2654
      %v2930 = vsel %vm2079, %v2910, %v2656
      %v2931 = vsel %vm2079, %v2911, %v2658
      %v2932 = vsel %vm2079, %v2912, %v2660
      %v2933 = vsel %vm2079, %v2913, %v2662
      %v2934 = vsel %vm2100, %v2914, %v2690
      %v2935 = vsel %vm2100, %v2915, %v2692
      %v2936 = vsel %vm2100, %v2916, %v2694
      %v2937 = vsel %vm2100, %v2917, %v2696
      %v2938 = vsel %vm2100, %v2918, %v2698
      %v2939 = vsel %vm2100, %v2919, %v2700
      %v2940 = vsel %vm2100, %v2920, %v2702
      %v2941 = vsel %vm2100, %v2921, %v2704
      %v2942 = vsel %vm2100, %v2922, %v2706
      %v2943 = vsel %vm2100, %v2923, %v2708
      %v2944 = vsel %vm2100, %v2924, %v2710
      %v2945 = vsel %vm2100, %v2925, %v2712
      %v2946 = vsel %vm2100, %v2926, %v2714
      %v2947 = vsel %vm2100, %v2927, %v2716
      %v2948 = vsel %vm2100, %v2928, %v2718
      %v2949 = vsel %vm2100, %v2929, %v2720
      %v2950 = vsel %vm2100, %v2930, %v2722
      %v2951 = vsel %vm2100, %v2931, %v2724
      %v2952 = vsel %vm2100, %v2932, %v2726
      %v2953 = vsel %vm2100, %v2933, %v2728
      %v2954 = vsel %vm2121, %v2934, %v2755
      %v2955 = vsel %vm2121, %v2935, %v2757
      %v2956 = vsel %vm2121, %v2936, %v2759
      %v2957 = vsel %vm2121, %v2937, %v2761
      %v2958 = vsel %vm2121, %v2938, %v2763
      %v2959 = vsel %vm2121, %v2939, %v2765
      %v2960 = vsel %vm2121, %v2940, %v2767
      %v2961 = vsel %vm2121, %v2941, %v2769
      %v2962 = vsel %vm2121, %v2942, %v2771
      %v2963 = vsel %vm2121, %v2943, %v2773
      %v2964 = vsel %vm2121, %v2944, %v2775
      %v2965 = vsel %vm2121, %v2945, %v2777
      %v2966 = vsel %vm2121, %v2946, %v2779
      %v2967 = vsel %vm2121, %v2947, %v2781
      %v2968 = vsel %vm2121, %v2948, %v2783
      %v2969 = vsel %vm2121, %v2949, %v2785
      %v2970 = vsel %vm2121, %v2950, %v2787
      %v2971 = vsel %vm2121, %v2951, %v2789
      %v2972 = vsel %vm2121, %v2952, %v2791
      %v2973 = vsel %vm2121, %v2953, %v2793
      %v2974 = vld [vmem:[%s5] sm:$0xf]
      %v2975 = vld [vmem:[%s5 + $0x4] sm:$0xf]
      %v2976 = vld [vmem:[%s5 + $0x8] sm:$0xf]
      %v2977 = vld [vmem:[%s5 + $0xc] sm:$0xf]
      %v2978 = vld [vmem:[%s5 + $0x10] sm:$0x3]
      %v2979 = vld [vmem:[%s6] sm:$0xf]
      %v2980 = vld [vmem:[%s6 + $0x4] sm:$0xf]
      %v2981 = vld [vmem:[%s6 + $0x8] sm:$0xf]
      %v2982 = vld [vmem:[%s6 + $0xc] sm:$0xf]
      %v2983 = vld [vmem:[%s6 + $0x10] sm:$0x3]
      %v2984 = vunpack.c.l.bf16 %v2979
      %v2985 = vunpack.c.l.bf16 %v2980
      %v2986 = vunpack.c.l.bf16 %v2981
      %v2987 = vunpack.c.l.bf16 %v2982
      %v2988 = vunpack.c.l.bf16 %v2983
      %vm2989 = vcmask 293888
      %v2991 = vsel %vm2989, %v2954, 0
      %v2994 = vsel %vm2989, %v2955, 0
      %v2997 = vsel %vm2989, %v2956, 0
      %v3000 = vsel %vm2989, %v2957, 0
      %v3003 = vsel %vm2989, %v2958, 0
      %v3006 = vsel %vm2989, %v2959, 0
      %v3009 = vsel %vm2989, %v2960, 0
      %v3012 = vsel %vm2989, %v2961, 0
      %v3015 = vsel %vm2989, %v2962, 0
      %v3018 = vsel %vm2989, %v2963, 0
      %v3021 = vsel %vm2989, %v2964, 0
      %v3024 = vsel %vm2989, %v2965, 0
      %v3027 = vsel %vm2989, %v2966, 0
      %v3030 = vsel %vm2989, %v2967, 0
      %v3033 = vsel %vm2989, %v2968, 0
      %v3036 = vsel %vm2989, %v2969, 0
      %v3039 = vsel %vm2989, %v2970, 0
      %v3042 = vsel %vm2989, %v2971, 0
      %v3045 = vsel %vm2989, %v2972, 0
      %v3048 = vsel %vm2989, %v2973, 0
      %v3051 = vsel %vm527, %v2988, 0
      %3053 = vmatprep.subr.mxu0 0.0
      %3054 = vmatpush1.msra.mxu0 0.0
      %3055 = vmatprep.subr.mxu0 0.0
      %3056 = vmatpush1.msra.mxu0 0.0
      %3057 = vmatprep.subr.mxu0 0.0
      %3058 = vmatpush1.msra.mxu0 0.0
      %3059 = vmatprep.subr.mxu0 0.0
      %3060 = vmatpush1.msra.mxu0 0.0
      %3061 = vmatprep.subr.mxu0 0.0
      %3062 = vmatpush1.msra.mxu0 0.0
      %3063 = vmatprep.subr.mxu0 0.0
      %3064 = vmatpush1.msra.mxu0 0.0
      %3065 = vmatprep.subr.mxu0 0.0
      %3066 = vmatpush1.msra.mxu0 0.0
      %3067 = vmatprep.subr.mxu0 0.0
      %3068 = vmatpush1.msra.mxu0 0.0
      %3069 = vmatprep.subr.mxu0 0.0
      %3070 = vmatpush1.msra.mxu0 0.0
      %3071 = vmatprep.subr.mxu0 0.0
      %3072 = vmatpush1.msra.mxu0 0.0
      %3073 = vmatprep.subr.mxu0 0.0
      %3074 = vmatpush1.msra.mxu0 0.0
      %3075 = vmatprep.subr.mxu0 0.0
      %3076 = vmatpush1.msra.mxu0 %v3051
      %3077 = vmatprep.subr.mxu0 0.0
      %3078 = vmatpush1.msra.mxu0 %v2987
      %3079 = vmatprep.subr.mxu0 0.0
      %3080 = vmatpush1.msra.mxu0 %v2986
      %3081 = vmatprep.subr.mxu0 0.0
      %3082 = vmatpush1.msra.mxu0 %v2985
      %3083 = vmatprep.subr.mxu0 0.0
      %3084 = vmatpush1.msra.mxu0 %v2984
      %3085 = vmatprep.subr.mxu0 0.0
      %3086 = vmatpush2.msra.mxu0 0.0
      %3087 = vmatprep.subr.mxu0 0.0
      %3088 = vmatpush2.msra.mxu0 0.0
      %3089 = vmatprep.subr.mxu0 0.0
      %3090 = vmatpush2.msra.mxu0 0.0
      %3091 = vmatprep.subr.mxu0 0.0
      %3092 = vmatpush2.msra.mxu0 0.0
      %3093 = vmatprep.subr.mxu0 0.0
      %3094 = vmatpush2.msra.mxu0 0.0
      %3095 = vmatprep.subr.mxu0 0.0
      %3096 = vmatpush2.msra.mxu0 0.0
      %3097 = vmatprep.subr.mxu0 0.0
      %3098 = vmatpush2.msra.mxu0 0.0
      %3099 = vmatprep.subr.mxu0 0.0
      %3100 = vmatpush2.msra.mxu0 0.0
      %3101 = vmatprep.subr.mxu0 0.0
      %3102 = vmatpush2.msra.mxu0 0.0
      %3103 = vmatprep.subr.mxu0 0.0
      %3104 = vmatpush2.msra.mxu0 0.0
      %3105 = vmatprep.subr.mxu0 0.0
      %3106 = vmatpush2.msra.mxu0 0.0
      %3107 = vmatprep.subr.mxu0 0.0
      %3108 = vmatpush2.msra.mxu0 0.0
      %3109 = vmatprep.subr.mxu0 0.0
      %3110 = vmatpush2.msra.mxu0 0.0
      %3111 = vmatprep.subr.mxu0 0.0
      %3112 = vmatpush2.msra.mxu0 0.0
      %3113 = vmatprep.subr.mxu0 0.0
      %3114 = vmatpush2.msra.mxu0 0.0
      %3115 = vmatprep.subr.mxu0 0.0
      %3116 = vmatpush2.msra.mxu0 0.0
      %3117 = vmatprep.mubr.f32.mxu0 0.0
      %3118 = vmatmul.mubr.f32.gmra.mxu0 %v2991
      %v3119 = vpop.f32.mrf.mxu0
      %v3120 = vadd.f32 0.0, %v3119
      %v3121 = vpop.f32.mrf.mxu0
      %3122 = vmatprep.mubr.f32.mxu0 0.0
      %3123 = vmatmul.mubr.f32.gmra.mxu0 %v2994
      %v3124 = vpop.f32.mrf.mxu0
      %v3125 = vadd.f32 0.0, %v3124
      %v3126 = vpop.f32.mrf.mxu0
      %3127 = vmatprep.mubr.f32.mxu0 0.0
      %3128 = vmatmul.mubr.f32.gmra.mxu0 %v2997
      %v3129 = vpop.f32.mrf.mxu0
      %v3130 = vadd.f32 0.0, %v3129
      %v3131 = vpop.f32.mrf.mxu0
      %3132 = vmatprep.mubr.f32.mxu0 0.0
      %3133 = vmatmul.mubr.f32.gmra.mxu0 %v3000
      %v3134 = vpop.f32.mrf.mxu0
      %v3135 = vadd.f32 0.0, %v3134
      %v3136 = vpop.f32.mrf.mxu0
      %3137 = vmatprep.mubr.f32.mxu0 0.0
      %3138 = vmatmul.mubr.f32.gmra.mxu0 %v3003
      %v3139 = vpop.f32.mrf.mxu0
      %v3140 = vadd.f32 0.0, %v3139
      %v3141 = vpop.f32.mrf.mxu0
      %3142 = vmatprep.mubr.f32.mxu0 0.0
      %3143 = vmatmul.mubr.f32.gmra.mxu0 %v3006
      %v3144 = vpop.f32.mrf.mxu0
      %v3145 = vadd.f32 0.0, %v3144
      %v3146 = vpop.f32.mrf.mxu0
      %3147 = vmatprep.mubr.f32.mxu0 0.0
      %3148 = vmatmul.mubr.f32.gmra.mxu0 %v3009
      %v3149 = vpop.f32.mrf.mxu0
      %v3150 = vadd.f32 0.0, %v3149
      %v3151 = vpop.f32.mrf.mxu0
      %3152 = vmatprep.mubr.f32.mxu0 0.0
      %3153 = vmatmul.mubr.f32.gmra.mxu0 %v3012
      %v3154 = vpop.f32.mrf.mxu0
      %v3155 = vadd.f32 0.0, %v3154
      %v3156 = vpop.f32.mrf.mxu0
      %3157 = vmatprep.mubr.f32.mxu0 0.0
      %3158 = vmatmul.mubr.f32.gmra.mxu0 %v3015
      %v3159 = vpop.f32.mrf.mxu0
      %v3160 = vadd.f32 0.0, %v3159
      %v3161 = vpop.f32.mrf.mxu0
      %3162 = vmatprep.mubr.f32.mxu0 0.0
      %3163 = vmatmul.mubr.f32.gmra.mxu0 %v3018
      %v3164 = vpop.f32.mrf.mxu0
      %v3165 = vadd.f32 0.0, %v3164
      %v3166 = vpop.f32.mrf.mxu0
      %3167 = vmatprep.mubr.f32.mxu0 0.0
      %3168 = vmatmul.mubr.f32.gmra.mxu0 %v3021
      %v3169 = vpop.f32.mrf.mxu0
      %v3170 = vadd.f32 0.0, %v3169
      %v3171 = vpop.f32.mrf.mxu0
      %3172 = vmatprep.mubr.f32.mxu0 0.0
      %3173 = vmatmul.mubr.f32.gmra.mxu0 %v3024
      %v3174 = vpop.f32.mrf.mxu0
      %v3175 = vadd.f32 0.0, %v3174
      %v3176 = vpop.f32.mrf.mxu0
      %3177 = vmatprep.mubr.f32.mxu0 0.0
      %3178 = vmatmul.mubr.f32.gmra.mxu0 %v3027
      %v3179 = vpop.f32.mrf.mxu0
      %v3180 = vadd.f32 0.0, %v3179
      %v3181 = vpop.f32.mrf.mxu0
      %3182 = vmatprep.mubr.f32.mxu0 0.0
      %3183 = vmatmul.mubr.f32.gmra.mxu0 %v3030
      %v3184 = vpop.f32.mrf.mxu0
      %v3185 = vadd.f32 0.0, %v3184
      %v3186 = vpop.f32.mrf.mxu0
      %3187 = vmatprep.mubr.f32.mxu0 0.0
      %3188 = vmatmul.mubr.f32.gmra.mxu0 %v3033
      %v3189 = vpop.f32.mrf.mxu0
      %v3190 = vadd.f32 0.0, %v3189
      %v3191 = vpop.f32.mrf.mxu0
      %3192 = vmatprep.mubr.f32.mxu0 0.0
      %3193 = vmatmul.mubr.f32.gmra.mxu0 %v3036
      %v3194 = vpop.f32.mrf.mxu0
      %v3195 = vadd.f32 0.0, %v3194
      %v3196 = vpop.f32.mrf.mxu0
      %3197 = vmatprep.mubr.f32.mxu0 0.0
      %3198 = vmatmul.mubr.f32.gmra.mxu0 %v3039
      %v3199 = vpop.f32.mrf.mxu0
      %v3200 = vadd.f32 0.0, %v3199
      %v3201 = vpop.f32.mrf.mxu0
      %3202 = vmatprep.mubr.f32.mxu0 0.0
      %3203 = vmatmul.mubr.f32.gmra.mxu0 %v3042
      %v3204 = vpop.f32.mrf.mxu0
      %v3205 = vadd.f32 0.0, %v3204
      %v3206 = vpop.f32.mrf.mxu0
      %3207 = vmatprep.mubr.f32.mxu0 0.0
      %3208 = vmatmul.mubr.f32.gmra.mxu0 %v3045
      %v3209 = vpop.f32.mrf.mxu0
      %v3210 = vadd.f32 0.0, %v3209
      %v3211 = vpop.f32.mrf.mxu0
      %3212 = vmatprep.mubr.f32.mxu0 0.0
      %3213 = vmatmul.mubr.f32.gmra.mxu0 %v3048
      %v3214 = vpop.f32.mrf.mxu0
      %v3215 = vadd.f32 0.0, %v3214
      %v3216 = vpop.f32.mrf.mxu0
      %3217 = vdwg.mxu0
      %v3223 = vunpack.c.l.b16 %v2974
      %v3224 = vunpack.c.l.b16 %v2975
      %v3225 = vunpack.c.l.b16 %v2976
      %v3226 = vunpack.c.l.b16 %v2977
      %v3227 = vunpack.c.l.b16 %v2978
      %v3228 = vpack.c.b16 %v3224, %v3223
      %v3229 = vpack.c.b16 %v3226, %v3225
      %v3230 = vpack.c.b16 %v3227, %v3227
      %v3233 = vsel %vm2989, %v2123, 0
      %v3235 = vsel %vm2989, %v2125, 0
      %v3237 = vsel %vm2989, %v2127, 0
      %v3239 = vsel %vm2989, %v2129, 0
      %v3241 = vsel %vm2989, %v2131, 0
      %v3243 = vsel %vm2989, %v2133, 0
      %v3245 = vsel %vm2989, %v2135, 0
      %v3247 = vsel %vm2989, %v2137, 0
      %v3249 = vsel %vm2989, %v2139, 0
      %v3251 = vsel %vm2989, %v2141, 0
      %v3254 = vsel %vm1170, %v3230, 0
      %3256 = vmatprep.subr.bf16.mxu0 0
      %3257 = vmatpush1.bf16.msra.mxu0 0
      %3258 = vmatprep.subr.bf16.mxu0 0
      %3259 = vmatpush1.bf16.msra.mxu0 0
      %3260 = vmatprep.subr.bf16.mxu0 0
      %3261 = vmatpush1.bf16.msra.mxu0 0
      %3262 = vmatprep.subr.bf16.mxu0 0
      %3263 = vmatpush1.bf16.msra.mxu0 0
      %3264 = vmatprep.subr.bf16.mxu0 0
      %3265 = vmatpush1.bf16.msra.mxu0 0
      %3266 = vmatprep.subr.bf16.mxu0 0
      %3267 = vmatpush1.bf16.msra.mxu0 %v3254
      %3268 = vmatprep.subr.bf16.mxu0 0
      %3269 = vmatpush1.bf16.msra.mxu0 %v3229
      %3270 = vmatprep.subr.bf16.mxu0 0
      %3271 = vmatpush1.bf16.msra.mxu0 %v3228
      %3272 = vmatprep.subr.bf16.mxu0 0
      %3273 = vmatpush2.bf16.msra.mxu0 0
      %3274 = vmatprep.subr.bf16.mxu0 0
      %3275 = vmatpush2.bf16.msra.mxu0 0
      %3276 = vmatprep.subr.bf16.mxu0 0
      %3277 = vmatpush2.bf16.msra.mxu0 0
      %3278 = vmatprep.subr.bf16.mxu0 0
      %3279 = vmatpush2.bf16.msra.mxu0 0
      %3280 = vmatprep.subr.bf16.mxu0 0
      %3281 = vmatpush2.bf16.msra.mxu0 0
      %3282 = vmatprep.subr.bf16.mxu0 0
      %3283 = vmatpush2.bf16.msra.mxu0 0
      %3284 = vmatprep.subr.bf16.mxu0 0
      %3285 = vmatpush2.bf16.msra.mxu0 0
      %3286 = vmatprep.subr.bf16.mxu0 0
      %3287 = vmatpush2.bf16.msra.mxu0 0
      %3288 = vmatprep.mubr.bf16.mxu0 0
      %3289 = vmatmul.mubr.bf16.gmra.mxu0 %v3233
      %v3290 = vpop.f32.mrf.mxu0
      %v3291 = vadd.f32 %v3120, %v3290
      %v3292 = vpop.f32.mrf.mxu0
      %v3293 = vpop.f32.mrf.mxu0
      %v3294 = vadd.f32 %v3125, %v3293
      %v3295 = vpop.f32.mrf.mxu0
      %3296 = vmatprep.mubr.bf16.mxu0 0
      %3297 = vmatmul.mubr.bf16.gmra.mxu0 %v3235
      %v3298 = vpop.f32.mrf.mxu0
      %v3299 = vadd.f32 %v3130, %v3298
      %v3300 = vpop.f32.mrf.mxu0
      %v3301 = vpop.f32.mrf.mxu0
      %v3302 = vadd.f32 %v3135, %v3301
      %v3303 = vpop.f32.mrf.mxu0
      %3304 = vmatprep.mubr.bf16.mxu0 0
      %3305 = vmatmul.mubr.bf16.gmra.mxu0 %v3237
      %v3306 = vpop.f32.mrf.mxu0
      %v3307 = vadd.f32 %v3140, %v3306
      %v3308 = vpop.f32.mrf.mxu0
      %v3309 = vpop.f32.mrf.mxu0
      %v3310 = vadd.f32 %v3145, %v3309
      %v3311 = vpop.f32.mrf.mxu0
      %3312 = vmatprep.mubr.bf16.mxu0 0
      %3313 = vmatmul.mubr.bf16.gmra.mxu0 %v3239
      %v3314 = vpop.f32.mrf.mxu0
      %v3315 = vadd.f32 %v3150, %v3314
      %v3316 = vpop.f32.mrf.mxu0
      %v3317 = vpop.f32.mrf.mxu0
      %v3318 = vadd.f32 %v3155, %v3317
      %v3319 = vpop.f32.mrf.mxu0
      %3320 = vmatprep.mubr.bf16.mxu0 0
      %3321 = vmatmul.mubr.bf16.gmra.mxu0 %v3241
      %v3322 = vpop.f32.mrf.mxu0
      %v3323 = vadd.f32 %v3160, %v3322
      %v3324 = vpop.f32.mrf.mxu0
      %v3325 = vpop.f32.mrf.mxu0
      %v3326 = vadd.f32 %v3165, %v3325
      %v3327 = vpop.f32.mrf.mxu0
      %3328 = vmatprep.mubr.bf16.mxu0 0
      %3329 = vmatmul.mubr.bf16.gmra.mxu0 %v3243
      %v3330 = vpop.f32.mrf.mxu0
      %v3331 = vadd.f32 %v3170, %v3330
      %v3332 = vpop.f32.mrf.mxu0
      %v3333 = vpop.f32.mrf.mxu0
      %v3334 = vadd.f32 %v3175, %v3333
      %v3335 = vpop.f32.mrf.mxu0
      %3336 = vmatprep.mubr.bf16.mxu0 0
      %3337 = vmatmul.mubr.bf16.gmra.mxu0 %v3245
      %v3338 = vpop.f32.mrf.mxu0
      %v3339 = vadd.f32 %v3180, %v3338
      %v3340 = vpop.f32.mrf.mxu0
      %v3341 = vpop.f32.mrf.mxu0
      %v3342 = vadd.f32 %v3185, %v3341
      %v3343 = vpop.f32.mrf.mxu0
      %3344 = vmatprep.mubr.bf16.mxu0 0
      %3345 = vmatmul.mubr.bf16.gmra.mxu0 %v3247
      %v3346 = vpop.f32.mrf.mxu0
      %v3347 = vadd.f32 %v3190, %v3346
      %v3348 = vpop.f32.mrf.mxu0
      %v3349 = vpop.f32.mrf.mxu0
      %v3350 = vadd.f32 %v3195, %v3349
      %v3351 = vpop.f32.mrf.mxu0
      %3352 = vmatprep.mubr.bf16.mxu0 0
      %3353 = vmatmul.mubr.bf16.gmra.mxu0 %v3249
      %v3354 = vpop.f32.mrf.mxu0
      %v3355 = vadd.f32 %v3200, %v3354
      %v3356 = vpop.f32.mrf.mxu0
      %v3357 = vpop.f32.mrf.mxu0
      %v3358 = vadd.f32 %v3205, %v3357
      %v3359 = vpop.f32.mrf.mxu0
      %3360 = vmatprep.mubr.bf16.mxu0 0
      %3361 = vmatmul.mubr.bf16.gmra.mxu0 %v3251
      %v3362 = vpop.f32.mrf.mxu0
      %v3363 = vadd.f32 %v3210, %v3362
      %v3364 = vpop.f32.mrf.mxu0
      %v3365 = vpop.f32.mrf.mxu0
      %v3366 = vadd.f32 %v3215, %v3365
      %v3367 = vpop.f32.mrf.mxu0
      %3368 = vdwg.mxu0
      %v3369 = vld [vmem:[%s7] sm:$0x1]
      %v3371 = vlaneseq
      %v3372 = vshrl.u32 %v3371, 7
      %v3373 = vsub.s32 0, %v3372
      %v3374 = vrot.slane %v3369, %v3373
      %v3376 = vmul.f32 %v3291, %v3374
      %v3377 = vmul.f32 %v3294, %v3374
      %v3378 = vmul.f32 %v3299, %v3374
      %v3379 = vmul.f32 %v3302, %v3374
      %v3380 = vmul.f32 %v3307, %v3374
      %v3381 = vmul.f32 %v3310, %v3374
      %v3382 = vmul.f32 %v3315, %v3374
      %v3383 = vmul.f32 %v3318, %v3374
      %v3384 = vmul.f32 %v3323, %v3374
      %v3385 = vmul.f32 %v3326, %v3374
      %v3386 = vmul.f32 %v3331, %v3374
      %v3387 = vmul.f32 %v3334, %v3374
      %v3388 = vmul.f32 %v3339, %v3374
      %v3389 = vmul.f32 %v3342, %v3374
      %v3390 = vmul.f32 %v3347, %v3374
      %v3391 = vmul.f32 %v3350, %v3374
      %v3392 = vmul.f32 %v3355, %v3374
      %v3393 = vmul.f32 %v3358, %v3374
      %v3394 = vmul.f32 %v3363, %v3374
      %v3395 = vmul.f32 %v3366, %v3374
      %v3396 = vld [vmem:[%s8] sm:$0x1]
      %v3398 = vlaneseq
      %v3399 = vshrl.u32 %v3398, 7
      %v3400 = vsub.s32 0, %v3399
      %v3401 = vrot.slane %v3396, %v3400
      %v3403 = vadd.f32 %v3376, %v3401
      %v3404 = vadd.f32 %v3377, %v3401
      %v3405 = vadd.f32 %v3378, %v3401
      %v3406 = vadd.f32 %v3379, %v3401
      %v3407 = vadd.f32 %v3380, %v3401
      %v3408 = vadd.f32 %v3381, %v3401
      %v3409 = vadd.f32 %v3382, %v3401
      %v3410 = vadd.f32 %v3383, %v3401
      %v3411 = vadd.f32 %v3384, %v3401
      %v3412 = vadd.f32 %v3385, %v3401
      %v3413 = vadd.f32 %v3386, %v3401
      %v3414 = vadd.f32 %v3387, %v3401
      %v3415 = vadd.f32 %v3388, %v3401
      %v3416 = vadd.f32 %v3389, %v3401
      %v3417 = vadd.f32 %v3390, %v3401
      %v3418 = vadd.f32 %v3391, %v3401
      %v3419 = vadd.f32 %v3392, %v3401
      %v3420 = vadd.f32 %v3393, %v3401
      %v3421 = vadd.f32 %v3394, %v3401
      %v3422 = vadd.f32 %v3395, %v3401
      %v3423 = vmax.f32 %v3403, 0.0
      %v3424 = vmax.f32 %v3404, 0.0
      %v3425 = vmax.f32 %v3405, 0.0
      %v3426 = vmax.f32 %v3406, 0.0
      %v3427 = vmax.f32 %v3407, 0.0
      %v3428 = vmax.f32 %v3408, 0.0
      %v3429 = vmax.f32 %v3409, 0.0
      %v3430 = vmax.f32 %v3410, 0.0
      %v3431 = vmax.f32 %v3411, 0.0
      %v3432 = vmax.f32 %v3412, 0.0
      %v3433 = vmax.f32 %v3413, 0.0
      %v3434 = vmax.f32 %v3414, 0.0
      %v3435 = vmax.f32 %v3415, 0.0
      %v3436 = vmax.f32 %v3416, 0.0
      %v3437 = vmax.f32 %v3417, 0.0
      %v3438 = vmax.f32 %v3418, 0.0
      %v3439 = vmax.f32 %v3419, 0.0
      %v3440 = vmax.f32 %v3420, 0.0
      %v3441 = vmax.f32 %v3421, 0.0
      %v3442 = vmax.f32 %v3422, 0.0
      %s3443 = ssub.s32 %s1330, 1
      %v3444 = vstv %s3443
      %v3445 = vadd.s32 %v3444, 1
      %v3446 = vadd.s32 %v3444, 2
      %v3447 = vadd.s32 %v3444, 3
      %v3448 = vadd.s32 %v3444, 4
      %v3449 = vadd.s32 %v3444, 5
      %v3450 = vadd.s32 %v3444, 6
      %v3451 = vadd.s32 %v3444, 7
      %v3452 = vadd.s32 %v3444, 8
      %v3453 = vadd.s32 %v3444, 9
      %vm3454 = vcmp.ge.s32.totalorder %v3444, 0
      %vm3455 = vcmp.ge.s32.totalorder %v3445, 0
      %vm3456 = vcmp.ge.s32.totalorder %v3446, 0
      %vm3457 = vcmp.ge.s32.totalorder %v3447, 0
      %vm3458 = vcmp.ge.s32.totalorder %v3448, 0
      %vm3459 = vcmp.ge.s32.totalorder %v3449, 0
      %vm3460 = vcmp.ge.s32.totalorder %v3450, 0
      %vm3461 = vcmp.ge.s32.totalorder %v3451, 0
      %vm3462 = vcmp.ge.s32.totalorder %v3452, 0
      %vm3463 = vcmp.ge.s32.totalorder %v3453, 0
      %vm3464 = vcmp.lt.s32.totalorder %v3444, 16
      %vm3465 = vcmp.lt.s32.totalorder %v3445, 16
      %vm3466 = vcmp.lt.s32.totalorder %v3446, 16
      %vm3467 = vcmp.lt.s32.totalorder %v3447, 16
      %vm3468 = vcmp.lt.s32.totalorder %v3448, 16
      %vm3469 = vcmp.lt.s32.totalorder %v3449, 16
      %vm3470 = vcmp.lt.s32.totalorder %v3450, 16
      %vm3471 = vcmp.lt.s32.totalorder %v3451, 16
      %vm3472 = vcmp.lt.s32.totalorder %v3452, 16
      %vm3473 = vcmp.lt.s32.totalorder %v3453, 16
      %vm3474 = vmand %vm3454, %vm3464
      %vm3475 = vmand %vm3455, %vm3465
      %vm3476 = vmand %vm3456, %vm3466
      %vm3477 = vmand %vm3457, %vm3467
      %vm3478 = vmand %vm3458, %vm3468
      %vm3479 = vmand %vm3459, %vm3469
      %vm3480 = vmand %vm3460, %vm3470
      %vm3481 = vmand %vm3461, %vm3471
      %vm3482 = vmand %vm3462, %vm3472
      %vm3483 = vmand %vm3463, %vm3473
      %v3484 = vsel %vm3474, 1, 0
      %v3485 = vsel %vm3475, 1, 0
      %v3486 = vsel %vm3476, 1, 0
      %v3487 = vsel %vm3477, 1, 0
      %v3488 = vsel %vm3478, 1, 0
      %v3489 = vsel %vm3479, 1, 0
      %v3490 = vsel %vm3480, 1, 0
      %v3491 = vsel %vm3481, 1, 0
      %v3492 = vsel %vm3482, 1, 0
      %v3493 = vsel %vm3483, 1, 0
      %vm3494 = vcmp.eq.s32.totalorder %v3484, 1
      %vm3495 = vcmp.eq.s32.totalorder %v3485, 1
      %vm3496 = vcmp.eq.s32.totalorder %v3486, 1
      %vm3497 = vcmp.eq.s32.totalorder %v3487, 1
      %vm3498 = vcmp.eq.s32.totalorder %v3488, 1
      %vm3499 = vcmp.eq.s32.totalorder %v3489, 1
      %vm3500 = vcmp.eq.s32.totalorder %v3490, 1
      %vm3501 = vcmp.eq.s32.totalorder %v3491, 1
      %vm3502 = vcmp.eq.s32.totalorder %v3492, 1
      %vm3503 = vcmp.eq.s32.totalorder %v3493, 1
      %v3504 = vsel %vm3494, %v3423, 0.0
      %v3505 = vsel %vm3494, %v3424, 0.0
      %v3506 = vsel %vm3495, %v3425, 0.0
      %v3507 = vsel %vm3495, %v3426, 0.0
      %v3508 = vsel %vm3496, %v3427, 0.0
      %v3509 = vsel %vm3496, %v3428, 0.0
      %v3510 = vsel %vm3497, %v3429, 0.0
      %v3511 = vsel %vm3497, %v3430, 0.0
      %v3512 = vsel %vm3498, %v3431, 0.0
      %v3513 = vsel %vm3498, %v3432, 0.0
      %v3514 = vsel %vm3499, %v3433, 0.0
      %v3515 = vsel %vm3499, %v3434, 0.0
      %v3516 = vsel %vm3500, %v3435, 0.0
      %v3517 = vsel %vm3500, %v3436, 0.0
      %v3518 = vsel %vm3501, %v3437, 0.0
      %v3519 = vsel %vm3501, %v3438, 0.0
      %v3520 = vsel %vm3502, %v3439, 0.0
      %v3521 = vsel %vm3502, %v3440, 0.0
      %v3522 = vsel %vm3503, %v3441, 0.0
      %v3523 = vsel %vm3503, %v3442, 0.0
      %3524 = vst.msk [vmem:[#allocation3] sm:$0x1] %vm1452, 0.0
      %3525 = vst.msk [vmem:[#allocation3 + $0x18] sm:$0x1] %vm1452, 0.0
      %3526 = vst.msk [vmem:[#allocation3 + $0x30] sm:$0x1] %vm1452, 0.0
      %3527 = vst.msk [vmem:[#allocation3 + $0x48] sm:$0x1] %vm1452, 0.0
      %3528 = vst.msk [vmem:[#allocation3 + $0x60] sm:$0x1] %vm1452, 0.0
      %3529 = vst.msk [vmem:[#allocation3 + $0x78] sm:$0x1] %vm1452, 0.0
      %3530 = vst.msk [vmem:[#allocation3 + $0x90] sm:$0x1] %vm1452, 0.0
      %3531 = vst.msk [vmem:[#allocation3 + $0xa8] sm:$0x1] %vm1452, 0.0
      %3532 = vst.msk [vmem:[#allocation3 + $0xc0] sm:$0x1] %vm1452, 0.0
      %3533 = vst.msk [vmem:[#allocation3 + $0xd8] sm:$0x1] %vm1452, 0.0
      %3534 = vst.msk [vmem:[#allocation3 + $0x11] sm:$0x1] %vm1452, 0.0
      %3535 = vst.msk [vmem:[#allocation3 + $0x29] sm:$0x1] %vm1452, 0.0
      %3536 = vst.msk [vmem:[#allocation3 + $0x41] sm:$0x1] %vm1452, 0.0
      %3537 = vst.msk [vmem:[#allocation3 + $0x59] sm:$0x1] %vm1452, 0.0
      %3538 = vst.msk [vmem:[#allocation3 + $0x71] sm:$0x1] %vm1452, 0.0
      %3539 = vst.msk [vmem:[#allocation3 + $0x89] sm:$0x1] %vm1452, 0.0
      %3540 = vst.msk [vmem:[#allocation3 + $0xa1] sm:$0x1] %vm1452, 0.0
      %3541 = vst.msk [vmem:[#allocation3 + $0xb9] sm:$0x1] %vm1452, 0.0
      %3542 = vst.msk [vmem:[#allocation3 + $0xd1] sm:$0x1] %vm1452, 0.0
      %3543 = vst.msk [vmem:[#allocation3 + $0xe9] sm:$0x1] %vm1452, 0.0
      %3544 = vst.msk [vmem:[#allocation3 + $0x1] sm:$0xff] %vm1477, %v3504
      %3545 = vst.msk [vmem:[#allocation3 + $0x9] sm:$0xff] %vm1477, %v3505
      %3546 = vst.msk [vmem:[#allocation3 + $0x19] sm:$0xff] %vm1477, %v3506
      %3547 = vst.msk [vmem:[#allocation3 + $0x21] sm:$0xff] %vm1477, %v3507
      %3548 = vst.msk [vmem:[#allocation3 + $0x31] sm:$0xff] %vm1477, %v3508
      %3549 = vst.msk [vmem:[#allocation3 + $0x39] sm:$0xff] %vm1477, %v3509
      %3550 = vst.msk [vmem:[#allocation3 + $0x49] sm:$0xff] %vm1477, %v3510
      %3551 = vst.msk [vmem:[#allocation3 + $0x51] sm:$0xff] %vm1477, %v3511
      %3552 = vst.msk [vmem:[#allocation3 + $0x61] sm:$0xff] %vm1477, %v3512
      %3553 = vst.msk [vmem:[#allocation3 + $0x69] sm:$0xff] %vm1477, %v3513
      %3554 = vst.msk [vmem:[#allocation3 + $0x79] sm:$0xff] %vm1477, %v3514
      %3555 = vst.msk [vmem:[#allocation3 + $0x81] sm:$0xff] %vm1477, %v3515
      %3556 = vst.msk [vmem:[#allocation3 + $0x91] sm:$0xff] %vm1477, %v3516
      %3557 = vst.msk [vmem:[#allocation3 + $0x99] sm:$0xff] %vm1477, %v3517
      %3558 = vst.msk [vmem:[#allocation3 + $0xa9] sm:$0xff] %vm1477, %v3518
      %3559 = vst.msk [vmem:[#allocation3 + $0xb1] sm:$0xff] %vm1477, %v3519
      %3560 = vst.msk [vmem:[#allocation3 + $0xc1] sm:$0xff] %vm1477, %v3520
      %3561 = vst.msk [vmem:[#allocation3 + $0xc9] sm:$0xff] %vm1477, %v3521
      %3562 = vst.msk [vmem:[#allocation3 + $0xd9] sm:$0xff] %vm1477, %v3522
      %3563 = vst.msk [vmem:[#allocation3 + $0xe1] sm:$0xff] %vm1477, %v3523
      %v3564 = vld [vmem:[#allocation3] sm:$0xff]
      %v3565 = vld [vmem:[#allocation3 + $0x8] sm:$0xff]
      %v3566 = vld [vmem:[#allocation3 + $0x10] sm:$0x3]
      %v3567 = vld [vmem:[#allocation3 + $0x18] sm:$0xff]
      %v3568 = vld [vmem:[#allocation3 + $0x20] sm:$0xff]
      %v3569 = vld [vmem:[#allocation3 + $0x28] sm:$0x3]
      %v3570 = vld [vmem:[#allocation3 + $0x30] sm:$0xff]
      %v3571 = vld [vmem:[#allocation3 + $0x38] sm:$0xff]
      %v3572 = vld [vmem:[#allocation3 + $0x40] sm:$0x3]
      %v3573 = vld [vmem:[#allocation3 + $0x48] sm:$0xff]
      %v3574 = vld [vmem:[#allocation3 + $0x50] sm:$0xff]
      %v3575 = vld [vmem:[#allocation3 + $0x58] sm:$0x3]
      %v3576 = vld [vmem:[#allocation3 + $0x60] sm:$0xff]
      %v3577 = vld [vmem:[#allocation3 + $0x68] sm:$0xff]
      %v3578 = vld [vmem:[#allocation3 + $0x70] sm:$0x3]
      %v3579 = vld [vmem:[#allocation3 + $0x78] sm:$0xff]
      %v3580 = vld [vmem:[#allocation3 + $0x80] sm:$0xff]
      %v3581 = vld [vmem:[#allocation3 + $0x88] sm:$0x3]
      %v3582 = vld [vmem:[#allocation3 + $0x90] sm:$0xff]
      %v3583 = vld [vmem:[#allocation3 + $0x98] sm:$0xff]
      %v3584 = vld [vmem:[#allocation3 + $0xa0] sm:$0x3]
      %v3585 = vld [vmem:[#allocation3 + $0xa8] sm:$0xff]
      %v3586 = vld [vmem:[#allocation3 + $0xb0] sm:$0xff]
      %v3587 = vld [vmem:[#allocation3 + $0xb8] sm:$0x3]
      %v3588 = vld [vmem:[#allocation3 + $0xc0] sm:$0xff]
      %v3589 = vld [vmem:[#allocation3 + $0xc8] sm:$0xff]
      %v3590 = vld [vmem:[#allocation3 + $0xd0] sm:$0x3]
      %v3591 = vld [vmem:[#allocation3 + $0xd8] sm:$0xff]
      %v3592 = vld [vmem:[#allocation3 + $0xe0] sm:$0xff]
      %v3593 = vld [vmem:[#allocation3 + $0xe8] sm:$0x3]
      %v3618 = vrot.slane %v3564, 1
      %v3619 = vrot.slane %v3565, 1
      %v3620 = vsel %vm725, %v3618, %v3619
      %v3621 = vrot.slane %v3566, 1
      %v3622 = vsel %vm725, %v3619, %v3621
      %v3623 = vrot.slane %v3567, 1
      %v3624 = vrot.slane %v3568, 1
      %v3625 = vsel %vm725, %v3623, %v3624
      %v3626 = vrot.slane %v3569, 1
      %v3627 = vsel %vm725, %v3624, %v3626
      %v3628 = vrot.slane %v3570, 1
      %v3629 = vrot.slane %v3571, 1
      %v3630 = vsel %vm725, %v3628, %v3629
      %v3631 = vrot.slane %v3572, 1
      %v3632 = vsel %vm725, %v3629, %v3631
      %v3633 = vrot.slane %v3573, 1
      %v3634 = vrot.slane %v3574, 1
      %v3635 = vsel %vm725, %v3633, %v3634
      %v3636 = vrot.slane %v3575, 1
      %v3637 = vsel %vm725, %v3634, %v3636
      %v3638 = vrot.slane %v3576, 1
      %v3639 = vrot.slane %v3577, 1
      %v3640 = vsel %vm725, %v3638, %v3639
      %v3641 = vrot.slane %v3578, 1
      %v3642 = vsel %vm725, %v3639, %v3641
      %v3643 = vrot.slane %v3579, 1
      %v3644 = vrot.slane %v3580, 1
      %v3645 = vsel %vm725, %v3643, %v3644
      %v3646 = vrot.slane %v3581, 1
      %v3647 = vsel %vm725, %v3644, %v3646
      %v3648 = vrot.slane %v3582, 1
      %v3649 = vrot.slane %v3583, 1
      %v3650 = vsel %vm725, %v3648, %v3649
      %v3651 = vrot.slane %v3584, 1
      %v3652 = vsel %vm725, %v3649, %v3651
      %v3653 = vrot.slane %v3585, 1
      %v3654 = vrot.slane %v3586, 1
      %v3655 = vsel %vm725, %v3653, %v3654
      %v3656 = vrot.slane %v3587, 1
      %v3657 = vsel %vm725, %v3654, %v3656
      %3658 = vrot.lane.b32.xlu0 %v3620, 4
      %v3659 = vpop.permute.xlu0 %3658
      %3660 = vrot.lane.b32.xlu0 %v3622, 4
      %v3661 = vpop.permute.xlu0 %3660
      %3662 = vrot.lane.b32.xlu0 %v3625, 4
      %v3663 = vpop.permute.xlu0 %3662
      %3664 = vrot.lane.b32.xlu0 %v3627, 4
      %v3665 = vpop.permute.xlu0 %3664
      %3666 = vrot.lane.b32.xlu0 %v3630, 4
      %v3667 = vpop.permute.xlu0 %3666
      %3668 = vrot.lane.b32.xlu0 %v3632, 4
      %v3669 = vpop.permute.xlu0 %3668
      %3670 = vrot.lane.b32.xlu0 %v3635, 4
      %v3671 = vpop.permute.xlu0 %3670
      %3672 = vrot.lane.b32.xlu0 %v3637, 4
      %v3673 = vpop.permute.xlu0 %3672
      %3674 = vrot.lane.b32.xlu0 %v3640, 4
      %v3675 = vpop.permute.xlu0 %3674
      %3676 = vrot.lane.b32.xlu0 %v3642, 4
      %v3677 = vpop.permute.xlu0 %3676
      %3678 = vrot.lane.b32.xlu0 %v3645, 4
      %v3679 = vpop.permute.xlu0 %3678
      %3680 = vrot.lane.b32.xlu0 %v3647, 4
      %v3681 = vpop.permute.xlu0 %3680
      %3682 = vrot.lane.b32.xlu0 %v3650, 4
      %v3683 = vpop.permute.xlu0 %3682
      %3684 = vrot.lane.b32.xlu0 %v3652, 4
      %v3685 = vpop.permute.xlu0 %3684
      %3686 = vrot.lane.b32.xlu0 %v3655, 4
      %v3687 = vpop.permute.xlu0 %3686
      %3688 = vrot.lane.b32.xlu0 %v3657, 4
      %v3689 = vpop.permute.xlu0 %3688
      %v3706 = vrot.slane %v3564, 2
      %v3707 = vrot.slane %v3565, 2
      %v3708 = vsel %vm1221, %v3706, %v3707
      %v3709 = vrot.slane %v3566, 2
      %v3710 = vsel %vm1221, %v3707, %v3709
      %v3711 = vrot.slane %v3567, 2
      %v3712 = vrot.slane %v3568, 2
      %v3713 = vsel %vm1221, %v3711, %v3712
      %v3714 = vrot.slane %v3569, 2
      %v3715 = vsel %vm1221, %v3712, %v3714
      %v3716 = vrot.slane %v3570, 2
      %v3717 = vrot.slane %v3571, 2
      %v3718 = vsel %vm1221, %v3716, %v3717
      %v3719 = vrot.slane %v3572, 2
      %v3720 = vsel %vm1221, %v3717, %v3719
      %v3721 = vrot.slane %v3573, 2
      %v3722 = vrot.slane %v3574, 2
      %v3723 = vsel %vm1221, %v3721, %v3722
      %v3724 = vrot.slane %v3575, 2
      %v3725 = vsel %vm1221, %v3722, %v3724
      %v3726 = vrot.slane %v3576, 2
      %v3727 = vrot.slane %v3577, 2
      %v3728 = vsel %vm1221, %v3726, %v3727
      %v3729 = vrot.slane %v3578, 2
      %v3730 = vsel %vm1221, %v3727, %v3729
      %v3731 = vrot.slane %v3579, 2
      %v3732 = vrot.slane %v3580, 2
      %v3733 = vsel %vm1221, %v3731, %v3732
      %v3734 = vrot.slane %v3581, 2
      %v3735 = vsel %vm1221, %v3732, %v3734
      %v3736 = vrot.slane %v3582, 2
      %v3737 = vrot.slane %v3583, 2
      %v3738 = vsel %vm1221, %v3736, %v3737
      %v3739 = vrot.slane %v3584, 2
      %v3740 = vsel %vm1221, %v3737, %v3739
      %v3741 = vrot.slane %v3585, 2
      %v3742 = vrot.slane %v3586, 2
      %v3743 = vsel %vm1221, %v3741, %v3742
      %v3744 = vrot.slane %v3587, 2
      %v3745 = vsel %vm1221, %v3742, %v3744
      %3746 = vrot.lane.b32.xlu0 %v3708, 8
      %v3747 = vpop.permute.xlu0 %3746
      %3748 = vrot.lane.b32.xlu0 %v3710, 8
      %v3749 = vpop.permute.xlu0 %3748
      %3750 = vrot.lane.b32.xlu0 %v3713, 8
      %v3751 = vpop.permute.xlu0 %3750
      %3752 = vrot.lane.b32.xlu0 %v3715, 8
      %v3753 = vpop.permute.xlu0 %3752
      %3754 = vrot.lane.b32.xlu0 %v3718, 8
      %v3755 = vpop.permute.xlu0 %3754
      %3756 = vrot.lane.b32.xlu0 %v3720, 8
      %v3757 = vpop.permute.xlu0 %3756
      %3758 = vrot.lane.b32.xlu0 %v3723, 8
      %v3759 = vpop.permute.xlu0 %3758
      %3760 = vrot.lane.b32.xlu0 %v3725, 8
      %v3761 = vpop.permute.xlu0 %3760
      %3762 = vrot.lane.b32.xlu0 %v3728, 8
      %v3763 = vpop.permute.xlu0 %3762
      %3764 = vrot.lane.b32.xlu0 %v3730, 8
      %v3765 = vpop.permute.xlu0 %3764
      %3766 = vrot.lane.b32.xlu0 %v3733, 8
      %v3767 = vpop.permute.xlu0 %3766
      %3768 = vrot.lane.b32.xlu0 %v3735, 8
      %v3769 = vpop.permute.xlu0 %3768
      %3770 = vrot.lane.b32.xlu0 %v3738, 8
      %v3771 = vpop.permute.xlu0 %3770
      %3772 = vrot.lane.b32.xlu0 %v3740, 8
      %v3773 = vpop.permute.xlu0 %3772
      %3774 = vrot.lane.b32.xlu0 %v3743, 8
      %v3775 = vpop.permute.xlu0 %3774
      %3776 = vrot.lane.b32.xlu0 %v3745, 8
      %v3777 = vpop.permute.xlu0 %3776
      %3796 = vrot.lane.b32.xlu0 %v3567, 12
      %v3797 = vpop.permute.xlu0 %3796
      %3798 = vrot.lane.b32.xlu0 %v3568, 12
      %v3799 = vpop.permute.xlu0 %3798
      %3800 = vrot.lane.b32.xlu0 %v3570, 12
      %v3801 = vpop.permute.xlu0 %3800
      %3802 = vrot.lane.b32.xlu0 %v3571, 12
      %v3803 = vpop.permute.xlu0 %3802
      %3804 = vrot.lane.b32.xlu0 %v3573, 12
      %v3805 = vpop.permute.xlu0 %3804
      %3806 = vrot.lane.b32.xlu0 %v3574, 12
      %v3807 = vpop.permute.xlu0 %3806
      %3808 = vrot.lane.b32.xlu0 %v3576, 12
      %v3809 = vpop.permute.xlu0 %3808
      %3810 = vrot.lane.b32.xlu0 %v3577, 12
      %v3811 = vpop.permute.xlu0 %3810
      %3812 = vrot.lane.b32.xlu0 %v3579, 12
      %v3813 = vpop.permute.xlu0 %3812
      %3814 = vrot.lane.b32.xlu0 %v3580, 12
      %v3815 = vpop.permute.xlu0 %3814
      %3816 = vrot.lane.b32.xlu0 %v3582, 12
      %v3817 = vpop.permute.xlu0 %3816
      %3818 = vrot.lane.b32.xlu0 %v3583, 12
      %v3819 = vpop.permute.xlu0 %3818
      %3820 = vrot.lane.b32.xlu0 %v3585, 12
      %v3821 = vpop.permute.xlu0 %3820
      %3822 = vrot.lane.b32.xlu0 %v3586, 12
      %v3823 = vpop.permute.xlu0 %3822
      %3824 = vrot.lane.b32.xlu0 %v3588, 12
      %v3825 = vpop.permute.xlu0 %3824
      %3826 = vrot.lane.b32.xlu0 %v3589, 12
      %v3827 = vpop.permute.xlu0 %3826
      %v3845 = vrot.slane %v3588, 1
      %v3846 = vrot.slane %v3589, 1
      %v3847 = vsel %vm725, %v3845, %v3846
      %v3848 = vrot.slane %v3590, 1
      %v3849 = vsel %vm725, %v3846, %v3848
      %3850 = vrot.lane.b32.xlu0 %v3625, 16
      %v3851 = vpop.permute.xlu0 %3850
      %3852 = vrot.lane.b32.xlu0 %v3627, 16
      %v3853 = vpop.permute.xlu0 %3852
      %3854 = vrot.lane.b32.xlu0 %v3630, 16
      %v3855 = vpop.permute.xlu0 %3854
      %3856 = vrot.lane.b32.xlu0 %v3632, 16
      %v3857 = vpop.permute.xlu0 %3856
      %3858 = vrot.lane.b32.xlu0 %v3635, 16
      %v3859 = vpop.permute.xlu0 %3858
      %3860 = vrot.lane.b32.xlu0 %v3637, 16
      %v3861 = vpop.permute.xlu0 %3860
      %3862 = vrot.lane.b32.xlu0 %v3640, 16
      %v3863 = vpop.permute.xlu0 %3862
      %3864 = vrot.lane.b32.xlu0 %v3642, 16
      %v3865 = vpop.permute.xlu0 %3864
      %3866 = vrot.lane.b32.xlu0 %v3645, 16
      %v3867 = vpop.permute.xlu0 %3866
      %3868 = vrot.lane.b32.xlu0 %v3647, 16
      %v3869 = vpop.permute.xlu0 %3868
      %3870 = vrot.lane.b32.xlu0 %v3650, 16
      %v3871 = vpop.permute.xlu0 %3870
      %3872 = vrot.lane.b32.xlu0 %v3652, 16
      %v3873 = vpop.permute.xlu0 %3872
      %3874 = vrot.lane.b32.xlu0 %v3655, 16
      %v3875 = vpop.permute.xlu0 %3874
      %3876 = vrot.lane.b32.xlu0 %v3657, 16
      %v3877 = vpop.permute.xlu0 %3876
      %3878 = vrot.lane.b32.xlu0 %v3847, 16
      %v3879 = vpop.permute.xlu0 %3878
      %3880 = vrot.lane.b32.xlu0 %v3849, 16
      %v3881 = vpop.permute.xlu0 %3880
      %v3898 = vrot.slane %v3588, 2
      %v3899 = vrot.slane %v3589, 2
      %v3900 = vsel %vm1221, %v3898, %v3899
      %v3901 = vrot.slane %v3590, 2
      %v3902 = vsel %vm1221, %v3899, %v3901
      %3903 = vrot.lane.b32.xlu0 %v3713, 20
      %v3904 = vpop.permute.xlu0 %3903
      %3905 = vrot.lane.b32.xlu0 %v3715, 20
      %v3906 = vpop.permute.xlu0 %3905
      %3907 = vrot.lane.b32.xlu0 %v3718, 20
      %v3908 = vpop.permute.xlu0 %3907
      %3909 = vrot.lane.b32.xlu0 %v3720, 20
      %v3910 = vpop.permute.xlu0 %3909
      %3911 = vrot.lane.b32.xlu0 %v3723, 20
      %v3912 = vpop.permute.xlu0 %3911
      %3913 = vrot.lane.b32.xlu0 %v3725, 20
      %v3914 = vpop.permute.xlu0 %3913
      %3915 = vrot.lane.b32.xlu0 %v3728, 20
      %v3916 = vpop.permute.xlu0 %3915
      %3917 = vrot.lane.b32.xlu0 %v3730, 20
      %v3918 = vpop.permute.xlu0 %3917
      %3919 = vrot.lane.b32.xlu0 %v3733, 20
      %v3920 = vpop.permute.xlu0 %3919
      %3921 = vrot.lane.b32.xlu0 %v3735, 20
      %v3922 = vpop.permute.xlu0 %3921
      %3923 = vrot.lane.b32.xlu0 %v3738, 20
      %v3924 = vpop.permute.xlu0 %3923
      %3925 = vrot.lane.b32.xlu0 %v3740, 20
      %v3926 = vpop.permute.xlu0 %3925
      %3927 = vrot.lane.b32.xlu0 %v3743, 20
      %v3928 = vpop.permute.xlu0 %3927
      %3929 = vrot.lane.b32.xlu0 %v3745, 20
      %v3930 = vpop.permute.xlu0 %3929
      %3931 = vrot.lane.b32.xlu0 %v3900, 20
      %v3932 = vpop.permute.xlu0 %3931
      %3933 = vrot.lane.b32.xlu0 %v3902, 20
      %v3934 = vpop.permute.xlu0 %3933
      %3953 = vrot.lane.b32.xlu0 %v3570, 24
      %v3954 = vpop.permute.xlu0 %3953
      %3955 = vrot.lane.b32.xlu0 %v3571, 24
      %v3956 = vpop.permute.xlu0 %3955
      %3957 = vrot.lane.b32.xlu0 %v3573, 24
      %v3958 = vpop.permute.xlu0 %3957
      %3959 = vrot.lane.b32.xlu0 %v3574, 24
      %v3960 = vpop.permute.xlu0 %3959
      %3961 = vrot.lane.b32.xlu0 %v3576, 24
      %v3962 = vpop.permute.xlu0 %3961
      %3963 = vrot.lane.b32.xlu0 %v3577, 24
      %v3964 = vpop.permute.xlu0 %3963
      %3965 = vrot.lane.b32.xlu0 %v3579, 24
      %v3966 = vpop.permute.xlu0 %3965
      %3967 = vrot.lane.b32.xlu0 %v3580, 24
      %v3968 = vpop.permute.xlu0 %3967
      %3969 = vrot.lane.b32.xlu0 %v3582, 24
      %v3970 = vpop.permute.xlu0 %3969
      %3971 = vrot.lane.b32.xlu0 %v3583, 24
      %v3972 = vpop.permute.xlu0 %3971
      %3973 = vrot.lane.b32.xlu0 %v3585, 24
      %v3974 = vpop.permute.xlu0 %3973
      %3975 = vrot.lane.b32.xlu0 %v3586, 24
      %v3976 = vpop.permute.xlu0 %3975
      %3977 = vrot.lane.b32.xlu0 %v3588, 24
      %v3978 = vpop.permute.xlu0 %3977
      %3979 = vrot.lane.b32.xlu0 %v3589, 24
      %v3980 = vpop.permute.xlu0 %3979
      %3981 = vrot.lane.b32.xlu0 %v3591, 24
      %v3982 = vpop.permute.xlu0 %3981
      %3983 = vrot.lane.b32.xlu0 %v3592, 24
      %v3984 = vpop.permute.xlu0 %3983
      %v4002 = vrot.slane %v3591, 1
      %v4003 = vrot.slane %v3592, 1
      %v4004 = vsel %vm725, %v4002, %v4003
      %v4005 = vrot.slane %v3593, 1
      %v4006 = vsel %vm725, %v4003, %v4005
      %4007 = vrot.lane.b32.xlu0 %v3630, 28
      %v4008 = vpop.permute.xlu0 %4007
      %4009 = vrot.lane.b32.xlu0 %v3632, 28
      %v4010 = vpop.permute.xlu0 %4009
      %4011 = vrot.lane.b32.xlu0 %v3635, 28
      %v4012 = vpop.permute.xlu0 %4011
      %4013 = vrot.lane.b32.xlu0 %v3637, 28
      %v4014 = vpop.permute.xlu0 %4013
      %4015 = vrot.lane.b32.xlu0 %v3640, 28
      %v4016 = vpop.permute.xlu0 %4015
      %4017 = vrot.lane.b32.xlu0 %v3642, 28
      %v4018 = vpop.permute.xlu0 %4017
      %4019 = vrot.lane.b32.xlu0 %v3645, 28
      %v4020 = vpop.permute.xlu0 %4019
      %4021 = vrot.lane.b32.xlu0 %v3647, 28
      %v4022 = vpop.permute.xlu0 %4021
      %4023 = vrot.lane.b32.xlu0 %v3650, 28
      %v4024 = vpop.permute.xlu0 %4023
      %4025 = vrot.lane.b32.xlu0 %v3652, 28
      %v4026 = vpop.permute.xlu0 %4025
      %4027 = vrot.lane.b32.xlu0 %v3655, 28
      %v4028 = vpop.permute.xlu0 %4027
      %4029 = vrot.lane.b32.xlu0 %v3657, 28
      %v4030 = vpop.permute.xlu0 %4029
      %4031 = vrot.lane.b32.xlu0 %v3847, 28
      %v4032 = vpop.permute.xlu0 %4031
      %4033 = vrot.lane.b32.xlu0 %v3849, 28
      %v4034 = vpop.permute.xlu0 %4033
      %4035 = vrot.lane.b32.xlu0 %v4004, 28
      %v4036 = vpop.permute.xlu0 %4035
      %4037 = vrot.lane.b32.xlu0 %v4006, 28
      %v4038 = vpop.permute.xlu0 %4037
      %v4055 = vrot.slane %v3591, 2
      %v4056 = vrot.slane %v3592, 2
      %v4057 = vsel %vm1221, %v4055, %v4056
      %v4058 = vrot.slane %v3593, 2
      %v4059 = vsel %vm1221, %v4056, %v4058
      %4060 = vrot.lane.b32.xlu0 %v3718, 32
      %v4061 = vpop.permute.xlu0 %4060
      %4062 = vrot.lane.b32.xlu0 %v3720, 32
      %v4063 = vpop.permute.xlu0 %4062
      %4064 = vrot.lane.b32.xlu0 %v3723, 32
      %v4065 = vpop.permute.xlu0 %4064
      %4066 = vrot.lane.b32.xlu0 %v3725, 32
      %v4067 = vpop.permute.xlu0 %4066
      %4068 = vrot.lane.b32.xlu0 %v3728, 32
      %v4069 = vpop.permute.xlu0 %4068
      %4070 = vrot.lane.b32.xlu0 %v3730, 32
      %v4071 = vpop.permute.xlu0 %4070
      %4072 = vrot.lane.b32.xlu0 %v3733, 32
      %v4073 = vpop.permute.xlu0 %4072
      %4074 = vrot.lane.b32.xlu0 %v3735, 32
      %v4075 = vpop.permute.xlu0 %4074
      %4076 = vrot.lane.b32.xlu0 %v3738, 32
      %v4077 = vpop.permute.xlu0 %4076
      %4078 = vrot.lane.b32.xlu0 %v3740, 32
      %v4079 = vpop.permute.xlu0 %4078
      %4080 = vrot.lane.b32.xlu0 %v3743, 32
      %v4081 = vpop.permute.xlu0 %4080
      %4082 = vrot.lane.b32.xlu0 %v3745, 32
      %v4083 = vpop.permute.xlu0 %4082
      %4084 = vrot.lane.b32.xlu0 %v3900, 32
      %v4085 = vpop.permute.xlu0 %4084
      %4086 = vrot.lane.b32.xlu0 %v3902, 32
      %v4087 = vpop.permute.xlu0 %4086
      %4088 = vrot.lane.b32.xlu0 %v4057, 32
      %v4089 = vpop.permute.xlu0 %4088
      %4090 = vrot.lane.b32.xlu0 %v4059, 32
      %v4091 = vpop.permute.xlu0 %4090
      %v4108 = vsel %vm1477, %v3564, %v3659
      %v4109 = vsel %vm1477, %v3565, %v3661
      %v4110 = vsel %vm1477, %v3567, %v3663
      %v4111 = vsel %vm1477, %v3568, %v3665
      %v4112 = vsel %vm1477, %v3570, %v3667
      %v4113 = vsel %vm1477, %v3571, %v3669
      %v4114 = vsel %vm1477, %v3573, %v3671
      %v4115 = vsel %vm1477, %v3574, %v3673
      %v4116 = vsel %vm1477, %v3576, %v3675
      %v4117 = vsel %vm1477, %v3577, %v3677
      %v4118 = vsel %vm1477, %v3579, %v3679
      %v4119 = vsel %vm1477, %v3580, %v3681
      %v4120 = vsel %vm1477, %v3582, %v3683
      %v4121 = vsel %vm1477, %v3583, %v3685
      %v4122 = vsel %vm1477, %v3585, %v3687
      %v4123 = vsel %vm1477, %v3586, %v3689
      %v4124 = vsel %vm514, %v4108, %v3747
      %v4125 = vsel %vm514, %v4109, %v3749
      %v4126 = vsel %vm514, %v4110, %v3751
      %v4127 = vsel %vm514, %v4111, %v3753
      %v4128 = vsel %vm514, %v4112, %v3755
      %v4129 = vsel %vm514, %v4113, %v3757
      %v4130 = vsel %vm514, %v4114, %v3759
      %v4131 = vsel %vm514, %v4115, %v3761
      %v4132 = vsel %vm514, %v4116, %v3763
      %v4133 = vsel %vm514, %v4117, %v3765
      %v4134 = vsel %vm514, %v4118, %v3767
      %v4135 = vsel %vm514, %v4119, %v3769
      %v4136 = vsel %vm514, %v4120, %v3771
      %v4137 = vsel %vm514, %v4121, %v3773
      %v4138 = vsel %vm514, %v4122, %v3775
      %v4139 = vsel %vm514, %v4123, %v3777
      %v4140 = vsel %vm2016, %v4124, %v3797
      %v4141 = vsel %vm2016, %v4125, %v3799
      %v4142 = vsel %vm2016, %v4126, %v3801
      %v4143 = vsel %vm2016, %v4127, %v3803
      %v4144 = vsel %vm2016, %v4128, %v3805
      %v4145 = vsel %vm2016, %v4129, %v3807
      %v4146 = vsel %vm2016, %v4130, %v3809
      %v4147 = vsel %vm2016, %v4131, %v3811
      %v4148 = vsel %vm2016, %v4132, %v3813
      %v4149 = vsel %vm2016, %v4133, %v3815
      %v4150 = vsel %vm2016, %v4134, %v3817
      %v4151 = vsel %vm2016, %v4135, %v3819
      %v4152 = vsel %vm2016, %v4136, %v3821
      %v4153 = vsel %vm2016, %v4137, %v3823
      %v4154 = vsel %vm2016, %v4138, %v3825
      %v4155 = vsel %vm2016, %v4139, %v3827
      %v4156 = vsel %vm2037, %v4140, %v3851
      %v4157 = vsel %vm2037, %v4141, %v3853
      %v4158 = vsel %vm2037, %v4142, %v3855
      %v4159 = vsel %vm2037, %v4143, %v3857
      %v4160 = vsel %vm2037, %v4144, %v3859
      %v4161 = vsel %vm2037, %v4145, %v3861
      %v4162 = vsel %vm2037, %v4146, %v3863
      %v4163 = vsel %vm2037, %v4147, %v3865
      %v4164 = vsel %vm2037, %v4148, %v3867
      %v4165 = vsel %vm2037, %v4149, %v3869
      %v4166 = vsel %vm2037, %v4150, %v3871
      %v4167 = vsel %vm2037, %v4151, %v3873
      %v4168 = vsel %vm2037, %v4152, %v3875
      %v4169 = vsel %vm2037, %v4153, %v3877
      %v4170 = vsel %vm2037, %v4154, %v3879
      %v4171 = vsel %vm2037, %v4155, %v3881
      %v4172 = vsel %vm2058, %v4156, %v3904
      %v4173 = vsel %vm2058, %v4157, %v3906
      %v4174 = vsel %vm2058, %v4158, %v3908
      %v4175 = vsel %vm2058, %v4159, %v3910
      %v4176 = vsel %vm2058, %v4160, %v3912
      %v4177 = vsel %vm2058, %v4161, %v3914
      %v4178 = vsel %vm2058, %v4162, %v3916
      %v4179 = vsel %vm2058, %v4163, %v3918
      %v4180 = vsel %vm2058, %v4164, %v3920
      %v4181 = vsel %vm2058, %v4165, %v3922
      %v4182 = vsel %vm2058, %v4166, %v3924
      %v4183 = vsel %vm2058, %v4167, %v3926
      %v4184 = vsel %vm2058, %v4168, %v3928
      %v4185 = vsel %vm2058, %v4169, %v3930
      %v4186 = vsel %vm2058, %v4170, %v3932
      %v4187 = vsel %vm2058, %v4171, %v3934
      %v4188 = vsel %vm2079, %v4172, %v3954
      %v4189 = vsel %vm2079, %v4173, %v3956
      %v4190 = vsel %vm2079, %v4174, %v3958
      %v4191 = vsel %vm2079, %v4175, %v3960
      %v4192 = vsel %vm2079, %v4176, %v3962
      %v4193 = vsel %vm2079, %v4177, %v3964
      %v4194 = vsel %vm2079, %v4178, %v3966
      %v4195 = vsel %vm2079, %v4179, %v3968
      %v4196 = vsel %vm2079, %v4180, %v3970
      %v4197 = vsel %vm2079, %v4181, %v3972
      %v4198 = vsel %vm2079, %v4182, %v3974
      %v4199 = vsel %vm2079, %v4183, %v3976
      %v4200 = vsel %vm2079, %v4184, %v3978
      %v4201 = vsel %vm2079, %v4185, %v3980
      %v4202 = vsel %vm2079, %v4186, %v3982
      %v4203 = vsel %vm2079, %v4187, %v3984
      %v4204 = vsel %vm2100, %v4188, %v4008
      %v4205 = vsel %vm2100, %v4189, %v4010
      %v4206 = vsel %vm2100, %v4190, %v4012
      %v4207 = vsel %vm2100, %v4191, %v4014
      %v4208 = vsel %vm2100, %v4192, %v4016
      %v4209 = vsel %vm2100, %v4193, %v4018
      %v4210 = vsel %vm2100, %v4194, %v4020
      %v4211 = vsel %vm2100, %v4195, %v4022
      %v4212 = vsel %vm2100, %v4196, %v4024
      %v4213 = vsel %vm2100, %v4197, %v4026
      %v4214 = vsel %vm2100, %v4198, %v4028
      %v4215 = vsel %vm2100, %v4199, %v4030
      %v4216 = vsel %vm2100, %v4200, %v4032
      %v4217 = vsel %vm2100, %v4201, %v4034
      %v4218 = vsel %vm2100, %v4202, %v4036
      %v4219 = vsel %vm2100, %v4203, %v4038
      %v4220 = vsel %vm2121, %v4204, %v4061
      %v4221 = vsel %vm2121, %v4205, %v4063
      %v4222 = vsel %vm2121, %v4206, %v4065
      %v4223 = vsel %vm2121, %v4207, %v4067
      %v4224 = vsel %vm2121, %v4208, %v4069
      %v4225 = vsel %vm2121, %v4209, %v4071
      %v4226 = vsel %vm2121, %v4210, %v4073
      %v4227 = vsel %vm2121, %v4211, %v4075
      %v4228 = vsel %vm2121, %v4212, %v4077
      %v4229 = vsel %vm2121, %v4213, %v4079
      %v4230 = vsel %vm2121, %v4214, %v4081
      %v4231 = vsel %vm2121, %v4215, %v4083
      %v4232 = vsel %vm2121, %v4216, %v4085
      %v4233 = vsel %vm2121, %v4217, %v4087
      %v4234 = vsel %vm2121, %v4218, %v4089
      %v4235 = vsel %vm2121, %v4219, %v4091
      %v4236 = vld [vmem:[%s9] sm:$0xf]
      %v4237 = vld [vmem:[%s9 + $0x4] sm:$0xf]
      %v4238 = vld [vmem:[%s9 + $0x8] sm:$0xf]
      %v4239 = vld [vmem:[%s9 + $0xc] sm:$0xf]
      %v4240 = vld [vmem:[%s9 + $0x10] sm:$0x3]
      %v4241 = vunpack.c.l.bf16 %v4236
      %v4242 = vunpack.c.l.bf16 %v4237
      %v4243 = vunpack.c.l.bf16 %v4238
      %v4244 = vunpack.c.l.bf16 %v4239
      %v4245 = vunpack.c.l.bf16 %v4240
      %v4247 = vsel %vm2989, %v4220, 0
      %v4250 = vsel %vm2989, %v4221, 0
      %v4253 = vsel %vm2989, %v4222, 0
      %v4256 = vsel %vm2989, %v4223, 0
      %v4259 = vsel %vm2989, %v4224, 0
      %v4262 = vsel %vm2989, %v4225, 0
      %v4265 = vsel %vm2989, %v4226, 0
      %v4268 = vsel %vm2989, %v4227, 0
      %v4271 = vsel %vm2989, %v4228, 0
      %v4274 = vsel %vm2989, %v4229, 0
      %v4277 = vsel %vm2989, %v4230, 0
      %v4280 = vsel %vm2989, %v4231, 0
      %v4283 = vsel %vm2989, %v4232, 0
      %v4286 = vsel %vm2989, %v4233, 0
      %v4289 = vsel %vm2989, %v4234, 0
      %v4292 = vsel %vm2989, %v4235, 0
      %v4295 = vsel %vm527, %v4245, 0
      %4297 = vmatprep.subr.mxu0 0.0
      %4298 = vmatpush1.msra.mxu0 0.0
      %4299 = vmatprep.subr.mxu0 0.0
      %4300 = vmatpush1.msra.mxu0 0.0
      %4301 = vmatprep.subr.mxu0 0.0
      %4302 = vmatpush1.msra.mxu0 0.0
      %4303 = vmatprep.subr.mxu0 0.0
      %4304 = vmatpush1.msra.mxu0 0.0
      %4305 = vmatprep.subr.mxu0 0.0
      %4306 = vmatpush1.msra.mxu0 0.0
      %4307 = vmatprep.subr.mxu0 0.0
      %4308 = vmatpush1.msra.mxu0 0.0
      %4309 = vmatprep.subr.mxu0 0.0
      %4310 = vmatpush1.msra.mxu0 0.0
      %4311 = vmatprep.subr.mxu0 0.0
      %4312 = vmatpush1.msra.mxu0 0.0
      %4313 = vmatprep.subr.mxu0 0.0
      %4314 = vmatpush1.msra.mxu0 0.0
      %4315 = vmatprep.subr.mxu0 0.0
      %4316 = vmatpush1.msra.mxu0 0.0
      %4317 = vmatprep.subr.mxu0 0.0
      %4318 = vmatpush1.msra.mxu0 0.0
      %4319 = vmatprep.subr.mxu0 0.0
      %4320 = vmatpush1.msra.mxu0 %v4295
      %4321 = vmatprep.subr.mxu0 0.0
      %4322 = vmatpush1.msra.mxu0 %v4244
      %4323 = vmatprep.subr.mxu0 0.0
      %4324 = vmatpush1.msra.mxu0 %v4243
      %4325 = vmatprep.subr.mxu0 0.0
      %4326 = vmatpush1.msra.mxu0 %v4242
      %4327 = vmatprep.subr.mxu0 0.0
      %4328 = vmatpush1.msra.mxu0 %v4241
      %4329 = vmatprep.subr.mxu0 0.0
      %4330 = vmatpush2.msra.mxu0 0.0
      %4331 = vmatprep.subr.mxu0 0.0
      %4332 = vmatpush2.msra.mxu0 0.0
      %4333 = vmatprep.subr.mxu0 0.0
      %4334 = vmatpush2.msra.mxu0 0.0
      %4335 = vmatprep.subr.mxu0 0.0
      %4336 = vmatpush2.msra.mxu0 0.0
      %4337 = vmatprep.subr.mxu0 0.0
      %4338 = vmatpush2.msra.mxu0 0.0
      %4339 = vmatprep.subr.mxu0 0.0
      %4340 = vmatpush2.msra.mxu0 0.0
      %4341 = vmatprep.subr.mxu0 0.0
      %4342 = vmatpush2.msra.mxu0 0.0
      %4343 = vmatprep.subr.mxu0 0.0
      %4344 = vmatpush2.msra.mxu0 0.0
      %4345 = vmatprep.subr.mxu0 0.0
      %4346 = vmatpush2.msra.mxu0 0.0
      %4347 = vmatprep.subr.mxu0 0.0
      %4348 = vmatpush2.msra.mxu0 0.0
      %4349 = vmatprep.subr.mxu0 0.0
      %4350 = vmatpush2.msra.mxu0 0.0
      %4351 = vmatprep.subr.mxu0 0.0
      %4352 = vmatpush2.msra.mxu0 0.0
      %4353 = vmatprep.subr.mxu0 0.0
      %4354 = vmatpush2.msra.mxu0 0.0
      %4355 = vmatprep.subr.mxu0 0.0
      %4356 = vmatpush2.msra.mxu0 0.0
      %4357 = vmatprep.subr.mxu0 0.0
      %4358 = vmatpush2.msra.mxu0 0.0
      %4359 = vmatprep.subr.mxu0 0.0
      %4360 = vmatpush2.msra.mxu0 0.0
      %4361 = vmatprep.mubr.f32.mxu0 0.0
      %4362 = vmatmul.mubr.f32.gmra.mxu0 %v4247
      %v4363 = vpop.f32.mrf.mxu0
      %v4364 = vadd.f32 0.0, %v4363
      %v4365 = vpop.f32.mrf.mxu0
      %4366 = vmatprep.mubr.f32.mxu0 0.0
      %4367 = vmatmul.mubr.f32.gmra.mxu0 %v4250
      %v4368 = vpop.f32.mrf.mxu0
      %v4369 = vadd.f32 0.0, %v4368
      %v4370 = vpop.f32.mrf.mxu0
      %4371 = vmatprep.mubr.f32.mxu0 0.0
      %4372 = vmatmul.mubr.f32.gmra.mxu0 %v4253
      %v4373 = vpop.f32.mrf.mxu0
      %v4374 = vadd.f32 0.0, %v4373
      %v4375 = vpop.f32.mrf.mxu0
      %4376 = vmatprep.mubr.f32.mxu0 0.0
      %4377 = vmatmul.mubr.f32.gmra.mxu0 %v4256
      %v4378 = vpop.f32.mrf.mxu0
      %v4379 = vadd.f32 0.0, %v4378
      %v4380 = vpop.f32.mrf.mxu0
      %4381 = vmatprep.mubr.f32.mxu0 0.0
      %4382 = vmatmul.mubr.f32.gmra.mxu0 %v4259
      %v4383 = vpop.f32.mrf.mxu0
      %v4384 = vadd.f32 0.0, %v4383
      %v4385 = vpop.f32.mrf.mxu0
      %4386 = vmatprep.mubr.f32.mxu0 0.0
      %4387 = vmatmul.mubr.f32.gmra.mxu0 %v4262
      %v4388 = vpop.f32.mrf.mxu0
      %v4389 = vadd.f32 0.0, %v4388
      %v4390 = vpop.f32.mrf.mxu0
      %4391 = vmatprep.mubr.f32.mxu0 0.0
      %4392 = vmatmul.mubr.f32.gmra.mxu0 %v4265
      %v4393 = vpop.f32.mrf.mxu0
      %v4394 = vadd.f32 0.0, %v4393
      %v4395 = vpop.f32.mrf.mxu0
      %4396 = vmatprep.mubr.f32.mxu0 0.0
      %4397 = vmatmul.mubr.f32.gmra.mxu0 %v4268
      %v4398 = vpop.f32.mrf.mxu0
      %v4399 = vadd.f32 0.0, %v4398
      %v4400 = vpop.f32.mrf.mxu0
      %4401 = vmatprep.mubr.f32.mxu0 0.0
      %4402 = vmatmul.mubr.f32.gmra.mxu0 %v4271
      %v4403 = vpop.f32.mrf.mxu0
      %v4404 = vadd.f32 0.0, %v4403
      %v4405 = vpop.f32.mrf.mxu0
      %4406 = vmatprep.mubr.f32.mxu0 0.0
      %4407 = vmatmul.mubr.f32.gmra.mxu0 %v4274
      %v4408 = vpop.f32.mrf.mxu0
      %v4409 = vadd.f32 0.0, %v4408
      %v4410 = vpop.f32.mrf.mxu0
      %4411 = vmatprep.mubr.f32.mxu0 0.0
      %4412 = vmatmul.mubr.f32.gmra.mxu0 %v4277
      %v4413 = vpop.f32.mrf.mxu0
      %v4414 = vadd.f32 0.0, %v4413
      %v4415 = vpop.f32.mrf.mxu0
      %4416 = vmatprep.mubr.f32.mxu0 0.0
      %4417 = vmatmul.mubr.f32.gmra.mxu0 %v4280
      %v4418 = vpop.f32.mrf.mxu0
      %v4419 = vadd.f32 0.0, %v4418
      %v4420 = vpop.f32.mrf.mxu0
      %4421 = vmatprep.mubr.f32.mxu0 0.0
      %4422 = vmatmul.mubr.f32.gmra.mxu0 %v4283
      %v4423 = vpop.f32.mrf.mxu0
      %v4424 = vadd.f32 0.0, %v4423
      %v4425 = vpop.f32.mrf.mxu0
      %4426 = vmatprep.mubr.f32.mxu0 0.0
      %4427 = vmatmul.mubr.f32.gmra.mxu0 %v4286
      %v4428 = vpop.f32.mrf.mxu0
      %v4429 = vadd.f32 0.0, %v4428
      %v4430 = vpop.f32.mrf.mxu0
      %4431 = vmatprep.mubr.f32.mxu0 0.0
      %4432 = vmatmul.mubr.f32.gmra.mxu0 %v4289
      %v4433 = vpop.f32.mrf.mxu0
      %v4434 = vadd.f32 0.0, %v4433
      %v4435 = vpop.f32.mrf.mxu0
      %4436 = vmatprep.mubr.f32.mxu0 0.0
      %4437 = vmatmul.mubr.f32.gmra.mxu0 %v4292
      %v4438 = vpop.f32.mrf.mxu0
      %v4439 = vadd.f32 0.0, %v4438
      %v4440 = vpop.f32.mrf.mxu0
      %4441 = vdwg.mxu0
      %v4442 = vld [vmem:[%s10] sm:$0x1]
      %v4444 = vlaneseq
      %v4445 = vshrl.u32 %v4444, 7
      %v4446 = vsub.s32 0, %v4445
      %v4447 = vrot.slane %v4442, %v4446
      %v4449 = vmul.f32 %v4364, %v4447
      %v4450 = vmul.f32 %v4369, %v4447
      %v4451 = vmul.f32 %v4374, %v4447
      %v4452 = vmul.f32 %v4379, %v4447
      %v4453 = vmul.f32 %v4384, %v4447
      %v4454 = vmul.f32 %v4389, %v4447
      %v4455 = vmul.f32 %v4394, %v4447
      %v4456 = vmul.f32 %v4399, %v4447
      %v4457 = vmul.f32 %v4404, %v4447
      %v4458 = vmul.f32 %v4409, %v4447
      %v4459 = vmul.f32 %v4414, %v4447
      %v4460 = vmul.f32 %v4419, %v4447
      %v4461 = vmul.f32 %v4424, %v4447
      %v4462 = vmul.f32 %v4429, %v4447
      %v4463 = vmul.f32 %v4434, %v4447
      %v4464 = vmul.f32 %v4439, %v4447
      %v4465 = vld [vmem:[%s11] sm:$0x1]
      %v4467 = vlaneseq
      %v4468 = vshrl.u32 %v4467, 7
      %v4469 = vsub.s32 0, %v4468
      %v4470 = vrot.slane %v4465, %v4469
      %v4472 = vadd.f32 %v4449, %v4470
      %v4473 = vadd.f32 %v4450, %v4470
      %v4474 = vadd.f32 %v4451, %v4470
      %v4475 = vadd.f32 %v4452, %v4470
      %v4476 = vadd.f32 %v4453, %v4470
      %v4477 = vadd.f32 %v4454, %v4470
      %v4478 = vadd.f32 %v4455, %v4470
      %v4479 = vadd.f32 %v4456, %v4470
      %v4480 = vadd.f32 %v4457, %v4470
      %v4481 = vadd.f32 %v4458, %v4470
      %v4482 = vadd.f32 %v4459, %v4470
      %v4483 = vadd.f32 %v4460, %v4470
      %v4484 = vadd.f32 %v4461, %v4470
      %v4485 = vadd.f32 %v4462, %v4470
      %v4486 = vadd.f32 %v4463, %v4470
      %v4487 = vadd.f32 %v4464, %v4470
      %v4488 = vmax.f32 %v4472, 0.0
      %v4489 = vmax.f32 %v4473, 0.0
      %v4490 = vmax.f32 %v4474, 0.0
      %v4491 = vmax.f32 %v4475, 0.0
      %v4492 = vmax.f32 %v4476, 0.0
      %v4493 = vmax.f32 %v4477, 0.0
      %v4494 = vmax.f32 %v4478, 0.0
      %v4495 = vmax.f32 %v4479, 0.0
      %v4496 = vmax.f32 %v4480, 0.0
      %v4497 = vmax.f32 %v4481, 0.0
      %v4498 = vmax.f32 %v4482, 0.0
      %v4499 = vmax.f32 %v4483, 0.0
      %v4500 = vmax.f32 %v4484, 0.0
      %v4501 = vmax.f32 %v4485, 0.0
      %v4502 = vmax.f32 %v4486, 0.0
      %v4503 = vmax.f32 %v4487, 0.0
      %4504 = vst.msk [vmem:[%s483] sm:$0xff] %vm1477, %v4488
      %4505 = vst.msk [vmem:[%s483 + $0x8] sm:$0xff] %vm1477, %v4489
      %4506 = vst.msk [vmem:[%s483 + $0x10] sm:$0xff] %vm1477, %v4490
      %4507 = vst.msk [vmem:[%s483 + $0x18] sm:$0xff] %vm1477, %v4491
      %4508 = vst.msk [vmem:[%s483 + $0x20] sm:$0xff] %vm1477, %v4492
      %4509 = vst.msk [vmem:[%s483 + $0x28] sm:$0xff] %vm1477, %v4493
      %4510 = vst.msk [vmem:[%s483 + $0x30] sm:$0xff] %vm1477, %v4494
      %4511 = vst.msk [vmem:[%s483 + $0x38] sm:$0xff] %vm1477, %v4495
      %4512 = vst.msk [vmem:[%s483 + $0x40] sm:$0xff] %vm1477, %v4496
      %4513 = vst.msk [vmem:[%s483 + $0x48] sm:$0xff] %vm1477, %v4497
      %4514 = vst.msk [vmem:[%s483 + $0x50] sm:$0xff] %vm1477, %v4498
      %4515 = vst.msk [vmem:[%s483 + $0x58] sm:$0xff] %vm1477, %v4499
      %4516 = vst.msk [vmem:[%s483 + $0x60] sm:$0xff] %vm1477, %v4500
      %4517 = vst.msk [vmem:[%s483 + $0x68] sm:$0xff] %vm1477, %v4501
      %4518 = vst.msk [vmem:[%s483 + $0x70] sm:$0xff] %vm1477, %v4502
      %4519 = vst.msk [vmem:[%s483 + $0x78] sm:$0xff] %vm1477, %v4503
      %p4520 = scmp.lt.s32.totalorder %s27, 1
      %s4521 = scalar_select %p4520, %s27, 1
      %p4522 = scmp.lt.s32.totalorder %s28, 1
      %s4523 = scalar_select %p4522, %s28, 1
      %s4524 = smul.addr %s4523, 16
      %s4525 = smul.addr %s4521, 32
      %s4526 = sadd.s32 %s4524, %s4525
      %s4527 = smul.addr %s4526, 8
      %s4528 = scalar_lea.vmem %s12, %s4527
      // Predicated region
      $region69: #{upconv_block_forward.1} parent=67 // pred_check
        %p4529 = pneg %p321
      $region70: #{upconv_block_forward.1} parent=67 // pred_check_branch
        %4531 = sbr.rel (%p4529) target = $region72
      $region71: #{upconv_block_forward.1} parent=67 // pred_region
        _
      $region72: #{upconv_block_forward.1} parent=67 // pred_fallthru
        _
    $region68: #{upconv_block_forward.1} parent=5 // pred_fallthru
      _
    %p4532 = scmp.le.s32.totalorder 2, %s18
    // Predicated region
    $region73: #{upconv_block_forward.1} parent=5 // pred_check
      %p4533 = pneg %p4532
    $region74: #{upconv_block_forward.1} parent=5 // pred_check_branch
      %4535 = sbr.rel (%p4533) target = $region76
    $region75: #{upconv_block_forward.1} parent=5 // pred_region
      %s4536 = ssub.s32 %s18, 2
      // Predicated region
      $region77: #{upconv_block_forward.1} parent=75 // pred_check
        %p4537 = pneg %p327
      $region78: #{upconv_block_forward.1} parent=75 // pred_check_branch
        %4539 = sbr.rel (%p4537) target = $region80
      $region79: #{upconv_block_forward.1} parent=75 // pred_region
        %p4540 = scmp.lt.s32.totalorder %s29, 1
        %s4541 = scalar_select %p4540, %s29, 1
        %p4542 = scmp.lt.s32.totalorder %s30, 1
        %s4543 = scalar_select %p4542, %s30, 1
        %s4544 = smul.addr %s4543, 16
        %s4545 = smul.addr %s4541, 32
        %s4546 = sadd.s32 %s4544, %s4545
        %s4547 = smul.addr %s4546, 8
        %s4548 = scalar_lea.vmem %s12, %s4547
      $region80: #{upconv_block_forward.1} parent=75 // pred_fallthru
        _
    $region76: #{upconv_block_forward.1} parent=5 // pred_fallthru
      _
  $region6: #{upconv_block_forward.1} parent=0 // loop_footer
    %s22 = sadd.s32 1, %s18
  $region7: #{upconv_block_forward.1} parent=0 // loop_footer_branch
    %17 = sbr.rel target = $region3
  $region8: #{upconv_block_forward.1} parent=0 // loop_exit
    _

</llo_original>
